<compile_context>
chip_gen: v6e
topology: v6e:2x2x1
jax: 0.10.0
libtpu: 0.0.40
codegen_flags: <defaults>
</compile_context>

<pallas_src>
import numpy as np
import jax
import jax.numpy as jnp
from jax import lax
from jax.experimental import pallas as pl
from jax.experimental.pallas import tpu as pltpu


# ----------------------------------------------------------------------------
# Bicubic upsample matrix (torch semantics: a=-0.75, align_corners=False,
# border indices clamped).  Built with numpy at trace time (glue, not compute).
# ----------------------------------------------------------------------------
def _cubic(x, a=-0.75):
    x = abs(float(x))
    if x <= 1.0:
        return (a + 2.0) * x ** 3 - (a + 3.0) * x ** 2 + 1.0
    elif x < 2.0:
        return a * x ** 3 - 5.0 * a * x ** 2 + 8.0 * a * x - 4.0 * a
    return 0.0


def bicubic_matrix(n_in, scale=4):
    n_out = n_in * scale
    U = np.zeros((n_out, n_in), dtype=np.float32)
    for j in range(n_out):
        src = (j + 0.5) / scale - 0.5
        f = int(np.floor(src))
        t = src - f
        wts = [_cubic(t + 1.0), _cubic(t), _cubic(1.0 - t), _cubic(2.0 - t)]
        for k in range(4):
            idx = min(max(f - 1 + k, 0), n_in - 1)
            U[j, idx] += wts[k]
    return U  # numpy (host)


# ----------------------------------------------------------------------------
# Fused SRNet kernel.  One grid step = one batch element.
#
# refs (all VMEM):
#   wf_ref : (cf, vc)      view-fusion 1x1 conv weights, transposed
#   wp_ref : (c, cf)       projection 1x1 conv weights, transposed
#   kt_ref : (hw, 16*hw)   kron(Uh, Uw)^T  (bicubic 4x upsample on flat pixels)
#   x_ref  : (1, vc, hw)   all views/channels of this batch element, pixels flat
#   base_ref, enh_ref : (1, c, 16*hw) output blocks (flat pixels, lane-dense)
# ----------------------------------------------------------------------------
def _make_srnet_kernel(v, c):
    ctr0 = (v // 2) * c          # first channel of the center view (static)

    def kernel(wf_ref, wp_ref, kt_ref, x_ref, base_ref, enh_ref):
        x = x_ref[0]                                   # (vc, hw)
        kt = kt_ref[...]                               # (hw, 16*hw)

        # --- detail branch at LOW resolution (MXU, lane-dense N = hw) -----
        feat = jnp.maximum(
            jnp.dot(wf_ref[...], x, preferred_element_type=jnp.float32), 0.0)
        pfeat = jnp.dot(wp_ref[...], feat,
                        preferred_element_type=jnp.float32)          # (c, hw)

        ctr = x[ctr0:ctr0 + c, :]                      # center view (c, hw)

        # --- bicubic 4x upsample: one lane-dense matmul per plane stack ---
        # (c = 4 pads to the same 8-sublane MXU tile whether or not the base
        #  and detail stacks are concatenated, so two dots == one stacked dot
        #  here; stack explicitly if c grows.)
        base_up = jnp.dot(ctr, kt, preferred_element_type=jnp.float32)
        det_up = jnp.dot(pfeat, kt, preferred_element_type=jnp.float32)

        base = jnp.clip(base_up, 0.0, 1.0)             # (c, 16*hw)
        detail = jnp.tanh(det_up)                      # (c, 16*hw)  EUP
        base_ref[0] = base
        enh_ref[0] = jnp.clip(base + detail, 0.0, 1.0)

    return kernel


# ----------------------------------------------------------------------------
# SRNet forward
# ----------------------------------------------------------------------------
def init_params(v, c, cf=8):
    # deterministic synthetic weights for the detail-branch stand-in
    k1, k2 = jax.random.split(jax.random.PRNGKey(42))
    w_fuse = jax.random.normal(k1, (v * c, cf), jnp.float32) * 0.1
    w_proj = jax.random.normal(k2, (cf, c), jnp.float32) * 0.1
    return {"w_fuse": w_fuse, "w_proj": w_proj}


def srnet_forward(images, params):
    """images: (b, v, c, h, w) f32 -> (base, enhanced), each (b, c, 4h, 4w)."""
    b, v, c, h, w = images.shape
    H4, W4 = 4 * h, 4 * w
    vc, hw, HW = v * c, h * w, 16 * h * w
    cf = params["w_fuse"].shape[1]

    wf_t = params["w_fuse"].T                       # (cf, vc)  host transpose
    wp_t = params["w_proj"].T                       # (c, cf)

    # kron(Uh, Uw)^T : flat-pixel bicubic upsample operator, (hw, 16*hw).
    kt = jnp.asarray(np.kron(bicubic_matrix(h), bicubic_matrix(w)).T)

    x_flat = images.reshape(b, vc, hw)              # free metadata reshape

    flops = int(b * (2 * cf * vc * hw + 2 * c * cf * hw
                     + 2 * (2 * c) * hw * HW))
    cost = pl.CostEstimate(
        flops=flops,
        transcendentals=int(b * c * HW),
        bytes_accessed=int(4 * (b * vc * hw + hw * HW + cf * vc + c * cf
                                + 2 * b * c * HW)),
    )

    base, enhanced = pl.pallas_call(
        _make_srnet_kernel(v, c),
        out_shape=(jax.ShapeDtypeStruct((b, c, HW), jnp.float32),
                   jax.ShapeDtypeStruct((b, c, HW), jnp.float32)),
        grid=(b,),
        in_specs=[
            pl.BlockSpec((cf, vc), lambda i: (0, 0)),           # Wf^T
            pl.BlockSpec((c, cf), lambda i: (0, 0)),            # Wp^T
            pl.BlockSpec((hw, HW), lambda i: (0, 0)),           # kron(Uh,Uw)^T
            pl.BlockSpec((1, vc, hw), lambda i: (i, 0, 0)),     # all views
        ],
        out_specs=(
            pl.BlockSpec((1, c, HW), lambda i: (i, 0, 0)),
            pl.BlockSpec((1, c, HW), lambda i: (i, 0, 0)),
        ),
        compiler_params=pltpu.CompilerParams(
            dimension_semantics=("parallel",),
            vmem_limit_bytes=16 * 1024 * 1024),
        cost_estimate=cost,
    )(wf_t, wp_t, kt, x_flat)

    # free contiguous reshapes back to image planes
    return (base.reshape(b, c, H4, W4), enhanced.reshape(b, c, H4, W4))


if __name__ == "__main__":
    b, v, c, h, w = 2, 3, 4, 16, 16
    cf = 8
    images = jax.random.uniform(jax.random.PRNGKey(0), (b, v, c, h, w),
                                jnp.float32)
    params = init_params(v, c, cf)

    base, enhanced = jax.jit(srnet_forward)(images, params)
    jax.block_until_ready((base, enhanced))

    # ---- pure-JAX reference of the same math (sanity check) ----
    hp = lax.Precision.HIGHEST
    uh = jnp.asarray(bicubic_matrix(h))
    uwt = jnp.asarray(bicubic_matrix(w).T)
    center = images[:, v // 2]
    ref_base = jnp.clip(
        jnp.einsum('Hh,bchw,wW->bcHW', uh, center, uwt, precision=hp), 0.0, 1.0)
    xs = images.reshape(b, v * c, h, w)
    feat = jnp.maximum(
        jnp.einsum('kf,bkhw->bfhw', params["w_fuse"], xs, precision=hp), 0.0)
    pfeat = jnp.einsum('fc,bfhw->bchw', params["w_proj"], feat, precision=hp)
    ref_det = jnp.tanh(
        jnp.einsum('Hh,bchw,wW->bcHW', uh, pfeat, uwt, precision=hp))
    ref_enh = jnp.clip(ref_base + ref_det, 0.0, 1.0)

    assert base.shape == (b, c, 4 * h, 4 * w)
    assert enhanced.shape == (b, c, 4 * h, 4 * w)
    assert float(jnp.max(jnp.abs(base - ref_base))) < 5e-2
    assert float(jnp.max(jnp.abs(enhanced - ref_enh))) < 5e-2
    assert bool(jnp.all(base >= 0.0) & jnp.all(base <= 1.0))
    assert bool(jnp.all(enhanced >= 0.0) & jnp.all(enhanced <= 1.0))
    print("KERNEL_OK")
</pallas_src>

<mosaic_0001>
module attributes {stable_mosaic.version = 11 : i64} {
  func.func @kernel(%arg0: i32, %arg1: memref<8x12xf32, #tpu.memory_space<vmem>>, %arg2: memref<4x8xf32, #tpu.memory_space<vmem>>, %arg3: memref<256x4096xf32, #tpu.memory_space<vmem>>, %arg4: memref<1x12x256xf32, #tpu.memory_space<vmem>>, %arg5: memref<1x4x4096xf32, #tpu.memory_space<vmem>>, %arg6: memref<1x4x4096xf32, #tpu.memory_space<vmem>>) attributes {dimension_semantics = [#tpu.dimension_semantics<parallel>], iteration_bounds = array<i64: 2>, scalar_prefetch = 0 : i64, scratch_operands = 0 : i64, tpu.core_type = #tpu.core_type<tc>, window_params = [{pipeline_mode = #tpu.pipeline_mode<synchronous>, transform_indices = @transform_0, window_bounds = array<i64: 8, 12>}, {pipeline_mode = #tpu.pipeline_mode<synchronous>, transform_indices = @transform_1, window_bounds = array<i64: 4, 8>}, {pipeline_mode = #tpu.pipeline_mode<synchronous>, transform_indices = @transform_2, window_bounds = array<i64: 256, 4096>}, {transform_indices = @transform_3, window_bounds = array<i64: 1, 12, 256>}, {transform_indices = @transform_4, window_bounds = array<i64: 1, 4, 4096>}, {transform_indices = @transform_5, window_bounds = array<i64: 1, 4, 4096>}]} {
    %c0 = arith.constant 0 : index
    %c0_0 = arith.constant 0 : index
    %c0_1 = arith.constant 0 : index
    %0 = vector.load %arg4[%c0, %c0_0, %c0_1] : memref<1x12x256xf32, #tpu.memory_space<vmem>>, vector<1x12x256xf32>
    %1 = vector.shape_cast %0 : vector<1x12x256xf32> to vector<12x256xf32>
    %c0_2 = arith.constant 0 : index
    %c0_3 = arith.constant 0 : index
    %2 = vector.load %arg3[%c0_2, %c0_3] : memref<256x4096xf32, #tpu.memory_space<vmem>>, vector<256x4096xf32>
    %c0_4 = arith.constant 0 : index
    %c0_5 = arith.constant 0 : index
    %3 = vector.load %arg1[%c0_4, %c0_5] : memref<8x12xf32, #tpu.memory_space<vmem>>, vector<8x12xf32>
    %cst = arith.constant dense<0.000000e+00> : vector<8x256xf32>
    %4 = tpu.matmul %3, %1, %cst {dimension_numbers = #tpu.dot_dimension_numbers<[1], [0], [0], [1], [0, 0, 1, 1], [], []>} : vector<8x12xf32>, vector<12x256xf32>, vector<8x256xf32> -> vector<8x256xf32>
    %cst_6 = arith.constant 0.000000e+00 : f32
    %5 = vector.broadcast %cst_6 : f32 to vector<8x256xf32>
    %6 = arith.maximumf %4, %5 : vector<8x256xf32>
    %c0_7 = arith.constant 0 : index
    %c0_8 = arith.constant 0 : index
    %7 = vector.load %arg2[%c0_7, %c0_8] : memref<4x8xf32, #tpu.memory_space<vmem>>, vector<4x8xf32>
    %cst_9 = arith.constant dense<0.000000e+00> : vector<4x256xf32>
    %8 = tpu.matmul %7, %6, %cst_9 {dimension_numbers = #tpu.dot_dimension_numbers<[1], [0], [0], [1], [0, 0, 1, 1], [], []>} : vector<4x8xf32>, vector<8x256xf32>, vector<4x256xf32> -> vector<4x256xf32>
    %9 = vector.extract_strided_slice %1 {offsets = [4, 0], sizes = [4, 256], strides = [1, 1]} : vector<12x256xf32> to vector<4x256xf32>
    %cst_10 = arith.constant dense<0.000000e+00> : vector<4x4096xf32>
    %10 = tpu.matmul %9, %2, %cst_10 {dimension_numbers = #tpu.dot_dimension_numbers<[1], [0], [0], [1], [0, 0, 1, 1], [], []>} : vector<4x256xf32>, vector<256x4096xf32>, vector<4x4096xf32> -> vector<4x4096xf32>
    %cst_11 = arith.constant dense<0.000000e+00> : vector<4x4096xf32>
    %11 = tpu.matmul %8, %2, %cst_11 {dimension_numbers = #tpu.dot_dimension_numbers<[1], [0], [0], [1], [0, 0, 1, 1], [], []>} : vector<4x256xf32>, vector<256x4096xf32>, vector<4x4096xf32> -> vector<4x4096xf32>
    %cst_12 = arith.constant 0.000000e+00 : f32
    %cst_13 = arith.constant 1.000000e+00 : f32
    %12 = vector.broadcast %cst_12 : f32 to vector<4x4096xf32>
    %13 = arith.maximumf %12, %10 : vector<4x4096xf32>
    %14 = vector.broadcast %cst_13 : f32 to vector<4x4096xf32>
    %15 = arith.minimumf %14, %13 : vector<4x4096xf32>
    %16 = math.tanh %11 : vector<4x4096xf32>
    %c0_14 = arith.constant 0 : index
    %c0_15 = arith.constant 0 : index
    %c0_16 = arith.constant 0 : index
    %17 = vector.load %arg5[%c0_14, %c0_15, %c0_16] : memref<1x4x4096xf32, #tpu.memory_space<vmem>>, vector<1x4x4096xf32>
    %18 = vector.shape_cast %17 : vector<1x4x4096xf32> to vector<4x4096xf32>
    %19 = vector.shape_cast %15 : vector<4x4096xf32> to vector<1x4x4096xf32>
    tpu.vector_store %arg5[%c0_14, %c0_15, %c0_16], %19 {strides = array<i32>} : memref<1x4x4096xf32, #tpu.memory_space<vmem>>, vector<1x4x4096xf32>,
    %20 = arith.addf %15, %16 : vector<4x4096xf32>
    %cst_17 = arith.constant 0.000000e+00 : f32
    %cst_18 = arith.constant 1.000000e+00 : f32
    %21 = vector.broadcast %cst_17 : f32 to vector<4x4096xf32>
    %22 = arith.maximumf %21, %20 : vector<4x4096xf32>
    %23 = vector.broadcast %cst_18 : f32 to vector<4x4096xf32>
    %24 = arith.minimumf %23, %22 : vector<4x4096xf32>
    %c0_19 = arith.constant 0 : index
    %c0_20 = arith.constant 0 : index
    %c0_21 = arith.constant 0 : index
    %25 = vector.load %arg6[%c0_19, %c0_20, %c0_21] : memref<1x4x4096xf32, #tpu.memory_space<vmem>>, vector<1x4x4096xf32>
    %26 = vector.shape_cast %25 : vector<1x4x4096xf32> to vector<4x4096xf32>
    %27 = vector.shape_cast %24 : vector<4x4096xf32> to vector<1x4x4096xf32>
    tpu.vector_store %arg6[%c0_19, %c0_20, %c0_21], %27 {strides = array<i32>} : memref<1x4x4096xf32, #tpu.memory_space<vmem>>, vector<1x4x4096xf32>,
    return
  }
  func.func @transform_0(%arg0: i32) -> (i32, i32) {
    %c0_i32 = arith.constant 0 : i32
    %c0_i32_0 = arith.constant 0 : i32
    %c0_i32_1 = arith.constant 0 : i32
    return %c0_i32, %c0_i32_0 : i32, i32
  }
  func.func @transform_1(%arg0: i32) -> (i32, i32) {
    %c0_i32 = arith.constant 0 : i32
    %c0_i32_0 = arith.constant 0 : i32
    %c0_i32_1 = arith.constant 0 : i32
    return %c0_i32, %c0_i32_0 : i32, i32
  }
  func.func @transform_2(%arg0: i32) -> (i32, i32) {
    %c0_i32 = arith.constant 0 : i32
    %c0_i32_0 = arith.constant 0 : i32
    %c0_i32_1 = arith.constant 0 : i32
    return %c0_i32, %c0_i32_0 : i32, i32
  }
  func.func @transform_3(%arg0: i32) -> (i32, i32, i32) {
    %c0_i32 = arith.constant 0 : i32
    %c0_i32_0 = arith.constant 0 : i32
    %c0_i32_1 = arith.constant 0 : i32
    return %arg0, %c0_i32, %c0_i32_0 : i32, i32, i32
  }
  func.func @transform_4(%arg0: i32) -> (i32, i32, i32) {
    %c0_i32 = arith.constant 0 : i32
    %c0_i32_0 = arith.constant 0 : i32
    %c0_i32_1 = arith.constant 0 : i32
    return %arg0, %c0_i32, %c0_i32_0 : i32, i32, i32
  }
  func.func @transform_5(%arg0: i32) -> (i32, i32, i32) {
    %c0_i32 = arith.constant 0 : i32
    %c0_i32_0 = arith.constant 0 : i32
    %c0_i32_1 = arith.constant 0 : i32
    return %arg0, %c0_i32, %c0_i32_0 : i32, i32, i32
  }
}

</mosaic_0001>

<llo_original>
// kernel: srnet_forward.1
$region0: #{srnet_forward.1}
  #allocation0 [shape = 'u32[]', space=smem, size = 0x4, offset = 0x4, fixed_abs, tag = 'smem constant byte address 0x4 - core index']
  #allocation1 [shape = 'u32[144,128]{1,0:T(1,128)}', space=vmem, size = 0x12000, scoped, tag = 'internal scratch']
  %s0 = inlined_call_operand.hbm [shape: f32[8,12], index: 0, kind: input, shape index: {}]
  %s1 = inlined_call_operand.hbm [shape: f32[4,8], index: 1, kind: input, shape index: {}]
  %s2 = inlined_call_operand.hbm [shape: f32[256,4096], index: 2, kind: input, shape index: {}]
  %s3 = inlined_call_operand.vmem [shape: f32[2,12,256], index: 3, kind: input, shape index: {}]
  %s4 = inlined_call_operand.vmem [shape: f32[2,4,4096], index: 4, kind: output, shape index: {0}]
  %s5 = inlined_call_operand.vmem [shape: f32[2,4,4096], index: 5, kind: output, shape index: {1}]
  %6 = xla_tuple %s4, %s5
  %s7 = sld [smem:[#allocation0]]
  $region69: #{srnet_forward.1} parent=0
    _
  %s9 = ssub.s32 1, %s7
  %s10 = scalar_select 0, %s9, %s7
  $region1: #{srnet_forward.1} parent=0
    #allocation2 [shape = 'u8[4096]{0}', space=vmem, size = 0x1000, scoped, tag = 'input window, operand 0, single buffered']
    #allocation3 [shape = 's32[2]{0}', space=sflag, size = 0x8, scoped, tag = 'scoped memory for srnet_forward.1']
    #allocation4 [shape = 'u8[2048]{0}', space=vmem, size = 0x800, scoped, tag = 'input window, operand 1, single buffered']
    #allocation5 [shape = 's32[1]{0}', space=sflag, size = 0x4, scoped, tag = 'scoped memory for srnet_forward.1']
    #allocation6 [shape = 'u8[4194304]{0}', space=vmem, size = 0x400000, scoped, tag = 'input window, operand 2, single buffered']
    %11 = vsyncpa [#allocation3], 0
    %12 = vsyncpa [#allocation5], 0
    loop: start=0, step=1, limit=4
    $region2: #{srnet_forward.1} parent=1 // loop_pre_header
      _
    $region3: #{srnet_forward.1} parent=1 // loop_header
      %s14 = sphi 0, %s18
      %p15 = scmp.ge.s32.totalorder %s14, 4
      %s22 = sphi 0, %s22
      %s24 = sphi 0, %s22
      %s25 = sphi 0, %s24
      %s39 = sphi 0, %s25
      %s43 = sphi 0, %s43
      %s45 = sphi 0, %s43
      %s46 = sphi 0, %s45
      %s60 = sphi 0, %s46
      %s64 = sphi 0, %s64
      %s66 = sphi 0, %s64
      %s67 = sphi 0, %s66
      %s81 = sphi 0, %s67
      %s87 = sphi 0, %s89
      %s90 = sphi 0, %s87
      %s91 = sphi 0, %s90
      %s107 = sphi 0, %s91
      %s113 = sphi 0, %s115
      %s116 = sphi 0, %s113
      %s117 = sphi 0, %s116
      %s133 = sphi 0, %s117
      %s139 = sphi 0, %s141
      %s142 = sphi 0, %s139
      %s143 = sphi 0, %s142
      %s159 = sphi 0, %s143
    $region4: #{srnet_forward.1} parent=1 // loop_header_branch
      %17 = sbr.rel (%p15) target = $region8
    $region5: #{srnet_forward.1} parent=1 // loop_body
      %s19 = ssub.s32 %s14, 1
      %s20 = ssub.s32 %s14, 2
      %s21 = sadd.s32 %s14, 1
      %s23 = sadd.s32 %s22, 1
      %p26 = scmp.eq.s32.totalorder %s14, 1
      %p27 = scmp.ne.s32.totalorder %s22, %s24
      %p28 = scmp.eq.s32.totalorder %s14, 0
      %p29 = por %p27, %p28
      %p30 = scmp.ne.s32.totalorder %s22, %s24
      %p31 = scmp.eq.s32.totalorder %s19, 1
      %p32 = por %p30, %p31
      %p33 = scmp.ne.s32.totalorder %s24, %s25
      %p34 = scmp.eq.s32.totalorder %s19, 0
      %p35 = por %p33, %p34
      %p36 = scmp.ne.s32.totalorder %s24, %s25
      %p37 = scmp.eq.s32.totalorder %s20, 1
      %p38 = por %p36, %p37
      %p40 = scmp.ne.s32.totalorder %s25, %s39
      %p41 = scmp.eq.s32.totalorder %s20, 0
      %p42 = por %p40, %p41
      %s44 = sadd.s32 %s43, 1
      %p47 = scmp.eq.s32.totalorder %s14, 1
      %p48 = scmp.ne.s32.totalorder %s43, %s45
      %p49 = scmp.eq.s32.totalorder %s14, 0
      %p50 = por %p48, %p49
      %p51 = scmp.ne.s32.totalorder %s43, %s45
      %p52 = scmp.eq.s32.totalorder %s19, 1
      %p53 = por %p51, %p52
      %p54 = scmp.ne.s32.totalorder %s45, %s46
      %p55 = scmp.eq.s32.totalorder %s19, 0
      %p56 = por %p54, %p55
      %p57 = scmp.ne.s32.totalorder %s45, %s46
      %p58 = scmp.eq.s32.totalorder %s20, 1
      %p59 = por %p57, %p58
      %p61 = scmp.ne.s32.totalorder %s46, %s60
      %p62 = scmp.eq.s32.totalorder %s20, 0
      %p63 = por %p61, %p62
      %s65 = sadd.s32 %s64, 1
      %p68 = scmp.eq.s32.totalorder %s14, 1
      %p69 = scmp.ne.s32.totalorder %s64, %s66
      %p70 = scmp.eq.s32.totalorder %s14, 0
      %p71 = por %p69, %p70
      %p72 = scmp.ne.s32.totalorder %s64, %s66
      %p73 = scmp.eq.s32.totalorder %s19, 1
      %p74 = por %p72, %p73
      %p75 = scmp.ne.s32.totalorder %s66, %s67
      %p76 = scmp.eq.s32.totalorder %s19, 0
      %p77 = por %p75, %p76
      %p78 = scmp.ne.s32.totalorder %s66, %s67
      %p79 = scmp.eq.s32.totalorder %s20, 1
      %p80 = por %p78, %p79
      %p82 = scmp.ne.s32.totalorder %s67, %s81
      %p83 = scmp.eq.s32.totalorder %s20, 0
      %p84 = por %p82, %p83
      %s85 = ssub.s32 %s14, %s21
      %p86 = scmp.eq.s32.totalorder %s85, 0
      %s88 = sadd.s32 %s87, 1
      %s89 = scalar_select %p86, %s87, %s88
      %p92 = pneg %p86
      %p93 = scmp.eq.s32.totalorder %s14, 1
      %p94 = por %p92, %p93
      %p95 = scmp.ne.s32.totalorder %s87, %s90
      %p96 = scmp.eq.s32.totalorder %s14, 0
      %p97 = por %p95, %p96
      %p98 = scmp.ne.s32.totalorder %s87, %s90
      %p99 = scmp.eq.s32.totalorder %s19, 1
      %p100 = por %p98, %p99
      %p101 = scmp.ne.s32.totalorder %s90, %s91
      %p102 = scmp.eq.s32.totalorder %s19, 0
      %p103 = por %p101, %p102
      %p104 = scmp.ne.s32.totalorder %s90, %s91
      %p105 = scmp.eq.s32.totalorder %s20, 1
      %p106 = por %p104, %p105
      %p108 = scmp.ne.s32.totalorder %s91, %s107
      %p109 = scmp.eq.s32.totalorder %s20, 0
      %p110 = por %p108, %p109
      %s111 = ssub.s32 %s14, %s21
      %p112 = scmp.eq.s32.totalorder %s111, 0
      %s114 = sadd.s32 %s113, 1
      %s115 = scalar_select %p112, %s113, %s114
      %p118 = pneg %p112
      %p119 = scmp.eq.s32.totalorder %s14, 1
      %p120 = por %p118, %p119
      %p121 = scmp.ne.s32.totalorder %s113, %s116
      %p122 = scmp.eq.s32.totalorder %s14, 0
      %p123 = por %p121, %p122
      %p124 = scmp.ne.s32.totalorder %s113, %s116
      %p125 = scmp.eq.s32.totalorder %s19, 1
      %p126 = por %p124, %p125
      %p127 = scmp.ne.s32.totalorder %s116, %s117
      %p128 = scmp.eq.s32.totalorder %s19, 0
      %p129 = por %p127, %p128
      %p130 = scmp.ne.s32.totalorder %s116, %s117
      %p131 = scmp.eq.s32.totalorder %s20, 1
      %p132 = por %p130, %p131
      %p134 = scmp.ne.s32.totalorder %s117, %s133
      %p135 = scmp.eq.s32.totalorder %s20, 0
      %p136 = por %p134, %p135
      %s137 = ssub.s32 %s14, %s21
      %p138 = scmp.eq.s32.totalorder %s137, 0
      %s140 = sadd.s32 %s139, 1
      %s141 = scalar_select %p138, %s139, %s140
      %p144 = pneg %p138
      %p145 = scmp.eq.s32.totalorder %s14, 1
      %p146 = por %p144, %p145
      %p147 = scmp.ne.s32.totalorder %s139, %s142
      %p148 = scmp.eq.s32.totalorder %s14, 0
      %p149 = por %p147, %p148
      %p150 = scmp.ne.s32.totalorder %s139, %s142
      %p151 = scmp.eq.s32.totalorder %s19, 1
      %p152 = por %p150, %p151
      %p153 = scmp.ne.s32.totalorder %s142, %s143
      %p154 = scmp.eq.s32.totalorder %s19, 0
      %p155 = por %p153, %p154
      %p156 = scmp.ne.s32.totalorder %s142, %s143
      %p157 = scmp.eq.s32.totalorder %s20, 1
      %p158 = por %p156, %p157
      %p160 = scmp.ne.s32.totalorder %s143, %s159
      %p161 = scmp.eq.s32.totalorder %s20, 0
      %p162 = por %p160, %p161
      %p163 = scmp.le.s32.totalorder 1, %s14
      %p164 = scmp.lt.s32.totalorder %s14, 3
      %p165 = pnand %p163, %p164
      %p166 = pneg %p165
      // Predicated region
      $region9: #{srnet_forward.1} parent=5 // pred_check
        _
      $region10: #{srnet_forward.1} parent=5 // pred_check_branch
        %168 = sbr.rel (%p165) target = $region12
      $region11: #{srnet_forward.1} parent=5 // pred_region
        %s169 = ssub.s32 %s14, 1
        // Predicated region
        $region13: #{srnet_forward.1} parent=11 // pred_check
          %p170 = pneg %p35
        $region14: #{srnet_forward.1} parent=11 // pred_check_branch
          %172 = sbr.rel (%p170) target = $region16
        $region15: #{srnet_forward.1} parent=11 // pred_region
          %s174 = ssub.s32 128, 128
          %175 = vsyncadd [#allocation3], %s174
          %s177 = sshll.u32 [#allocation2], 4
          %s178 = int_to_ptr.vmem [resolvable:$true] %s177
          %180 = dma.hbm_to_vmem [thread:$0]  %s0, 128, %s178, [#allocation3]
        $region16: #{srnet_forward.1} parent=11 // pred_fallthru
          _
        // Predicated region
        $region17: #{srnet_forward.1} parent=11 // pred_check
          %p181 = pneg %p56
        $region18: #{srnet_forward.1} parent=11 // pred_check_branch
          %183 = sbr.rel (%p181) target = $region20
        $region19: #{srnet_forward.1} parent=11 // pred_region
          %s185 = ssub.s32 64, 64
          %186 = vsyncadd [#allocation5], %s185
          %s188 = sshll.u32 [#allocation4], 4
          %s189 = int_to_ptr.vmem [resolvable:$true] %s188
          %191 = dma.hbm_to_vmem [thread:$0]  %s1, 64, %s189, [#allocation5]
        $region20: #{srnet_forward.1} parent=11 // pred_fallthru
          _
        // Predicated region
        $region21: #{srnet_forward.1} parent=11 // pred_check
          %p192 = pneg %p77
        $region22: #{srnet_forward.1} parent=11 // pred_check_branch
          %194 = sbr.rel (%p192) target = $region24
        $region23: #{srnet_forward.1} parent=11 // pred_region
          %s196 = ssub.s32 131072, 131072
          %197 = vsyncadd [#allocation5], %s196
          %s198 = sshll.u32 [#allocation6], 4
          %s199 = int_to_ptr.vmem [resolvable:$true] %s198
          %204 = dma.hbm_to_vmem [thread:$0]  %s2, 131072, %s199, [#allocation5], 4096, 4096, 256
        $region24: #{srnet_forward.1} parent=11 // pred_fallthru
          _
      $region12: #{srnet_forward.1} parent=5 // pred_fallthru
        _
      %p205 = scmp.lt.s32.totalorder %s14, 2
      // Predicated region
      $region25: #{srnet_forward.1} parent=5 // pred_check
        %p206 = pneg %p205
      $region26: #{srnet_forward.1} parent=5 // pred_check_branch
        %208 = sbr.rel (%p206) target = $region28
      $region27: #{srnet_forward.1} parent=5 // pred_region
        // Predicated region
        $region29: #{srnet_forward.1} parent=27 // pred_check
          %p209 = pneg %p97
        $region30: #{srnet_forward.1} parent=27 // pred_check_branch
          %211 = sbr.rel (%p209) target = $region32
        $region31: #{srnet_forward.1} parent=27 // pred_region
          %p212 = scmp.lt.s32.totalorder %s14, 1
          %s213 = scalar_select %p212, %s14, 1
          %s214 = smul.addr %s213, 4
          %s215 = smul.addr %s214, 8
          %s216 = scalar_lea.vmem %s3, %s215
        $region32: #{srnet_forward.1} parent=27 // pred_fallthru
          _
      $region28: #{srnet_forward.1} parent=5 // pred_fallthru
        _
      %p217 = scmp.le.s32.totalorder 1, %s14
      %p218 = scmp.lt.s32.totalorder %s14, 3
      %p219 = pnand %p217, %p218
      %p220 = pneg %p219
      // Predicated region
      $region33: #{srnet_forward.1} parent=5 // pred_check
        _
      $region34: #{srnet_forward.1} parent=5 // pred_check_branch
        %222 = sbr.rel (%p219) target = $region36
      $region35: #{srnet_forward.1} parent=5 // pred_region
        %s223 = ssub.s32 %s14, 1
        // Predicated region
        $region37: #{srnet_forward.1} parent=35 // pred_check
          %p224 = pneg %p35
        $region38: #{srnet_forward.1} parent=35 // pred_check_branch
          %226 = sbr.rel (%p224) target = $region40
        $region39: #{srnet_forward.1} parent=35 // pred_region
          %227 = dma.done [#allocation3], 128
        $region40: #{srnet_forward.1} parent=35 // pred_fallthru
          _
        // Predicated region
        $region41: #{srnet_forward.1} parent=35 // pred_check
          %p228 = pneg %p56
        $region42: #{srnet_forward.1} parent=35 // pred_check_branch
          %230 = sbr.rel (%p228) target = $region44
        $region43: #{srnet_forward.1} parent=35 // pred_region
          %231 = dma.done [#allocation5], 64
        $region44: #{srnet_forward.1} parent=35 // pred_fallthru
          _
        // Predicated region
        $region45: #{srnet_forward.1} parent=35 // pred_check
          %p232 = pneg %p77
        $region46: #{srnet_forward.1} parent=35 // pred_check_branch
          %234 = sbr.rel (%p232) target = $region48
        $region47: #{srnet_forward.1} parent=35 // pred_region
          %235 = dma.done [#allocation5], 131072
        $region48: #{srnet_forward.1} parent=35 // pred_fallthru
          _
        %p236 = pneg %p35
        %p237 = pneg %p32
        %p238 = pneg %p56
        %p239 = pneg %p53
        %p240 = pneg %p77
        %p241 = pneg %p74
        %p242 = scmp.lt.s32.totalorder %s19, 1
        %s243 = scalar_select %p242, %s19, 1
        %s244 = smul.addr %s243, 4
        %s245 = smul.addr %s244, 8
        %s246 = scalar_lea.vmem %s3, %s245
        %p247 = pneg %p103
        %p248 = pneg %p100
        %p249 = pneg %p129
        %p250 = pneg %p126
        %p251 = scmp.lt.s32.totalorder %s19, 1
        %s252 = scalar_select %p251, %s19, 1
        %s253 = smul.addr %s252, 32
        %s254 = smul.addr %s253, 4
        %s255 = scalar_lea.vmem %s4, %s254
        %p256 = pneg %p155
        %p257 = pneg %p152
        %p258 = scmp.lt.s32.totalorder %s19, 1
        %s259 = scalar_select %p258, %s19, 1
        %s260 = smul.addr %s259, 32
        %s261 = smul.addr %s260, 4
        %s262 = scalar_lea.vmem %s5, %s261
        %p263 = scmp.lt.s32.totalorder %s19, 1
        %s264 = scalar_select %p263, %s19, 1
        %s265 = smul.addr %s264, 4
        %s266 = smul.addr %s265, 8
        %s267 = scalar_lea.vmem %s3, %s266
        %p268 = scmp.lt.s32.totalorder %s19, 1
        %s269 = scalar_select %p268, %s19, 1
        %s270 = smul.addr %s269, 32
        %s271 = smul.addr %s270, 4
        %s272 = scalar_lea.vmem %s4, %s271
        %p273 = scmp.lt.s32.totalorder %s19, 1
        %s274 = scalar_select %p273, %s19, 1
        %s275 = smul.addr %s274, 32
        %s276 = smul.addr %s275, 4
        %s277 = scalar_lea.vmem %s5, %s276
        %v278 = vld [vmem:[%s267] sm:$0xff]
        %v279 = vld [vmem:[%s267 + $0x8] sm:$0xff]
        %v280 = vld [vmem:[%s267 + $0x10] sm:$0xf]
        %v281 = vld [vmem:[%s267 + $0x18] sm:$0xf]
        %v282 = vld [vmem:[#allocation6] sm:$0xff]
        %v283 = vld [vmem:[#allocation6 + $0x8] sm:$0xff]
        %v284 = vld [vmem:[#allocation6 + $0x10] sm:$0xff]
        %v285 = vld [vmem:[#allocation6 + $0x18] sm:$0xff]
        %v286 = vld [vmem:[#allocation6 + $0x20] sm:$0xff]
        %v287 = vld [vmem:[#allocation6 + $0x28] sm:$0xff]
        %v288 = vld [vmem:[#allocation6 + $0x30] sm:$0xff]
        %v289 = vld [vmem:[#allocation6 + $0x38] sm:$0xff]
        %v290 = vld [vmem:[#allocation6 + $0x40] sm:$0xff]
        %v291 = vld [vmem:[#allocation6 + $0x48] sm:$0xff]
        %v292 = vld [vmem:[#allocation6 + $0x50] sm:$0xff]
        %v293 = vld [vmem:[#allocation6 + $0x58] sm:$0xff]
        %v294 = vld [vmem:[#allocation6 + $0x60] sm:$0xff]
        %v295 = vld [vmem:[#allocation6 + $0x68] sm:$0xff]
        %v296 = vld [vmem:[#allocation6 + $0x70] sm:$0xff]
        %v297 = vld [vmem:[#allocation6 + $0x78] sm:$0xff]
        %v298 = vld [vmem:[#allocation6 + $0x80] sm:$0xff]
        %v299 = vld [vmem:[#allocation6 + $0x88] sm:$0xff]
        %v300 = vld [vmem:[#allocation6 + $0x90] sm:$0xff]
        %v301 = vld [vmem:[#allocation6 + $0x98] sm:$0xff]
        %v302 = vld [vmem:[#allocation6 + $0xa0] sm:$0xff]
        %v303 = vld [vmem:[#allocation6 + $0xa8] sm:$0xff]
        %v304 = vld [vmem:[#allocation6 + $0xb0] sm:$0xff]
        %v305 = vld [vmem:[#allocation6 + $0xb8] sm:$0xff]
        %v306 = vld [vmem:[#allocation6 + $0xc0] sm:$0xff]
        %v307 = vld [vmem:[#allocation6 + $0xc8] sm:$0xff]
        %v308 = vld [vmem:[#allocation6 + $0xd0] sm:$0xff]
        %v309 = vld [vmem:[#allocation6 + $0xd8] sm:$0xff]
        %v310 = vld [vmem:[#allocation6 + $0xe0] sm:$0xff]
        %v311 = vld [vmem:[#allocation6 + $0xe8] sm:$0xff]
        %v312 = vld [vmem:[#allocation6 + $0xf0] sm:$0xff]
        %v313 = vld [vmem:[#allocation6 + $0xf8] sm:$0xff]
        %v314 = vld [vmem:[#allocation6 + $0x100] sm:$0xff]
        %v315 = vld [vmem:[#allocation6 + $0x108] sm:$0xff]
        %v316 = vld [vmem:[#allocation6 + $0x110] sm:$0xff]
        %v317 = vld [vmem:[#allocation6 + $0x118] sm:$0xff]
        %v318 = vld [vmem:[#allocation6 + $0x120] sm:$0xff]
        %v319 = vld [vmem:[#allocation6 + $0x128] sm:$0xff]
        %v320 = vld [vmem:[#allocation6 + $0x130] sm:$0xff]
        %v321 = vld [vmem:[#allocation6 + $0x138] sm:$0xff]
        %v322 = vld [vmem:[#allocation6 + $0x140] sm:$0xff]
        %v323 = vld [vmem:[#allocation6 + $0x148] sm:$0xff]
        %v324 = vld [vmem:[#allocation6 + $0x150] sm:$0xff]
        %v325 = vld [vmem:[#allocation6 + $0x158] sm:$0xff]
        %v326 = vld [vmem:[#allocation6 + $0x160] sm:$0xff]
        %v327 = vld [vmem:[#allocation6 + $0x168] sm:$0xff]
        %v328 = vld [vmem:[#allocation6 + $0x170] sm:$0xff]
        %v329 = vld [vmem:[#allocation6 + $0x178] sm:$0xff]
        %v330 = vld [vmem:[#allocation6 + $0x180] sm:$0xff]
        %v331 = vld [vmem:[#allocation6 + $0x188] sm:$0xff]
        %v332 = vld [vmem:[#allocation6 + $0x190] sm:$0xff]
        %v333 = vld [vmem:[#allocation6 + $0x198] sm:$0xff]
        %v334 = vld [vmem:[#allocation6 + $0x1a0] sm:$0xff]
        %v335 = vld [vmem:[#allocation6 + $0x1a8] sm:$0xff]
        %v336 = vld [vmem:[#allocation6 + $0x1b0] sm:$0xff]
        %v337 = vld [vmem:[#allocation6 + $0x1b8] sm:$0xff]
        %v338 = vld [vmem:[#allocation6 + $0x1c0] sm:$0xff]
        %v339 = vld [vmem:[#allocation6 + $0x1c8] sm:$0xff]
        %v340 = vld [vmem:[#allocation6 + $0x1d0] sm:$0xff]
        %v341 = vld [vmem:[#allocation6 + $0x1d8] sm:$0xff]
        %v342 = vld [vmem:[#allocation6 + $0x1e0] sm:$0xff]
        %v343 = vld [vmem:[#allocation6 + $0x1e8] sm:$0xff]
        %v344 = vld [vmem:[#allocation6 + $0x1f0] sm:$0xff]
        %v345 = vld [vmem:[#allocation6 + $0x1f8] sm:$0xff]
        %v346 = vld [vmem:[#allocation6 + $0x200] sm:$0xff]
        %v347 = vld [vmem:[#allocation6 + $0x208] sm:$0xff]
        %v348 = vld [vmem:[#allocation6 + $0x210] sm:$0xff]
        %v349 = vld [vmem:[#allocation6 + $0x218] sm:$0xff]
        %v350 = vld [vmem:[#allocation6 + $0x220] sm:$0xff]
        %v351 = vld [vmem:[#allocation6 + $0x228] sm:$0xff]
        %v352 = vld [vmem:[#allocation6 + $0x230] sm:$0xff]
        %v353 = vld [vmem:[#allocation6 + $0x238] sm:$0xff]
        %v354 = vld [vmem:[#allocation6 + $0x240] sm:$0xff]
        %v355 = vld [vmem:[#allocation6 + $0x248] sm:$0xff]
        %v356 = vld [vmem:[#allocation6 + $0x250] sm:$0xff]
        %v357 = vld [vmem:[#allocation6 + $0x258] sm:$0xff]
        %v358 = vld [vmem:[#allocation6 + $0x260] sm:$0xff]
        %v359 = vld [vmem:[#allocation6 + $0x268] sm:$0xff]
        %v360 = vld [vmem:[#allocation6 + $0x270] sm:$0xff]
        %v361 = vld [vmem:[#allocation6 + $0x278] sm:$0xff]
        %v362 = vld [vmem:[#allocation6 + $0x280] sm:$0xff]
        %v363 = vld [vmem:[#allocation6 + $0x288] sm:$0xff]
        %v364 = vld [vmem:[#allocation6 + $0x290] sm:$0xff]
        %v365 = vld [vmem:[#allocation6 + $0x298] sm:$0xff]
        %v366 = vld [vmem:[#allocation6 + $0x2a0] sm:$0xff]
        %v367 = vld [vmem:[#allocation6 + $0x2a8] sm:$0xff]
        %v368 = vld [vmem:[#allocation6 + $0x2b0] sm:$0xff]
        %v369 = vld [vmem:[#allocation6 + $0x2b8] sm:$0xff]
        %v370 = vld [vmem:[#allocation6 + $0x2c0] sm:$0xff]
        %v371 = vld [vmem:[#allocation6 + $0x2c8] sm:$0xff]
        %v372 = vld [vmem:[#allocation6 + $0x2d0] sm:$0xff]
        %v373 = vld [vmem:[#allocation6 + $0x2d8] sm:$0xff]
        %v374 = vld [vmem:[#allocation6 + $0x2e0] sm:$0xff]
        %v375 = vld [vmem:[#allocation6 + $0x2e8] sm:$0xff]
        %v376 = vld [vmem:[#allocation6 + $0x2f0] sm:$0xff]
        %v377 = vld [vmem:[#allocation6 + $0x2f8] sm:$0xff]
        %v378 = vld [vmem:[#allocation6 + $0x300] sm:$0xff]
        %v379 = vld [vmem:[#allocation6 + $0x308] sm:$0xff]
        %v380 = vld [vmem:[#allocation6 + $0x310] sm:$0xff]
        %v381 = vld [vmem:[#allocation6 + $0x318] sm:$0xff]
        %v382 = vld [vmem:[#allocation6 + $0x320] sm:$0xff]
        %v383 = vld [vmem:[#allocation6 + $0x328] sm:$0xff]
        %v384 = vld [vmem:[#allocation6 + $0x330] sm:$0xff]
        %v385 = vld [vmem:[#allocation6 + $0x338] sm:$0xff]
        %v386 = vld [vmem:[#allocation6 + $0x340] sm:$0xff]
        %v387 = vld [vmem:[#allocation6 + $0x348] sm:$0xff]
        %v388 = vld [vmem:[#allocation6 + $0x350] sm:$0xff]
        %v389 = vld [vmem:[#allocation6 + $0x358] sm:$0xff]
        %v390 = vld [vmem:[#allocation6 + $0x360] sm:$0xff]
        %v391 = vld [vmem:[#allocation6 + $0x368] sm:$0xff]
        %v392 = vld [vmem:[#allocation6 + $0x370] sm:$0xff]
        %v393 = vld [vmem:[#allocation6 + $0x378] sm:$0xff]
        %v394 = vld [vmem:[#allocation6 + $0x380] sm:$0xff]
        %v395 = vld [vmem:[#allocation6 + $0x388] sm:$0xff]
        %v396 = vld [vmem:[#allocation6 + $0x390] sm:$0xff]
        %v397 = vld [vmem:[#allocation6 + $0x398] sm:$0xff]
        %v398 = vld [vmem:[#allocation6 + $0x3a0] sm:$0xff]
        %v399 = vld [vmem:[#allocation6 + $0x3a8] sm:$0xff]
        %v400 = vld [vmem:[#allocation6 + $0x3b0] sm:$0xff]
        %v401 = vld [vmem:[#allocation6 + $0x3b8] sm:$0xff]
        %v402 = vld [vmem:[#allocation6 + $0x3c0] sm:$0xff]
        %v403 = vld [vmem:[#allocation6 + $0x3c8] sm:$0xff]
        %v404 = vld [vmem:[#allocation6 + $0x3d0] sm:$0xff]
        %v405 = vld [vmem:[#allocation6 + $0x3d8] sm:$0xff]
        %v406 = vld [vmem:[#allocation6 + $0x3e0] sm:$0xff]
        %v407 = vld [vmem:[#allocation6 + $0x3e8] sm:$0xff]
        %v408 = vld [vmem:[#allocation6 + $0x3f0] sm:$0xff]
        %v409 = vld [vmem:[#allocation6 + $0x3f8] sm:$0xff]
        %v410 = vld [vmem:[#allocation6 + $0x400] sm:$0xff]
        %v411 = vld [vmem:[#allocation6 + $0x408] sm:$0xff]
        %v412 = vld [vmem:[#allocation6 + $0x410] sm:$0xff]
        %v413 = vld [vmem:[#allocation6 + $0x418] sm:$0xff]
        %v414 = vld [vmem:[#allocation6 + $0x420] sm:$0xff]
        %v415 = vld [vmem:[#allocation6 + $0x428] sm:$0xff]
        %v416 = vld [vmem:[#allocation6 + $0x430] sm:$0xff]
        %v417 = vld [vmem:[#allocation6 + $0x438] sm:$0xff]
        %v418 = vld [vmem:[#allocation6 + $0x440] sm:$0xff]
        %v419 = vld [vmem:[#allocation6 + $0x448] sm:$0xff]
        %v420 = vld [vmem:[#allocation6 + $0x450] sm:$0xff]
        %v421 = vld [vmem:[#allocation6 + $0x458] sm:$0xff]
        %v422 = vld [vmem:[#allocation6 + $0x460] sm:$0xff]
        %v423 = vld [vmem:[#allocation6 + $0x468] sm:$0xff]
        %v424 = vld [vmem:[#allocation6 + $0x470] sm:$0xff]
        %v425 = vld [vmem:[#allocation6 + $0x478] sm:$0xff]
        %v426 = vld [vmem:[#allocation6 + $0x480] sm:$0xff]
        %v427 = vld [vmem:[#allocation6 + $0x488] sm:$0xff]
        %v428 = vld [vmem:[#allocation6 + $0x490] sm:$0xff]
        %v429 = vld [vmem:[#allocation6 + $0x498] sm:$0xff]
        %v430 = vld [vmem:[#allocation6 + $0x4a0] sm:$0xff]
        %v431 = vld [vmem:[#allocation6 + $0x4a8] sm:$0xff]
        %v432 = vld [vmem:[#allocation6 + $0x4b0] sm:$0xff]
        %v433 = vld [vmem:[#allocation6 + $0x4b8] sm:$0xff]
        %v434 = vld [vmem:[#allocation6 + $0x4c0] sm:$0xff]
        %v435 = vld [vmem:[#allocation6 + $0x4c8] sm:$0xff]
        %v436 = vld [vmem:[#allocation6 + $0x4d0] sm:$0xff]
        %v437 = vld [vmem:[#allocation6 + $0x4d8] sm:$0xff]
        %v438 = vld [vmem:[#allocation6 + $0x4e0] sm:$0xff]
        %v439 = vld [vmem:[#allocation6 + $0x4e8] sm:$0xff]
        %v440 = vld [vmem:[#allocation6 + $0x4f0] sm:$0xff]
        %v441 = vld [vmem:[#allocation6 + $0x4f8] sm:$0xff]
        %v442 = vld [vmem:[#allocation6 + $0x500] sm:$0xff]
        %v443 = vld [vmem:[#allocation6 + $0x508] sm:$0xff]
        %v444 = vld [vmem:[#allocation6 + $0x510] sm:$0xff]
        %v445 = vld [vmem:[#allocation6 + $0x518] sm:$0xff]
        %v446 = vld [vmem:[#allocation6 + $0x520] sm:$0xff]
        %v447 = vld [vmem:[#allocation6 + $0x528] sm:$0xff]
        %v448 = vld [vmem:[#allocation6 + $0x530] sm:$0xff]
        %v449 = vld [vmem:[#allocation6 + $0x538] sm:$0xff]
        %v450 = vld [vmem:[#allocation6 + $0x540] sm:$0xff]
        %v451 = vld [vmem:[#allocation6 + $0x548] sm:$0xff]
        %v452 = vld [vmem:[#allocation6 + $0x550] sm:$0xff]
        %v453 = vld [vmem:[#allocation6 + $0x558] sm:$0xff]
        %v454 = vld [vmem:[#allocation6 + $0x560] sm:$0xff]
        %v455 = vld [vmem:[#allocation6 + $0x568] sm:$0xff]
        %v456 = vld [vmem:[#allocation6 + $0x570] sm:$0xff]
        %v457 = vld [vmem:[#allocation6 + $0x578] sm:$0xff]
        %v458 = vld [vmem:[#allocation6 + $0x580] sm:$0xff]
        %v459 = vld [vmem:[#allocation6 + $0x588] sm:$0xff]
        %v460 = vld [vmem:[#allocation6 + $0x590] sm:$0xff]
        %v461 = vld [vmem:[#allocation6 + $0x598] sm:$0xff]
        %v462 = vld [vmem:[#allocation6 + $0x5a0] sm:$0xff]
        %v463 = vld [vmem:[#allocation6 + $0x5a8] sm:$0xff]
        %v464 = vld [vmem:[#allocation6 + $0x5b0] sm:$0xff]
        %v465 = vld [vmem:[#allocation6 + $0x5b8] sm:$0xff]
        %v466 = vld [vmem:[#allocation6 + $0x5c0] sm:$0xff]
        %v467 = vld [vmem:[#allocation6 + $0x5c8] sm:$0xff]
        %v468 = vld [vmem:[#allocation6 + $0x5d0] sm:$0xff]
        %v469 = vld [vmem:[#allocation6 + $0x5d8] sm:$0xff]
        %v470 = vld [vmem:[#allocation6 + $0x5e0] sm:$0xff]
        %v471 = vld [vmem:[#allocation6 + $0x5e8] sm:$0xff]
        %v472 = vld [vmem:[#allocation6 + $0x5f0] sm:$0xff]
        %v473 = vld [vmem:[#allocation6 + $0x5f8] sm:$0xff]
        %v474 = vld [vmem:[#allocation6 + $0x600] sm:$0xff]
        %v475 = vld [vmem:[#allocation6 + $0x608] sm:$0xff]
        %v476 = vld [vmem:[#allocation6 + $0x610] sm:$0xff]
        %v477 = vld [vmem:[#allocation6 + $0x618] sm:$0xff]
        %v478 = vld [vmem:[#allocation6 + $0x620] sm:$0xff]
        %v479 = vld [vmem:[#allocation6 + $0x628] sm:$0xff]
        %v480 = vld [vmem:[#allocation6 + $0x630] sm:$0xff]
        %v481 = vld [vmem:[#allocation6 + $0x638] sm:$0xff]
        %v482 = vld [vmem:[#allocation6 + $0x640] sm:$0xff]
        %v483 = vld [vmem:[#allocation6 + $0x648] sm:$0xff]
        %v484 = vld [vmem:[#allocation6 + $0x650] sm:$0xff]
        %v485 = vld [vmem:[#allocation6 + $0x658] sm:$0xff]
        %v486 = vld [vmem:[#allocation6 + $0x660] sm:$0xff]
        %v487 = vld [vmem:[#allocation6 + $0x668] sm:$0xff]
        %v488 = vld [vmem:[#allocation6 + $0x670] sm:$0xff]
        %v489 = vld [vmem:[#allocation6 + $0x678] sm:$0xff]
        %v490 = vld [vmem:[#allocation6 + $0x680] sm:$0xff]
        %v491 = vld [vmem:[#allocation6 + $0x688] sm:$0xff]
        %v492 = vld [vmem:[#allocation6 + $0x690] sm:$0xff]
        %v493 = vld [vmem:[#allocation6 + $0x698] sm:$0xff]
        %v494 = vld [vmem:[#allocation6 + $0x6a0] sm:$0xff]
        %v495 = vld [vmem:[#allocation6 + $0x6a8] sm:$0xff]
        %v496 = vld [vmem:[#allocation6 + $0x6b0] sm:$0xff]
        %v497 = vld [vmem:[#allocation6 + $0x6b8] sm:$0xff]
        %v498 = vld [vmem:[#allocation6 + $0x6c0] sm:$0xff]
        %v499 = vld [vmem:[#allocation6 + $0x6c8] sm:$0xff]
        %v500 = vld [vmem:[#allocation6 + $0x6d0] sm:$0xff]
        %v501 = vld [vmem:[#allocation6 + $0x6d8] sm:$0xff]
        %v502 = vld [vmem:[#allocation6 + $0x6e0] sm:$0xff]
        %v503 = vld [vmem:[#allocation6 + $0x6e8] sm:$0xff]
        %v504 = vld [vmem:[#allocation6 + $0x6f0] sm:$0xff]
        %v505 = vld [vmem:[#allocation6 + $0x6f8] sm:$0xff]
        %v506 = vld [vmem:[#allocation6 + $0x700] sm:$0xff]
        %v507 = vld [vmem:[#allocation6 + $0x708] sm:$0xff]
        %v508 = vld [vmem:[#allocation6 + $0x710] sm:$0xff]
        %v509 = vld [vmem:[#allocation6 + $0x718] sm:$0xff]
        %v510 = vld [vmem:[#allocation6 + $0x720] sm:$0xff]
        %v511 = vld [vmem:[#allocation6 + $0x728] sm:$0xff]
        %v512 = vld [vmem:[#allocation6 + $0x730] sm:$0xff]
        %v513 = vld [vmem:[#allocation6 + $0x738] sm:$0xff]
        %v514 = vld [vmem:[#allocation6 + $0x740] sm:$0xff]
        %v515 = vld [vmem:[#allocation6 + $0x748] sm:$0xff]
        %v516 = vld [vmem:[#allocation6 + $0x750] sm:$0xff]
        %v517 = vld [vmem:[#allocation6 + $0x758] sm:$0xff]
        %v518 = vld [vmem:[#allocation6 + $0x760] sm:$0xff]
        %v519 = vld [vmem:[#allocation6 + $0x768] sm:$0xff]
        %v520 = vld [vmem:[#allocation6 + $0x770] sm:$0xff]
        %v521 = vld [vmem:[#allocation6 + $0x778] sm:$0xff]
        %v522 = vld [vmem:[#allocation6 + $0x780] sm:$0xff]
        %v523 = vld [vmem:[#allocation6 + $0x788] sm:$0xff]
        %v524 = vld [vmem:[#allocation6 + $0x790] sm:$0xff]
        %v525 = vld [vmem:[#allocation6 + $0x798] sm:$0xff]
        %v526 = vld [vmem:[#allocation6 + $0x7a0] sm:$0xff]
        %v527 = vld [vmem:[#allocation6 + $0x7a8] sm:$0xff]
        %v528 = vld [vmem:[#allocation6 + $0x7b0] sm:$0xff]
        %v529 = vld [vmem:[#allocation6 + $0x7b8] sm:$0xff]
        %v530 = vld [vmem:[#allocation6 + $0x7c0] sm:$0xff]
        %v531 = vld [vmem:[#allocation6 + $0x7c8] sm:$0xff]
        %v532 = vld [vmem:[#allocation6 + $0x7d0] sm:$0xff]
        %v533 = vld [vmem:[#allocation6 + $0x7d8] sm:$0xff]
        %v534 = vld [vmem:[#allocation6 + $0x7e0] sm:$0xff]
        %v535 = vld [vmem:[#allocation6 + $0x7e8] sm:$0xff]
        %v536 = vld [vmem:[#allocation6 + $0x7f0] sm:$0xff]
        %v537 = vld [vmem:[#allocation6 + $0x7f8] sm:$0xff]
        %v538 = vld [vmem:[#allocation6 + $0x800] sm:$0xff]
        %v539 = vld [vmem:[#allocation6 + $0x808] sm:$0xff]
        %v540 = vld [vmem:[#allocation6 + $0x810] sm:$0xff]
        %v541 = vld [vmem:[#allocation6 + $0x818] sm:$0xff]
        %v542 = vld [vmem:[#allocation6 + $0x820] sm:$0xff]
        %v543 = vld [vmem:[#allocation6 + $0x828] sm:$0xff]
        %v544 = vld [vmem:[#allocation6 + $0x830] sm:$0xff]
        %v545 = vld [vmem:[#allocation6 + $0x838] sm:$0xff]
        %v546 = vld [vmem:[#allocation6 + $0x840] sm:$0xff]
        %v547 = vld [vmem:[#allocation6 + $0x848] sm:$0xff]
        %v548 = vld [vmem:[#allocation6 + $0x850] sm:$0xff]
        %v549 = vld [vmem:[#allocation6 + $0x858] sm:$0xff]
        %v550 = vld [vmem:[#allocation6 + $0x860] sm:$0xff]
        %v551 = vld [vmem:[#allocation6 + $0x868] sm:$0xff]
        %v552 = vld [vmem:[#allocation6 + $0x870] sm:$0xff]
        %v553 = vld [vmem:[#allocation6 + $0x878] sm:$0xff]
        %v554 = vld [vmem:[#allocation6 + $0x880] sm:$0xff]
        %v555 = vld [vmem:[#allocation6 + $0x888] sm:$0xff]
        %v556 = vld [vmem:[#allocation6 + $0x890] sm:$0xff]
        %v557 = vld [vmem:[#allocation6 + $0x898] sm:$0xff]
        %v558 = vld [vmem:[#allocation6 + $0x8a0] sm:$0xff]
        %v559 = vld [vmem:[#allocation6 + $0x8a8] sm:$0xff]
        %v560 = vld [vmem:[#allocation6 + $0x8b0] sm:$0xff]
        %v561 = vld [vmem:[#allocation6 + $0x8b8] sm:$0xff]
        %v562 = vld [vmem:[#allocation6 + $0x8c0] sm:$0xff]
        %v563 = vld [vmem:[#allocation6 + $0x8c8] sm:$0xff]
        %v564 = vld [vmem:[#allocation6 + $0x8d0] sm:$0xff]
        %v565 = vld [vmem:[#allocation6 + $0x8d8] sm:$0xff]
        %v566 = vld [vmem:[#allocation6 + $0x8e0] sm:$0xff]
        %v567 = vld [vmem:[#allocation6 + $0x8e8] sm:$0xff]
        %v568 = vld [vmem:[#allocation6 + $0x8f0] sm:$0xff]
        %v569 = vld [vmem:[#allocation6 + $0x8f8] sm:$0xff]
        %v570 = vld [vmem:[#allocation6 + $0x900] sm:$0xff]
        %v571 = vld [vmem:[#allocation6 + $0x908] sm:$0xff]
        %v572 = vld [vmem:[#allocation6 + $0x910] sm:$0xff]
        %v573 = vld [vmem:[#allocation6 + $0x918] sm:$0xff]
        %v574 = vld [vmem:[#allocation6 + $0x920] sm:$0xff]
        %v575 = vld [vmem:[#allocation6 + $0x928] sm:$0xff]
        %v576 = vld [vmem:[#allocation6 + $0x930] sm:$0xff]
        %v577 = vld [vmem:[#allocation6 + $0x938] sm:$0xff]
        %v578 = vld [vmem:[#allocation6 + $0x940] sm:$0xff]
        %v579 = vld [vmem:[#allocation6 + $0x948] sm:$0xff]
        %v580 = vld [vmem:[#allocation6 + $0x950] sm:$0xff]
        %v581 = vld [vmem:[#allocation6 + $0x958] sm:$0xff]
        %v582 = vld [vmem:[#allocation6 + $0x960] sm:$0xff]
        %v583 = vld [vmem:[#allocation6 + $0x968] sm:$0xff]
        %v584 = vld [vmem:[#allocation6 + $0x970] sm:$0xff]
        %v585 = vld [vmem:[#allocation6 + $0x978] sm:$0xff]
        %v586 = vld [vmem:[#allocation6 + $0x980] sm:$0xff]
        %v587 = vld [vmem:[#allocation6 + $0x988] sm:$0xff]
        %v588 = vld [vmem:[#allocation6 + $0x990] sm:$0xff]
        %v589 = vld [vmem:[#allocation6 + $0x998] sm:$0xff]
        %v590 = vld [vmem:[#allocation6 + $0x9a0] sm:$0xff]
        %v591 = vld [vmem:[#allocation6 + $0x9a8] sm:$0xff]
        %v592 = vld [vmem:[#allocation6 + $0x9b0] sm:$0xff]
        %v593 = vld [vmem:[#allocation6 + $0x9b8] sm:$0xff]
        %v594 = vld [vmem:[#allocation6 + $0x9c0] sm:$0xff]
        %v595 = vld [vmem:[#allocation6 + $0x9c8] sm:$0xff]
        %v596 = vld [vmem:[#allocation6 + $0x9d0] sm:$0xff]
        %v597 = vld [vmem:[#allocation6 + $0x9d8] sm:$0xff]
        %v598 = vld [vmem:[#allocation6 + $0x9e0] sm:$0xff]
        %v599 = vld [vmem:[#allocation6 + $0x9e8] sm:$0xff]
        %v600 = vld [vmem:[#allocation6 + $0x9f0] sm:$0xff]
        %v601 = vld [vmem:[#allocation6 + $0x9f8] sm:$0xff]
        %v602 = vld [vmem:[#allocation6 + $0xa00] sm:$0xff]
        %v603 = vld [vmem:[#allocation6 + $0xa08] sm:$0xff]
        %v604 = vld [vmem:[#allocation6 + $0xa10] sm:$0xff]
        %v605 = vld [vmem:[#allocation6 + $0xa18] sm:$0xff]
        %v606 = vld [vmem:[#allocation6 + $0xa20] sm:$0xff]
        %v607 = vld [vmem:[#allocation6 + $0xa28] sm:$0xff]
        %v608 = vld [vmem:[#allocation6 + $0xa30] sm:$0xff]
        %v609 = vld [vmem:[#allocation6 + $0xa38] sm:$0xff]
        %v610 = vld [vmem:[#allocation6 + $0xa40] sm:$0xff]
        %v611 = vld [vmem:[#allocation6 + $0xa48] sm:$0xff]
        %v612 = vld [vmem:[#allocation6 + $0xa50] sm:$0xff]
        %v613 = vld [vmem:[#allocation6 + $0xa58] sm:$0xff]
        %v614 = vld [vmem:[#allocation6 + $0xa60] sm:$0xff]
        %v615 = vld [vmem:[#allocation6 + $0xa68] sm:$0xff]
        %v616 = vld [vmem:[#allocation6 + $0xa70] sm:$0xff]
        %v617 = vld [vmem:[#allocation6 + $0xa78] sm:$0xff]
        %v618 = vld [vmem:[#allocation6 + $0xa80] sm:$0xff]
        %v619 = vld [vmem:[#allocation6 + $0xa88] sm:$0xff]
        %v620 = vld [vmem:[#allocation6 + $0xa90] sm:$0xff]
        %v621 = vld [vmem:[#allocation6 + $0xa98] sm:$0xff]
        %v622 = vld [vmem:[#allocation6 + $0xaa0] sm:$0xff]
        %v623 = vld [vmem:[#allocation6 + $0xaa8] sm:$0xff]
        %v624 = vld [vmem:[#allocation6 + $0xab0] sm:$0xff]
        %v625 = vld [vmem:[#allocation6 + $0xab8] sm:$0xff]
        %v626 = vld [vmem:[#allocation6 + $0xac0] sm:$0xff]
        %v627 = vld [vmem:[#allocation6 + $0xac8] sm:$0xff]
        %v628 = vld [vmem:[#allocation6 + $0xad0] sm:$0xff]
        %v629 = vld [vmem:[#allocation6 + $0xad8] sm:$0xff]
        %v630 = vld [vmem:[#allocation6 + $0xae0] sm:$0xff]
        %v631 = vld [vmem:[#allocation6 + $0xae8] sm:$0xff]
        %v632 = vld [vmem:[#allocation6 + $0xaf0] sm:$0xff]
        %v633 = vld [vmem:[#allocation6 + $0xaf8] sm:$0xff]
        %v634 = vld [vmem:[#allocation6 + $0xb00] sm:$0xff]
        %v635 = vld [vmem:[#allocation6 + $0xb08] sm:$0xff]
        %v636 = vld [vmem:[#allocation6 + $0xb10] sm:$0xff]
        %v637 = vld [vmem:[#allocation6 + $0xb18] sm:$0xff]
        %v638 = vld [vmem:[#allocation6 + $0xb20] sm:$0xff]
        %v639 = vld [vmem:[#allocation6 + $0xb28] sm:$0xff]
        %v640 = vld [vmem:[#allocation6 + $0xb30] sm:$0xff]
        %v641 = vld [vmem:[#allocation6 + $0xb38] sm:$0xff]
        %v642 = vld [vmem:[#allocation6 + $0xb40] sm:$0xff]
        %v643 = vld [vmem:[#allocation6 + $0xb48] sm:$0xff]
        %v644 = vld [vmem:[#allocation6 + $0xb50] sm:$0xff]
        %v645 = vld [vmem:[#allocation6 + $0xb58] sm:$0xff]
        %v646 = vld [vmem:[#allocation6 + $0xb60] sm:$0xff]
        %v647 = vld [vmem:[#allocation6 + $0xb68] sm:$0xff]
        %v648 = vld [vmem:[#allocation6 + $0xb70] sm:$0xff]
        %v649 = vld [vmem:[#allocation6 + $0xb78] sm:$0xff]
        %v650 = vld [vmem:[#allocation6 + $0xb80] sm:$0xff]
        %v651 = vld [vmem:[#allocation6 + $0xb88] sm:$0xff]
        %v652 = vld [vmem:[#allocation6 + $0xb90] sm:$0xff]
        %v653 = vld [vmem:[#allocation6 + $0xb98] sm:$0xff]
        %v654 = vld [vmem:[#allocation6 + $0xba0] sm:$0xff]
        %v655 = vld [vmem:[#allocation6 + $0xba8] sm:$0xff]
        %v656 = vld [vmem:[#allocation6 + $0xbb0] sm:$0xff]
        %v657 = vld [vmem:[#allocation6 + $0xbb8] sm:$0xff]
        %v658 = vld [vmem:[#allocation6 + $0xbc0] sm:$0xff]
        %v659 = vld [vmem:[#allocation6 + $0xbc8] sm:$0xff]
        %v660 = vld [vmem:[#allocation6 + $0xbd0] sm:$0xff]
        %v661 = vld [vmem:[#allocation6 + $0xbd8] sm:$0xff]
        %v662 = vld [vmem:[#allocation6 + $0xbe0] sm:$0xff]
        %v663 = vld [vmem:[#allocation6 + $0xbe8] sm:$0xff]
        %v664 = vld [vmem:[#allocation6 + $0xbf0] sm:$0xff]
        %v665 = vld [vmem:[#allocation6 + $0xbf8] sm:$0xff]
        %v666 = vld [vmem:[#allocation6 + $0xc00] sm:$0xff]
        %v667 = vld [vmem:[#allocation6 + $0xc08] sm:$0xff]
        %v668 = vld [vmem:[#allocation6 + $0xc10] sm:$0xff]
        %v669 = vld [vmem:[#allocation6 + $0xc18] sm:$0xff]
        %v670 = vld [vmem:[#allocation6 + $0xc20] sm:$0xff]
        %v671 = vld [vmem:[#allocation6 + $0xc28] sm:$0xff]
        %v672 = vld [vmem:[#allocation6 + $0xc30] sm:$0xff]
        %v673 = vld [vmem:[#allocation6 + $0xc38] sm:$0xff]
        %v674 = vld [vmem:[#allocation6 + $0xc40] sm:$0xff]
        %v675 = vld [vmem:[#allocation6 + $0xc48] sm:$0xff]
        %v676 = vld [vmem:[#allocation6 + $0xc50] sm:$0xff]
        %v677 = vld [vmem:[#allocation6 + $0xc58] sm:$0xff]
        %v678 = vld [vmem:[#allocation6 + $0xc60] sm:$0xff]
        %v679 = vld [vmem:[#allocation6 + $0xc68] sm:$0xff]
        %v680 = vld [vmem:[#allocation6 + $0xc70] sm:$0xff]
        %v681 = vld [vmem:[#allocation6 + $0xc78] sm:$0xff]
        %v682 = vld [vmem:[#allocation6 + $0xc80] sm:$0xff]
        %v683 = vld [vmem:[#allocation6 + $0xc88] sm:$0xff]
        %v684 = vld [vmem:[#allocation6 + $0xc90] sm:$0xff]
        %v685 = vld [vmem:[#allocation6 + $0xc98] sm:$0xff]
        %v686 = vld [vmem:[#allocation6 + $0xca0] sm:$0xff]
        %v687 = vld [vmem:[#allocation6 + $0xca8] sm:$0xff]
        %v688 = vld [vmem:[#allocation6 + $0xcb0] sm:$0xff]
        %v689 = vld [vmem:[#allocation6 + $0xcb8] sm:$0xff]
        %v690 = vld [vmem:[#allocation6 + $0xcc0] sm:$0xff]
        %v691 = vld [vmem:[#allocation6 + $0xcc8] sm:$0xff]
        %v692 = vld [vmem:[#allocation6 + $0xcd0] sm:$0xff]
        %v693 = vld [vmem:[#allocation6 + $0xcd8] sm:$0xff]
        %v694 = vld [vmem:[#allocation6 + $0xce0] sm:$0xff]
        %v695 = vld [vmem:[#allocation6 + $0xce8] sm:$0xff]
        %v696 = vld [vmem:[#allocation6 + $0xcf0] sm:$0xff]
        %v697 = vld [vmem:[#allocation6 + $0xcf8] sm:$0xff]
        %v698 = vld [vmem:[#allocation6 + $0xd00] sm:$0xff]
        %v699 = vld [vmem:[#allocation6 + $0xd08] sm:$0xff]
        %v700 = vld [vmem:[#allocation6 + $0xd10] sm:$0xff]
        %v701 = vld [vmem:[#allocation6 + $0xd18] sm:$0xff]
        %v702 = vld [vmem:[#allocation6 + $0xd20] sm:$0xff]
        %v703 = vld [vmem:[#allocation6 + $0xd28] sm:$0xff]
        %v704 = vld [vmem:[#allocation6 + $0xd30] sm:$0xff]
        %v705 = vld [vmem:[#allocation6 + $0xd38] sm:$0xff]
        %v706 = vld [vmem:[#allocation6 + $0xd40] sm:$0xff]
        %v707 = vld [vmem:[#allocation6 + $0xd48] sm:$0xff]
        %v708 = vld [vmem:[#allocation6 + $0xd50] sm:$0xff]
        %v709 = vld [vmem:[#allocation6 + $0xd58] sm:$0xff]
        %v710 = vld [vmem:[#allocation6 + $0xd60] sm:$0xff]
        %v711 = vld [vmem:[#allocation6 + $0xd68] sm:$0xff]
        %v712 = vld [vmem:[#allocation6 + $0xd70] sm:$0xff]
        %v713 = vld [vmem:[#allocation6 + $0xd78] sm:$0xff]
        %v714 = vld [vmem:[#allocation6 + $0xd80] sm:$0xff]
        %v715 = vld [vmem:[#allocation6 + $0xd88] sm:$0xff]
        %v716 = vld [vmem:[#allocation6 + $0xd90] sm:$0xff]
        %v717 = vld [vmem:[#allocation6 + $0xd98] sm:$0xff]
        %v718 = vld [vmem:[#allocation6 + $0xda0] sm:$0xff]
        %v719 = vld [vmem:[#allocation6 + $0xda8] sm:$0xff]
        %v720 = vld [vmem:[#allocation6 + $0xdb0] sm:$0xff]
        %v721 = vld [vmem:[#allocation6 + $0xdb8] sm:$0xff]
        %v722 = vld [vmem:[#allocation6 + $0xdc0] sm:$0xff]
        %v723 = vld [vmem:[#allocation6 + $0xdc8] sm:$0xff]
        %v724 = vld [vmem:[#allocation6 + $0xdd0] sm:$0xff]
        %v725 = vld [vmem:[#allocation6 + $0xdd8] sm:$0xff]
        %v726 = vld [vmem:[#allocation6 + $0xde0] sm:$0xff]
        %v727 = vld [vmem:[#allocation6 + $0xde8] sm:$0xff]
        %v728 = vld [vmem:[#allocation6 + $0xdf0] sm:$0xff]
        %v729 = vld [vmem:[#allocation6 + $0xdf8] sm:$0xff]
        %v730 = vld [vmem:[#allocation6 + $0xe00] sm:$0xff]
        %v731 = vld [vmem:[#allocation6 + $0xe08] sm:$0xff]
        %v732 = vld [vmem:[#allocation6 + $0xe10] sm:$0xff]
        %v733 = vld [vmem:[#allocation6 + $0xe18] sm:$0xff]
        %v734 = vld [vmem:[#allocation6 + $0xe20] sm:$0xff]
        %v735 = vld [vmem:[#allocation6 + $0xe28] sm:$0xff]
        %v736 = vld [vmem:[#allocation6 + $0xe30] sm:$0xff]
        %v737 = vld [vmem:[#allocation6 + $0xe38] sm:$0xff]
        %v738 = vld [vmem:[#allocation6 + $0xe40] sm:$0xff]
        %v739 = vld [vmem:[#allocation6 + $0xe48] sm:$0xff]
        %v740 = vld [vmem:[#allocation6 + $0xe50] sm:$0xff]
        %v741 = vld [vmem:[#allocation6 + $0xe58] sm:$0xff]
        %v742 = vld [vmem:[#allocation6 + $0xe60] sm:$0xff]
        %v743 = vld [vmem:[#allocation6 + $0xe68] sm:$0xff]
        %v744 = vld [vmem:[#allocation6 + $0xe70] sm:$0xff]
        %v745 = vld [vmem:[#allocation6 + $0xe78] sm:$0xff]
        %v746 = vld [vmem:[#allocation6 + $0xe80] sm:$0xff]
        %v747 = vld [vmem:[#allocation6 + $0xe88] sm:$0xff]
        %v748 = vld [vmem:[#allocation6 + $0xe90] sm:$0xff]
        %v749 = vld [vmem:[#allocation6 + $0xe98] sm:$0xff]
        %v750 = vld [vmem:[#allocation6 + $0xea0] sm:$0xff]
        %v751 = vld [vmem:[#allocation6 + $0xea8] sm:$0xff]
        %v752 = vld [vmem:[#allocation6 + $0xeb0] sm:$0xff]
        %v753 = vld [vmem:[#allocation6 + $0xeb8] sm:$0xff]
        %v754 = vld [vmem:[#allocation6 + $0xec0] sm:$0xff]
        %v755 = vld [vmem:[#allocation6 + $0xec8] sm:$0xff]
        %v756 = vld [vmem:[#allocation6 + $0xed0] sm:$0xff]
        %v757 = vld [vmem:[#allocation6 + $0xed8] sm:$0xff]
        %v758 = vld [vmem:[#allocation6 + $0xee0] sm:$0xff]
        %v759 = vld [vmem:[#allocation6 + $0xee8] sm:$0xff]
        %v760 = vld [vmem:[#allocation6 + $0xef0] sm:$0xff]
        %v761 = vld [vmem:[#allocation6 + $0xef8] sm:$0xff]
        %v762 = vld [vmem:[#allocation6 + $0xf00] sm:$0xff]
        %v763 = vld [vmem:[#allocation6 + $0xf08] sm:$0xff]
        %v764 = vld [vmem:[#allocation6 + $0xf10] sm:$0xff]
        %v765 = vld [vmem:[#allocation6 + $0xf18] sm:$0xff]
        %v766 = vld [vmem:[#allocation6 + $0xf20] sm:$0xff]
        %v767 = vld [vmem:[#allocation6 + $0xf28] sm:$0xff]
        %v768 = vld [vmem:[#allocation6 + $0xf30] sm:$0xff]
        %v769 = vld [vmem:[#allocation6 + $0xf38] sm:$0xff]
        %v770 = vld [vmem:[#allocation6 + $0xf40] sm:$0xff]
        %v771 = vld [vmem:[#allocation6 + $0xf48] sm:$0xff]
        %v772 = vld [vmem:[#allocation6 + $0xf50] sm:$0xff]
        %v773 = vld [vmem:[#allocation6 + $0xf58] sm:$0xff]
        %v774 = vld [vmem:[#allocation6 + $0xf60] sm:$0xff]
        %v775 = vld [vmem:[#allocation6 + $0xf68] sm:$0xff]
        %v776 = vld [vmem:[#allocation6 + $0xf70] sm:$0xff]
        %v777 = vld [vmem:[#allocation6 + $0xf78] sm:$0xff]
        %v778 = vld [vmem:[#allocation6 + $0xf80] sm:$0xff]
        %v779 = vld [vmem:[#allocation6 + $0xf88] sm:$0xff]
        %v780 = vld [vmem:[#allocation6 + $0xf90] sm:$0xff]
        %v781 = vld [vmem:[#allocation6 + $0xf98] sm:$0xff]
        %v782 = vld [vmem:[#allocation6 + $0xfa0] sm:$0xff]
        %v783 = vld [vmem:[#allocation6 + $0xfa8] sm:$0xff]
        %v784 = vld [vmem:[#allocation6 + $0xfb0] sm:$0xff]
        %v785 = vld [vmem:[#allocation6 + $0xfb8] sm:$0xff]
        %v786 = vld [vmem:[#allocation6 + $0xfc0] sm:$0xff]
        %v787 = vld [vmem:[#allocation6 + $0xfc8] sm:$0xff]
        %v788 = vld [vmem:[#allocation6 + $0xfd0] sm:$0xff]
        %v789 = vld [vmem:[#allocation6 + $0xfd8] sm:$0xff]
        %v790 = vld [vmem:[#allocation6 + $0xfe0] sm:$0xff]
        %v791 = vld [vmem:[#allocation6 + $0xfe8] sm:$0xff]
        %v792 = vld [vmem:[#allocation6 + $0xff0] sm:$0xff]
        %v793 = vld [vmem:[#allocation6 + $0xff8] sm:$0xff]
        %v794 = vld [vmem:[#allocation6 + $0x1000] sm:$0xff]
        %v795 = vld [vmem:[#allocation6 + $0x1008] sm:$0xff]
        %v796 = vld [vmem:[#allocation6 + $0x1010] sm:$0xff]
        %v797 = vld [vmem:[#allocation6 + $0x1018] sm:$0xff]
        %v798 = vld [vmem:[#allocation6 + $0x1020] sm:$0xff]
        %v799 = vld [vmem:[#allocation6 + $0x1028] sm:$0xff]
        %v800 = vld [vmem:[#allocation6 + $0x1030] sm:$0xff]
        %v801 = vld [vmem:[#allocation6 + $0x1038] sm:$0xff]
        %v802 = vld [vmem:[#allocation6 + $0x1040] sm:$0xff]
        %v803 = vld [vmem:[#allocation6 + $0x1048] sm:$0xff]
        %v804 = vld [vmem:[#allocation6 + $0x1050] sm:$0xff]
        %v805 = vld [vmem:[#allocation6 + $0x1058] sm:$0xff]
        %v806 = vld [vmem:[#allocation6 + $0x1060] sm:$0xff]
        %v807 = vld [vmem:[#allocation6 + $0x1068] sm:$0xff]
        %v808 = vld [vmem:[#allocation6 + $0x1070] sm:$0xff]
        %v809 = vld [vmem:[#allocation6 + $0x1078] sm:$0xff]
        %v810 = vld [vmem:[#allocation6 + $0x1080] sm:$0xff]
        %v811 = vld [vmem:[#allocation6 + $0x1088] sm:$0xff]
        %v812 = vld [vmem:[#allocation6 + $0x1090] sm:$0xff]
        %v813 = vld [vmem:[#allocation6 + $0x1098] sm:$0xff]
        %v814 = vld [vmem:[#allocation6 + $0x10a0] sm:$0xff]
        %v815 = vld [vmem:[#allocation6 + $0x10a8] sm:$0xff]
        %v816 = vld [vmem:[#allocation6 + $0x10b0] sm:$0xff]
        %v817 = vld [vmem:[#allocation6 + $0x10b8] sm:$0xff]
        %v818 = vld [vmem:[#allocation6 + $0x10c0] sm:$0xff]
        %v819 = vld [vmem:[#allocation6 + $0x10c8] sm:$0xff]
        %v820 = vld [vmem:[#allocation6 + $0x10d0] sm:$0xff]
        %v821 = vld [vmem:[#allocation6 + $0x10d8] sm:$0xff]
        %v822 = vld [vmem:[#allocation6 + $0x10e0] sm:$0xff]
        %v823 = vld [vmem:[#allocation6 + $0x10e8] sm:$0xff]
        %v824 = vld [vmem:[#allocation6 + $0x10f0] sm:$0xff]
        %v825 = vld [vmem:[#allocation6 + $0x10f8] sm:$0xff]
        %v826 = vld [vmem:[#allocation6 + $0x1100] sm:$0xff]
        %v827 = vld [vmem:[#allocation6 + $0x1108] sm:$0xff]
        %v828 = vld [vmem:[#allocation6 + $0x1110] sm:$0xff]
        %v829 = vld [vmem:[#allocation6 + $0x1118] sm:$0xff]
        %v830 = vld [vmem:[#allocation6 + $0x1120] sm:$0xff]
        %v831 = vld [vmem:[#allocation6 + $0x1128] sm:$0xff]
        %v832 = vld [vmem:[#allocation6 + $0x1130] sm:$0xff]
        %v833 = vld [vmem:[#allocation6 + $0x1138] sm:$0xff]
        %v834 = vld [vmem:[#allocation6 + $0x1140] sm:$0xff]
        %v835 = vld [vmem:[#allocation6 + $0x1148] sm:$0xff]
        %v836 = vld [vmem:[#allocation6 + $0x1150] sm:$0xff]
        %v837 = vld [vmem:[#allocation6 + $0x1158] sm:$0xff]
        %v838 = vld [vmem:[#allocation6 + $0x1160] sm:$0xff]
        %v839 = vld [vmem:[#allocation6 + $0x1168] sm:$0xff]
        %v840 = vld [vmem:[#allocation6 + $0x1170] sm:$0xff]
        %v841 = vld [vmem:[#allocation6 + $0x1178] sm:$0xff]
        %v842 = vld [vmem:[#allocation6 + $0x1180] sm:$0xff]
        %v843 = vld [vmem:[#allocation6 + $0x1188] sm:$0xff]
        %v844 = vld [vmem:[#allocation6 + $0x1190] sm:$0xff]
        %v845 = vld [vmem:[#allocation6 + $0x1198] sm:$0xff]
        %v846 = vld [vmem:[#allocation6 + $0x11a0] sm:$0xff]
        %v847 = vld [vmem:[#allocation6 + $0x11a8] sm:$0xff]
        %v848 = vld [vmem:[#allocation6 + $0x11b0] sm:$0xff]
        %v849 = vld [vmem:[#allocation6 + $0x11b8] sm:$0xff]
        %v850 = vld [vmem:[#allocation6 + $0x11c0] sm:$0xff]
        %v851 = vld [vmem:[#allocation6 + $0x11c8] sm:$0xff]
        %v852 = vld [vmem:[#allocation6 + $0x11d0] sm:$0xff]
        %v853 = vld [vmem:[#allocation6 + $0x11d8] sm:$0xff]
        %v854 = vld [vmem:[#allocation6 + $0x11e0] sm:$0xff]
        %v855 = vld [vmem:[#allocation6 + $0x11e8] sm:$0xff]
        %v856 = vld [vmem:[#allocation6 + $0x11f0] sm:$0xff]
        %v857 = vld [vmem:[#allocation6 + $0x11f8] sm:$0xff]
        %v858 = vld [vmem:[#allocation6 + $0x1200] sm:$0xff]
        %v859 = vld [vmem:[#allocation6 + $0x1208] sm:$0xff]
        %v860 = vld [vmem:[#allocation6 + $0x1210] sm:$0xff]
        %v861 = vld [vmem:[#allocation6 + $0x1218] sm:$0xff]
        %v862 = vld [vmem:[#allocation6 + $0x1220] sm:$0xff]
        %v863 = vld [vmem:[#allocation6 + $0x1228] sm:$0xff]
        %v864 = vld [vmem:[#allocation6 + $0x1230] sm:$0xff]
        %v865 = vld [vmem:[#allocation6 + $0x1238] sm:$0xff]
        %v866 = vld [vmem:[#allocation6 + $0x1240] sm:$0xff]
        %v867 = vld [vmem:[#allocation6 + $0x1248] sm:$0xff]
        %v868 = vld [vmem:[#allocation6 + $0x1250] sm:$0xff]
        %v869 = vld [vmem:[#allocation6 + $0x1258] sm:$0xff]
        %v870 = vld [vmem:[#allocation6 + $0x1260] sm:$0xff]
        %v871 = vld [vmem:[#allocation6 + $0x1268] sm:$0xff]
        %v872 = vld [vmem:[#allocation6 + $0x1270] sm:$0xff]
        %v873 = vld [vmem:[#allocation6 + $0x1278] sm:$0xff]
        %v874 = vld [vmem:[#allocation6 + $0x1280] sm:$0xff]
        %v875 = vld [vmem:[#allocation6 + $0x1288] sm:$0xff]
        %v876 = vld [vmem:[#allocation6 + $0x1290] sm:$0xff]
        %v877 = vld [vmem:[#allocation6 + $0x1298] sm:$0xff]
        %v878 = vld [vmem:[#allocation6 + $0x12a0] sm:$0xff]
        %v879 = vld [vmem:[#allocation6 + $0x12a8] sm:$0xff]
        %v880 = vld [vmem:[#allocation6 + $0x12b0] sm:$0xff]
        %v881 = vld [vmem:[#allocation6 + $0x12b8] sm:$0xff]
        %v882 = vld [vmem:[#allocation6 + $0x12c0] sm:$0xff]
        %v883 = vld [vmem:[#allocation6 + $0x12c8] sm:$0xff]
        %v884 = vld [vmem:[#allocation6 + $0x12d0] sm:$0xff]
        %v885 = vld [vmem:[#allocation6 + $0x12d8] sm:$0xff]
        %v886 = vld [vmem:[#allocation6 + $0x12e0] sm:$0xff]
        %v887 = vld [vmem:[#allocation6 + $0x12e8] sm:$0xff]
        %v888 = vld [vmem:[#allocation6 + $0x12f0] sm:$0xff]
        %v889 = vld [vmem:[#allocation6 + $0x12f8] sm:$0xff]
        %v890 = vld [vmem:[#allocation6 + $0x1300] sm:$0xff]
        %v891 = vld [vmem:[#allocation6 + $0x1308] sm:$0xff]
        %v892 = vld [vmem:[#allocation6 + $0x1310] sm:$0xff]
        %v893 = vld [vmem:[#allocation6 + $0x1318] sm:$0xff]
        %v894 = vld [vmem:[#allocation6 + $0x1320] sm:$0xff]
        %v895 = vld [vmem:[#allocation6 + $0x1328] sm:$0xff]
        %v896 = vld [vmem:[#allocation6 + $0x1330] sm:$0xff]
        %v897 = vld [vmem:[#allocation6 + $0x1338] sm:$0xff]
        %v898 = vld [vmem:[#allocation6 + $0x1340] sm:$0xff]
        %v899 = vld [vmem:[#allocation6 + $0x1348] sm:$0xff]
        %v900 = vld [vmem:[#allocation6 + $0x1350] sm:$0xff]
        %v901 = vld [vmem:[#allocation6 + $0x1358] sm:$0xff]
        %v902 = vld [vmem:[#allocation6 + $0x1360] sm:$0xff]
        %v903 = vld [vmem:[#allocation6 + $0x1368] sm:$0xff]
        %v904 = vld [vmem:[#allocation6 + $0x1370] sm:$0xff]
        %v905 = vld [vmem:[#allocation6 + $0x1378] sm:$0xff]
        %v906 = vld [vmem:[#allocation6 + $0x1380] sm:$0xff]
        %v907 = vld [vmem:[#allocation6 + $0x1388] sm:$0xff]
        %v908 = vld [vmem:[#allocation6 + $0x1390] sm:$0xff]
        %v909 = vld [vmem:[#allocation6 + $0x1398] sm:$0xff]
        %v910 = vld [vmem:[#allocation6 + $0x13a0] sm:$0xff]
        %v911 = vld [vmem:[#allocation6 + $0x13a8] sm:$0xff]
        %v912 = vld [vmem:[#allocation6 + $0x13b0] sm:$0xff]
        %v913 = vld [vmem:[#allocation6 + $0x13b8] sm:$0xff]
        %v914 = vld [vmem:[#allocation6 + $0x13c0] sm:$0xff]
        %v915 = vld [vmem:[#allocation6 + $0x13c8] sm:$0xff]
        %v916 = vld [vmem:[#allocation6 + $0x13d0] sm:$0xff]
        %v917 = vld [vmem:[#allocation6 + $0x13d8] sm:$0xff]
        %v918 = vld [vmem:[#allocation6 + $0x13e0] sm:$0xff]
        %v919 = vld [vmem:[#allocation6 + $0x13e8] sm:$0xff]
        %v920 = vld [vmem:[#allocation6 + $0x13f0] sm:$0xff]
        %v921 = vld [vmem:[#allocation6 + $0x13f8] sm:$0xff]
        %v922 = vld [vmem:[#allocation6 + $0x1400] sm:$0xff]
        %v923 = vld [vmem:[#allocation6 + $0x1408] sm:$0xff]
        %v924 = vld [vmem:[#allocation6 + $0x1410] sm:$0xff]
        %v925 = vld [vmem:[#allocation6 + $0x1418] sm:$0xff]
        %v926 = vld [vmem:[#allocation6 + $0x1420] sm:$0xff]
        %v927 = vld [vmem:[#allocation6 + $0x1428] sm:$0xff]
        %v928 = vld [vmem:[#allocation6 + $0x1430] sm:$0xff]
        %v929 = vld [vmem:[#allocation6 + $0x1438] sm:$0xff]
        %v930 = vld [vmem:[#allocation6 + $0x1440] sm:$0xff]
        %v931 = vld [vmem:[#allocation6 + $0x1448] sm:$0xff]
        %v932 = vld [vmem:[#allocation6 + $0x1450] sm:$0xff]
        %v933 = vld [vmem:[#allocation6 + $0x1458] sm:$0xff]
        %v934 = vld [vmem:[#allocation6 + $0x1460] sm:$0xff]
        %v935 = vld [vmem:[#allocation6 + $0x1468] sm:$0xff]
        %v936 = vld [vmem:[#allocation6 + $0x1470] sm:$0xff]
        %v937 = vld [vmem:[#allocation6 + $0x1478] sm:$0xff]
        %v938 = vld [vmem:[#allocation6 + $0x1480] sm:$0xff]
        %v939 = vld [vmem:[#allocation6 + $0x1488] sm:$0xff]
        %v940 = vld [vmem:[#allocation6 + $0x1490] sm:$0xff]
        %v941 = vld [vmem:[#allocation6 + $0x1498] sm:$0xff]
        %v942 = vld [vmem:[#allocation6 + $0x14a0] sm:$0xff]
        %v943 = vld [vmem:[#allocation6 + $0x14a8] sm:$0xff]
        %v944 = vld [vmem:[#allocation6 + $0x14b0] sm:$0xff]
        %v945 = vld [vmem:[#allocation6 + $0x14b8] sm:$0xff]
        %v946 = vld [vmem:[#allocation6 + $0x14c0] sm:$0xff]
        %v947 = vld [vmem:[#allocation6 + $0x14c8] sm:$0xff]
        %v948 = vld [vmem:[#allocation6 + $0x14d0] sm:$0xff]
        %v949 = vld [vmem:[#allocation6 + $0x14d8] sm:$0xff]
        %v950 = vld [vmem:[#allocation6 + $0x14e0] sm:$0xff]
        %v951 = vld [vmem:[#allocation6 + $0x14e8] sm:$0xff]
        %v952 = vld [vmem:[#allocation6 + $0x14f0] sm:$0xff]
        %v953 = vld [vmem:[#allocation6 + $0x14f8] sm:$0xff]
        %v954 = vld [vmem:[#allocation6 + $0x1500] sm:$0xff]
        %v955 = vld [vmem:[#allocation6 + $0x1508] sm:$0xff]
        %v956 = vld [vmem:[#allocation6 + $0x1510] sm:$0xff]
        %v957 = vld [vmem:[#allocation6 + $0x1518] sm:$0xff]
        %v958 = vld [vmem:[#allocation6 + $0x1520] sm:$0xff]
        %v959 = vld [vmem:[#allocation6 + $0x1528] sm:$0xff]
        %v960 = vld [vmem:[#allocation6 + $0x1530] sm:$0xff]
        %v961 = vld [vmem:[#allocation6 + $0x1538] sm:$0xff]
        %v962 = vld [vmem:[#allocation6 + $0x1540] sm:$0xff]
        %v963 = vld [vmem:[#allocation6 + $0x1548] sm:$0xff]
        %v964 = vld [vmem:[#allocation6 + $0x1550] sm:$0xff]
        %v965 = vld [vmem:[#allocation6 + $0x1558] sm:$0xff]
        %v966 = vld [vmem:[#allocation6 + $0x1560] sm:$0xff]
        %v967 = vld [vmem:[#allocation6 + $0x1568] sm:$0xff]
        %v968 = vld [vmem:[#allocation6 + $0x1570] sm:$0xff]
        %v969 = vld [vmem:[#allocation6 + $0x1578] sm:$0xff]
        %v970 = vld [vmem:[#allocation6 + $0x1580] sm:$0xff]
        %v971 = vld [vmem:[#allocation6 + $0x1588] sm:$0xff]
        %v972 = vld [vmem:[#allocation6 + $0x1590] sm:$0xff]
        %v973 = vld [vmem:[#allocation6 + $0x1598] sm:$0xff]
        %v974 = vld [vmem:[#allocation6 + $0x15a0] sm:$0xff]
        %v975 = vld [vmem:[#allocation6 + $0x15a8] sm:$0xff]
        %v976 = vld [vmem:[#allocation6 + $0x15b0] sm:$0xff]
        %v977 = vld [vmem:[#allocation6 + $0x15b8] sm:$0xff]
        %v978 = vld [vmem:[#allocation6 + $0x15c0] sm:$0xff]
        %v979 = vld [vmem:[#allocation6 + $0x15c8] sm:$0xff]
        %v980 = vld [vmem:[#allocation6 + $0x15d0] sm:$0xff]
        %v981 = vld [vmem:[#allocation6 + $0x15d8] sm:$0xff]
        %v982 = vld [vmem:[#allocation6 + $0x15e0] sm:$0xff]
        %v983 = vld [vmem:[#allocation6 + $0x15e8] sm:$0xff]
        %v984 = vld [vmem:[#allocation6 + $0x15f0] sm:$0xff]
        %v985 = vld [vmem:[#allocation6 + $0x15f8] sm:$0xff]
        %v986 = vld [vmem:[#allocation6 + $0x1600] sm:$0xff]
        %v987 = vld [vmem:[#allocation6 + $0x1608] sm:$0xff]
        %v988 = vld [vmem:[#allocation6 + $0x1610] sm:$0xff]
        %v989 = vld [vmem:[#allocation6 + $0x1618] sm:$0xff]
        %v990 = vld [vmem:[#allocation6 + $0x1620] sm:$0xff]
        %v991 = vld [vmem:[#allocation6 + $0x1628] sm:$0xff]
        %v992 = vld [vmem:[#allocation6 + $0x1630] sm:$0xff]
        %v993 = vld [vmem:[#allocation6 + $0x1638] sm:$0xff]
        %v994 = vld [vmem:[#allocation6 + $0x1640] sm:$0xff]
        %v995 = vld [vmem:[#allocation6 + $0x1648] sm:$0xff]
        %v996 = vld [vmem:[#allocation6 + $0x1650] sm:$0xff]
        %v997 = vld [vmem:[#allocation6 + $0x1658] sm:$0xff]
        %v998 = vld [vmem:[#allocation6 + $0x1660] sm:$0xff]
        %v999 = vld [vmem:[#allocation6 + $0x1668] sm:$0xff]
        %v1000 = vld [vmem:[#allocation6 + $0x1670] sm:$0xff]
        %v1001 = vld [vmem:[#allocation6 + $0x1678] sm:$0xff]
        %v1002 = vld [vmem:[#allocation6 + $0x1680] sm:$0xff]
        %v1003 = vld [vmem:[#allocation6 + $0x1688] sm:$0xff]
        %v1004 = vld [vmem:[#allocation6 + $0x1690] sm:$0xff]
        %v1005 = vld [vmem:[#allocation6 + $0x1698] sm:$0xff]
        %v1006 = vld [vmem:[#allocation6 + $0x16a0] sm:$0xff]
        %v1007 = vld [vmem:[#allocation6 + $0x16a8] sm:$0xff]
        %v1008 = vld [vmem:[#allocation6 + $0x16b0] sm:$0xff]
        %v1009 = vld [vmem:[#allocation6 + $0x16b8] sm:$0xff]
        %v1010 = vld [vmem:[#allocation6 + $0x16c0] sm:$0xff]
        %v1011 = vld [vmem:[#allocation6 + $0x16c8] sm:$0xff]
        %v1012 = vld [vmem:[#allocation6 + $0x16d0] sm:$0xff]
        %v1013 = vld [vmem:[#allocation6 + $0x16d8] sm:$0xff]
        %v1014 = vld [vmem:[#allocation6 + $0x16e0] sm:$0xff]
        %v1015 = vld [vmem:[#allocation6 + $0x16e8] sm:$0xff]
        %v1016 = vld [vmem:[#allocation6 + $0x16f0] sm:$0xff]
        %v1017 = vld [vmem:[#allocation6 + $0x16f8] sm:$0xff]
        %v1018 = vld [vmem:[#allocation6 + $0x1700] sm:$0xff]
        %v1019 = vld [vmem:[#allocation6 + $0x1708] sm:$0xff]
        %v1020 = vld [vmem:[#allocation6 + $0x1710] sm:$0xff]
        %v1021 = vld [vmem:[#allocation6 + $0x1718] sm:$0xff]
        %v1022 = vld [vmem:[#allocation6 + $0x1720] sm:$0xff]
        %v1023 = vld [vmem:[#allocation6 + $0x1728] sm:$0xff]
        %v1024 = vld [vmem:[#allocation6 + $0x1730] sm:$0xff]
        %v1025 = vld [vmem:[#allocation6 + $0x1738] sm:$0xff]
        %v1026 = vld [vmem:[#allocation6 + $0x1740] sm:$0xff]
        %v1027 = vld [vmem:[#allocation6 + $0x1748] sm:$0xff]
        %v1028 = vld [vmem:[#allocation6 + $0x1750] sm:$0xff]
        %v1029 = vld [vmem:[#allocation6 + $0x1758] sm:$0xff]
        %v1030 = vld [vmem:[#allocation6 + $0x1760] sm:$0xff]
        %v1031 = vld [vmem:[#allocation6 + $0x1768] sm:$0xff]
        %v1032 = vld [vmem:[#allocation6 + $0x1770] sm:$0xff]
        %v1033 = vld [vmem:[#allocation6 + $0x1778] sm:$0xff]
        %v1034 = vld [vmem:[#allocation6 + $0x1780] sm:$0xff]
        %v1035 = vld [vmem:[#allocation6 + $0x1788] sm:$0xff]
        %v1036 = vld [vmem:[#allocation6 + $0x1790] sm:$0xff]
        %v1037 = vld [vmem:[#allocation6 + $0x1798] sm:$0xff]
        %v1038 = vld [vmem:[#allocation6 + $0x17a0] sm:$0xff]
        %v1039 = vld [vmem:[#allocation6 + $0x17a8] sm:$0xff]
        %v1040 = vld [vmem:[#allocation6 + $0x17b0] sm:$0xff]
        %v1041 = vld [vmem:[#allocation6 + $0x17b8] sm:$0xff]
        %v1042 = vld [vmem:[#allocation6 + $0x17c0] sm:$0xff]
        %v1043 = vld [vmem:[#allocation6 + $0x17c8] sm:$0xff]
        %v1044 = vld [vmem:[#allocation6 + $0x17d0] sm:$0xff]
        %v1045 = vld [vmem:[#allocation6 + $0x17d8] sm:$0xff]
        %v1046 = vld [vmem:[#allocation6 + $0x17e0] sm:$0xff]
        %v1047 = vld [vmem:[#allocation6 + $0x17e8] sm:$0xff]
        %v1048 = vld [vmem:[#allocation6 + $0x17f0] sm:$0xff]
        %v1049 = vld [vmem:[#allocation6 + $0x17f8] sm:$0xff]
        %v1050 = vld [vmem:[#allocation6 + $0x1800] sm:$0xff]
        %v1051 = vld [vmem:[#allocation6 + $0x1808] sm:$0xff]
        %v1052 = vld [vmem:[#allocation6 + $0x1810] sm:$0xff]
        %v1053 = vld [vmem:[#allocation6 + $0x1818] sm:$0xff]
        %v1054 = vld [vmem:[#allocation6 + $0x1820] sm:$0xff]
        %v1055 = vld [vmem:[#allocation6 + $0x1828] sm:$0xff]
        %v1056 = vld [vmem:[#allocation6 + $0x1830] sm:$0xff]
        %v1057 = vld [vmem:[#allocation6 + $0x1838] sm:$0xff]
        %v1058 = vld [vmem:[#allocation6 + $0x1840] sm:$0xff]
        %v1059 = vld [vmem:[#allocation6 + $0x1848] sm:$0xff]
        %v1060 = vld [vmem:[#allocation6 + $0x1850] sm:$0xff]
        %v1061 = vld [vmem:[#allocation6 + $0x1858] sm:$0xff]
        %v1062 = vld [vmem:[#allocation6 + $0x1860] sm:$0xff]
        %v1063 = vld [vmem:[#allocation6 + $0x1868] sm:$0xff]
        %v1064 = vld [vmem:[#allocation6 + $0x1870] sm:$0xff]
        %v1065 = vld [vmem:[#allocation6 + $0x1878] sm:$0xff]
        %v1066 = vld [vmem:[#allocation6 + $0x1880] sm:$0xff]
        %v1067 = vld [vmem:[#allocation6 + $0x1888] sm:$0xff]
        %v1068 = vld [vmem:[#allocation6 + $0x1890] sm:$0xff]
        %v1069 = vld [vmem:[#allocation6 + $0x1898] sm:$0xff]
        %v1070 = vld [vmem:[#allocation6 + $0x18a0] sm:$0xff]
        %v1071 = vld [vmem:[#allocation6 + $0x18a8] sm:$0xff]
        %v1072 = vld [vmem:[#allocation6 + $0x18b0] sm:$0xff]
        %v1073 = vld [vmem:[#allocation6 + $0x18b8] sm:$0xff]
        %v1074 = vld [vmem:[#allocation6 + $0x18c0] sm:$0xff]
        %v1075 = vld [vmem:[#allocation6 + $0x18c8] sm:$0xff]
        %v1076 = vld [vmem:[#allocation6 + $0x18d0] sm:$0xff]
        %v1077 = vld [vmem:[#allocation6 + $0x18d8] sm:$0xff]
        %v1078 = vld [vmem:[#allocation6 + $0x18e0] sm:$0xff]
        %v1079 = vld [vmem:[#allocation6 + $0x18e8] sm:$0xff]
        %v1080 = vld [vmem:[#allocation6 + $0x18f0] sm:$0xff]
        %v1081 = vld [vmem:[#allocation6 + $0x18f8] sm:$0xff]
        %v1082 = vld [vmem:[#allocation6 + $0x1900] sm:$0xff]
        %v1083 = vld [vmem:[#allocation6 + $0x1908] sm:$0xff]
        %v1084 = vld [vmem:[#allocation6 + $0x1910] sm:$0xff]
        %v1085 = vld [vmem:[#allocation6 + $0x1918] sm:$0xff]
        %v1086 = vld [vmem:[#allocation6 + $0x1920] sm:$0xff]
        %v1087 = vld [vmem:[#allocation6 + $0x1928] sm:$0xff]
        %v1088 = vld [vmem:[#allocation6 + $0x1930] sm:$0xff]
        %v1089 = vld [vmem:[#allocation6 + $0x1938] sm:$0xff]
        %v1090 = vld [vmem:[#allocation6 + $0x1940] sm:$0xff]
        %v1091 = vld [vmem:[#allocation6 + $0x1948] sm:$0xff]
        %v1092 = vld [vmem:[#allocation6 + $0x1950] sm:$0xff]
        %v1093 = vld [vmem:[#allocation6 + $0x1958] sm:$0xff]
        %v1094 = vld [vmem:[#allocation6 + $0x1960] sm:$0xff]
        %v1095 = vld [vmem:[#allocation6 + $0x1968] sm:$0xff]
        %v1096 = vld [vmem:[#allocation6 + $0x1970] sm:$0xff]
        %v1097 = vld [vmem:[#allocation6 + $0x1978] sm:$0xff]
        %v1098 = vld [vmem:[#allocation6 + $0x1980] sm:$0xff]
        %v1099 = vld [vmem:[#allocation6 + $0x1988] sm:$0xff]
        %v1100 = vld [vmem:[#allocation6 + $0x1990] sm:$0xff]
        %v1101 = vld [vmem:[#allocation6 + $0x1998] sm:$0xff]
        %v1102 = vld [vmem:[#allocation6 + $0x19a0] sm:$0xff]
        %v1103 = vld [vmem:[#allocation6 + $0x19a8] sm:$0xff]
        %v1104 = vld [vmem:[#allocation6 + $0x19b0] sm:$0xff]
        %v1105 = vld [vmem:[#allocation6 + $0x19b8] sm:$0xff]
        %v1106 = vld [vmem:[#allocation6 + $0x19c0] sm:$0xff]
        %v1107 = vld [vmem:[#allocation6 + $0x19c8] sm:$0xff]
        %v1108 = vld [vmem:[#allocation6 + $0x19d0] sm:$0xff]
        %v1109 = vld [vmem:[#allocation6 + $0x19d8] sm:$0xff]
        %v1110 = vld [vmem:[#allocation6 + $0x19e0] sm:$0xff]
        %v1111 = vld [vmem:[#allocation6 + $0x19e8] sm:$0xff]
        %v1112 = vld [vmem:[#allocation6 + $0x19f0] sm:$0xff]
        %v1113 = vld [vmem:[#allocation6 + $0x19f8] sm:$0xff]
        %v1114 = vld [vmem:[#allocation6 + $0x1a00] sm:$0xff]
        %v1115 = vld [vmem:[#allocation6 + $0x1a08] sm:$0xff]
        %v1116 = vld [vmem:[#allocation6 + $0x1a10] sm:$0xff]
        %v1117 = vld [vmem:[#allocation6 + $0x1a18] sm:$0xff]
        %v1118 = vld [vmem:[#allocation6 + $0x1a20] sm:$0xff]
        %v1119 = vld [vmem:[#allocation6 + $0x1a28] sm:$0xff]
        %v1120 = vld [vmem:[#allocation6 + $0x1a30] sm:$0xff]
        %v1121 = vld [vmem:[#allocation6 + $0x1a38] sm:$0xff]
        %v1122 = vld [vmem:[#allocation6 + $0x1a40] sm:$0xff]
        %v1123 = vld [vmem:[#allocation6 + $0x1a48] sm:$0xff]
        %v1124 = vld [vmem:[#allocation6 + $0x1a50] sm:$0xff]
        %v1125 = vld [vmem:[#allocation6 + $0x1a58] sm:$0xff]
        %v1126 = vld [vmem:[#allocation6 + $0x1a60] sm:$0xff]
        %v1127 = vld [vmem:[#allocation6 + $0x1a68] sm:$0xff]
        %v1128 = vld [vmem:[#allocation6 + $0x1a70] sm:$0xff]
        %v1129 = vld [vmem:[#allocation6 + $0x1a78] sm:$0xff]
        %v1130 = vld [vmem:[#allocation6 + $0x1a80] sm:$0xff]
        %v1131 = vld [vmem:[#allocation6 + $0x1a88] sm:$0xff]
        %v1132 = vld [vmem:[#allocation6 + $0x1a90] sm:$0xff]
        %v1133 = vld [vmem:[#allocation6 + $0x1a98] sm:$0xff]
        %v1134 = vld [vmem:[#allocation6 + $0x1aa0] sm:$0xff]
        %v1135 = vld [vmem:[#allocation6 + $0x1aa8] sm:$0xff]
        %v1136 = vld [vmem:[#allocation6 + $0x1ab0] sm:$0xff]
        %v1137 = vld [vmem:[#allocation6 + $0x1ab8] sm:$0xff]
        %v1138 = vld [vmem:[#allocation6 + $0x1ac0] sm:$0xff]
        %v1139 = vld [vmem:[#allocation6 + $0x1ac8] sm:$0xff]
        %v1140 = vld [vmem:[#allocation6 + $0x1ad0] sm:$0xff]
        %v1141 = vld [vmem:[#allocation6 + $0x1ad8] sm:$0xff]
        %v1142 = vld [vmem:[#allocation6 + $0x1ae0] sm:$0xff]
        %v1143 = vld [vmem:[#allocation6 + $0x1ae8] sm:$0xff]
        %v1144 = vld [vmem:[#allocation6 + $0x1af0] sm:$0xff]
        %v1145 = vld [vmem:[#allocation6 + $0x1af8] sm:$0xff]
        %v1146 = vld [vmem:[#allocation6 + $0x1b00] sm:$0xff]
        %v1147 = vld [vmem:[#allocation6 + $0x1b08] sm:$0xff]
        %v1148 = vld [vmem:[#allocation6 + $0x1b10] sm:$0xff]
        %v1149 = vld [vmem:[#allocation6 + $0x1b18] sm:$0xff]
        %v1150 = vld [vmem:[#allocation6 + $0x1b20] sm:$0xff]
        %v1151 = vld [vmem:[#allocation6 + $0x1b28] sm:$0xff]
        %v1152 = vld [vmem:[#allocation6 + $0x1b30] sm:$0xff]
        %v1153 = vld [vmem:[#allocation6 + $0x1b38] sm:$0xff]
        %v1154 = vld [vmem:[#allocation6 + $0x1b40] sm:$0xff]
        %v1155 = vld [vmem:[#allocation6 + $0x1b48] sm:$0xff]
        %v1156 = vld [vmem:[#allocation6 + $0x1b50] sm:$0xff]
        %v1157 = vld [vmem:[#allocation6 + $0x1b58] sm:$0xff]
        %v1158 = vld [vmem:[#allocation6 + $0x1b60] sm:$0xff]
        %v1159 = vld [vmem:[#allocation6 + $0x1b68] sm:$0xff]
        %v1160 = vld [vmem:[#allocation6 + $0x1b70] sm:$0xff]
        %v1161 = vld [vmem:[#allocation6 + $0x1b78] sm:$0xff]
        %v1162 = vld [vmem:[#allocation6 + $0x1b80] sm:$0xff]
        %v1163 = vld [vmem:[#allocation6 + $0x1b88] sm:$0xff]
        %v1164 = vld [vmem:[#allocation6 + $0x1b90] sm:$0xff]
        %v1165 = vld [vmem:[#allocation6 + $0x1b98] sm:$0xff]
        %v1166 = vld [vmem:[#allocation6 + $0x1ba0] sm:$0xff]
        %v1167 = vld [vmem:[#allocation6 + $0x1ba8] sm:$0xff]
        %v1168 = vld [vmem:[#allocation6 + $0x1bb0] sm:$0xff]
        %v1169 = vld [vmem:[#allocation6 + $0x1bb8] sm:$0xff]
        %v1170 = vld [vmem:[#allocation6 + $0x1bc0] sm:$0xff]
        %v1171 = vld [vmem:[#allocation6 + $0x1bc8] sm:$0xff]
        %v1172 = vld [vmem:[#allocation6 + $0x1bd0] sm:$0xff]
        %v1173 = vld [vmem:[#allocation6 + $0x1bd8] sm:$0xff]
        %v1174 = vld [vmem:[#allocation6 + $0x1be0] sm:$0xff]
        %v1175 = vld [vmem:[#allocation6 + $0x1be8] sm:$0xff]
        %v1176 = vld [vmem:[#allocation6 + $0x1bf0] sm:$0xff]
        %v1177 = vld [vmem:[#allocation6 + $0x1bf8] sm:$0xff]
        %v1178 = vld [vmem:[#allocation6 + $0x1c00] sm:$0xff]
        %v1179 = vld [vmem:[#allocation6 + $0x1c08] sm:$0xff]
        %v1180 = vld [vmem:[#allocation6 + $0x1c10] sm:$0xff]
        %v1181 = vld [vmem:[#allocation6 + $0x1c18] sm:$0xff]
        %v1182 = vld [vmem:[#allocation6 + $0x1c20] sm:$0xff]
        %v1183 = vld [vmem:[#allocation6 + $0x1c28] sm:$0xff]
        %v1184 = vld [vmem:[#allocation6 + $0x1c30] sm:$0xff]
        %v1185 = vld [vmem:[#allocation6 + $0x1c38] sm:$0xff]
        %v1186 = vld [vmem:[#allocation6 + $0x1c40] sm:$0xff]
        %v1187 = vld [vmem:[#allocation6 + $0x1c48] sm:$0xff]
        %v1188 = vld [vmem:[#allocation6 + $0x1c50] sm:$0xff]
        %v1189 = vld [vmem:[#allocation6 + $0x1c58] sm:$0xff]
        %v1190 = vld [vmem:[#allocation6 + $0x1c60] sm:$0xff]
        %v1191 = vld [vmem:[#allocation6 + $0x1c68] sm:$0xff]
        %v1192 = vld [vmem:[#allocation6 + $0x1c70] sm:$0xff]
        %v1193 = vld [vmem:[#allocation6 + $0x1c78] sm:$0xff]
        %v1194 = vld [vmem:[#allocation6 + $0x1c80] sm:$0xff]
        %v1195 = vld [vmem:[#allocation6 + $0x1c88] sm:$0xff]
        %v1196 = vld [vmem:[#allocation6 + $0x1c90] sm:$0xff]
        %v1197 = vld [vmem:[#allocation6 + $0x1c98] sm:$0xff]
        %v1198 = vld [vmem:[#allocation6 + $0x1ca0] sm:$0xff]
        %v1199 = vld [vmem:[#allocation6 + $0x1ca8] sm:$0xff]
        %v1200 = vld [vmem:[#allocation6 + $0x1cb0] sm:$0xff]
        %v1201 = vld [vmem:[#allocation6 + $0x1cb8] sm:$0xff]
        %v1202 = vld [vmem:[#allocation6 + $0x1cc0] sm:$0xff]
        %v1203 = vld [vmem:[#allocation6 + $0x1cc8] sm:$0xff]
        %v1204 = vld [vmem:[#allocation6 + $0x1cd0] sm:$0xff]
        %v1205 = vld [vmem:[#allocation6 + $0x1cd8] sm:$0xff]
        %v1206 = vld [vmem:[#allocation6 + $0x1ce0] sm:$0xff]
        %v1207 = vld [vmem:[#allocation6 + $0x1ce8] sm:$0xff]
        %v1208 = vld [vmem:[#allocation6 + $0x1cf0] sm:$0xff]
        %v1209 = vld [vmem:[#allocation6 + $0x1cf8] sm:$0xff]
        %v1210 = vld [vmem:[#allocation6 + $0x1d00] sm:$0xff]
        %v1211 = vld [vmem:[#allocation6 + $0x1d08] sm:$0xff]
        %v1212 = vld [vmem:[#allocation6 + $0x1d10] sm:$0xff]
        %v1213 = vld [vmem:[#allocation6 + $0x1d18] sm:$0xff]
        %v1214 = vld [vmem:[#allocation6 + $0x1d20] sm:$0xff]
        %v1215 = vld [vmem:[#allocation6 + $0x1d28] sm:$0xff]
        %v1216 = vld [vmem:[#allocation6 + $0x1d30] sm:$0xff]
        %v1217 = vld [vmem:[#allocation6 + $0x1d38] sm:$0xff]
        %v1218 = vld [vmem:[#allocation6 + $0x1d40] sm:$0xff]
        %v1219 = vld [vmem:[#allocation6 + $0x1d48] sm:$0xff]
        %v1220 = vld [vmem:[#allocation6 + $0x1d50] sm:$0xff]
        %v1221 = vld [vmem:[#allocation6 + $0x1d58] sm:$0xff]
        %v1222 = vld [vmem:[#allocation6 + $0x1d60] sm:$0xff]
        %v1223 = vld [vmem:[#allocation6 + $0x1d68] sm:$0xff]
        %v1224 = vld [vmem:[#allocation6 + $0x1d70] sm:$0xff]
        %v1225 = vld [vmem:[#allocation6 + $0x1d78] sm:$0xff]
        %v1226 = vld [vmem:[#allocation6 + $0x1d80] sm:$0xff]
        %v1227 = vld [vmem:[#allocation6 + $0x1d88] sm:$0xff]
        %v1228 = vld [vmem:[#allocation6 + $0x1d90] sm:$0xff]
        %v1229 = vld [vmem:[#allocation6 + $0x1d98] sm:$0xff]
        %v1230 = vld [vmem:[#allocation6 + $0x1da0] sm:$0xff]
        %v1231 = vld [vmem:[#allocation6 + $0x1da8] sm:$0xff]
        %v1232 = vld [vmem:[#allocation6 + $0x1db0] sm:$0xff]
        %v1233 = vld [vmem:[#allocation6 + $0x1db8] sm:$0xff]
        %v1234 = vld [vmem:[#allocation6 + $0x1dc0] sm:$0xff]
        %v1235 = vld [vmem:[#allocation6 + $0x1dc8] sm:$0xff]
        %v1236 = vld [vmem:[#allocation6 + $0x1dd0] sm:$0xff]
        %v1237 = vld [vmem:[#allocation6 + $0x1dd8] sm:$0xff]
        %v1238 = vld [vmem:[#allocation6 + $0x1de0] sm:$0xff]
        %v1239 = vld [vmem:[#allocation6 + $0x1de8] sm:$0xff]
        %v1240 = vld [vmem:[#allocation6 + $0x1df0] sm:$0xff]
        %v1241 = vld [vmem:[#allocation6 + $0x1df8] sm:$0xff]
        %v1242 = vld [vmem:[#allocation6 + $0x1e00] sm:$0xff]
        %v1243 = vld [vmem:[#allocation6 + $0x1e08] sm:$0xff]
        %v1244 = vld [vmem:[#allocation6 + $0x1e10] sm:$0xff]
        %v1245 = vld [vmem:[#allocation6 + $0x1e18] sm:$0xff]
        %v1246 = vld [vmem:[#allocation6 + $0x1e20] sm:$0xff]
        %v1247 = vld [vmem:[#allocation6 + $0x1e28] sm:$0xff]
        %v1248 = vld [vmem:[#allocation6 + $0x1e30] sm:$0xff]
        %v1249 = vld [vmem:[#allocation6 + $0x1e38] sm:$0xff]
        %v1250 = vld [vmem:[#allocation6 + $0x1e40] sm:$0xff]
        %v1251 = vld [vmem:[#allocation6 + $0x1e48] sm:$0xff]
        %v1252 = vld [vmem:[#allocation6 + $0x1e50] sm:$0xff]
        %v1253 = vld [vmem:[#allocation6 + $0x1e58] sm:$0xff]
        %v1254 = vld [vmem:[#allocation6 + $0x1e60] sm:$0xff]
        %v1255 = vld [vmem:[#allocation6 + $0x1e68] sm:$0xff]
        %v1256 = vld [vmem:[#allocation6 + $0x1e70] sm:$0xff]
        %v1257 = vld [vmem:[#allocation6 + $0x1e78] sm:$0xff]
        %v1258 = vld [vmem:[#allocation6 + $0x1e80] sm:$0xff]
        %v1259 = vld [vmem:[#allocation6 + $0x1e88] sm:$0xff]
        %v1260 = vld [vmem:[#allocation6 + $0x1e90] sm:$0xff]
        %v1261 = vld [vmem:[#allocation6 + $0x1e98] sm:$0xff]
        %v1262 = vld [vmem:[#allocation6 + $0x1ea0] sm:$0xff]
        %v1263 = vld [vmem:[#allocation6 + $0x1ea8] sm:$0xff]
        %v1264 = vld [vmem:[#allocation6 + $0x1eb0] sm:$0xff]
        %v1265 = vld [vmem:[#allocation6 + $0x1eb8] sm:$0xff]
        %v1266 = vld [vmem:[#allocation6 + $0x1ec0] sm:$0xff]
        %v1267 = vld [vmem:[#allocation6 + $0x1ec8] sm:$0xff]
        %v1268 = vld [vmem:[#allocation6 + $0x1ed0] sm:$0xff]
        %v1269 = vld [vmem:[#allocation6 + $0x1ed8] sm:$0xff]
        %v1270 = vld [vmem:[#allocation6 + $0x1ee0] sm:$0xff]
        %v1271 = vld [vmem:[#allocation6 + $0x1ee8] sm:$0xff]
        %v1272 = vld [vmem:[#allocation6 + $0x1ef0] sm:$0xff]
        %v1273 = vld [vmem:[#allocation6 + $0x1ef8] sm:$0xff]
        %v1274 = vld [vmem:[#allocation6 + $0x1f00] sm:$0xff]
        %v1275 = vld [vmem:[#allocation6 + $0x1f08] sm:$0xff]
        %v1276 = vld [vmem:[#allocation6 + $0x1f10] sm:$0xff]
        %v1277 = vld [vmem:[#allocation6 + $0x1f18] sm:$0xff]
        %v1278 = vld [vmem:[#allocation6 + $0x1f20] sm:$0xff]
        %v1279 = vld [vmem:[#allocation6 + $0x1f28] sm:$0xff]
        %v1280 = vld [vmem:[#allocation6 + $0x1f30] sm:$0xff]
        %v1281 = vld [vmem:[#allocation6 + $0x1f38] sm:$0xff]
        %v1282 = vld [vmem:[#allocation6 + $0x1f40] sm:$0xff]
        %v1283 = vld [vmem:[#allocation6 + $0x1f48] sm:$0xff]
        %v1284 = vld [vmem:[#allocation6 + $0x1f50] sm:$0xff]
        %v1285 = vld [vmem:[#allocation6 + $0x1f58] sm:$0xff]
        %v1286 = vld [vmem:[#allocation6 + $0x1f60] sm:$0xff]
        %v1287 = vld [vmem:[#allocation6 + $0x1f68] sm:$0xff]
        %v1288 = vld [vmem:[#allocation6 + $0x1f70] sm:$0xff]
        %v1289 = vld [vmem:[#allocation6 + $0x1f78] sm:$0xff]
        %v1290 = vld [vmem:[#allocation6 + $0x1f80] sm:$0xff]
        %v1291 = vld [vmem:[#allocation6 + $0x1f88] sm:$0xff]
        %v1292 = vld [vmem:[#allocation6 + $0x1f90] sm:$0xff]
        %v1293 = vld [vmem:[#allocation6 + $0x1f98] sm:$0xff]
        %v1294 = vld [vmem:[#allocation6 + $0x1fa0] sm:$0xff]
        %v1295 = vld [vmem:[#allocation6 + $0x1fa8] sm:$0xff]
        %v1296 = vld [vmem:[#allocation6 + $0x1fb0] sm:$0xff]
        %v1297 = vld [vmem:[#allocation6 + $0x1fb8] sm:$0xff]
        %v1298 = vld [vmem:[#allocation6 + $0x1fc0] sm:$0xff]
        %v1299 = vld [vmem:[#allocation6 + $0x1fc8] sm:$0xff]
        %v1300 = vld [vmem:[#allocation6 + $0x1fd0] sm:$0xff]
        %v1301 = vld [vmem:[#allocation6 + $0x1fd8] sm:$0xff]
        %v1302 = vld [vmem:[#allocation6 + $0x1fe0] sm:$0xff]
        %v1303 = vld [vmem:[#allocation6 + $0x1fe8] sm:$0xff]
        %v1304 = vld [vmem:[#allocation6 + $0x1ff0] sm:$0xff]
        %v1305 = vld [vmem:[#allocation6 + $0x1ff8] sm:$0xff]
        %v1306 = vld [vmem:[#allocation2] sm:$0xff]
        %vm1307 = vcmask 97280
        %v1309 = vsel %vm1307, %v1306, 0
        %vm1311 = vcmask 1043456
        %v1313 = vsel %vm1311, %v280, 0
        %v1316 = vsel %vm1311, %v281, 0
        %1318 = vmatprep.subr.mxu0 0.0
        %1319 = vmatpush1.msra.mxu0 0.0
        %1320 = vmatprep.subr.mxu0 0.0
        %1321 = vmatpush1.msra.mxu0 0.0
        %1322 = vmatprep.subr.mxu0 0.0
        %1323 = vmatpush1.msra.mxu0 0.0
        %1324 = vmatprep.subr.mxu0 0.0
        %1325 = vmatpush1.msra.mxu0 0.0
        %1326 = vmatprep.subr.mxu0 0.0
        %1327 = vmatpush1.msra.mxu0 0.0
        %1328 = vmatprep.subr.mxu0 0.0
        %1329 = vmatpush1.msra.mxu0 0.0
        %1330 = vmatprep.subr.mxu0 0.0
        %1331 = vmatpush1.msra.mxu0 0.0
        %1332 = vmatprep.subr.mxu0 0.0
        %1333 = vmatpush1.msra.mxu0 0.0
        %1334 = vmatprep.subr.mxu0 0.0
        %1335 = vmatpush1.msra.mxu0 0.0
        %1336 = vmatprep.subr.mxu0 0.0
        %1337 = vmatpush1.msra.mxu0 0.0
        %1338 = vmatprep.subr.mxu0 0.0
        %1339 = vmatpush1.msra.mxu0 0.0
        %1340 = vmatprep.subr.mxu0 0.0
        %1341 = vmatpush1.msra.mxu0 0.0
        %1342 = vmatprep.subr.mxu0 0.0
        %1343 = vmatpush1.msra.mxu0 0.0
        %1344 = vmatprep.subr.mxu0 0.0
        %1345 = vmatpush1.msra.mxu0 0.0
        %1346 = vmatprep.subr.mxu0 %v1316
        %1347 = vmatpush1.msra.mxu0 %v1313
        %1348 = vmatprep.subr.mxu0 %v279
        %1349 = vmatpush1.msra.mxu0 %v278
        %1350 = vmatprep.subr.mxu0 0.0
        %1351 = vmatpush2.msra.mxu0 0.0
        %1352 = vmatprep.subr.mxu0 0.0
        %1353 = vmatpush2.msra.mxu0 0.0
        %1354 = vmatprep.subr.mxu0 0.0
        %1355 = vmatpush2.msra.mxu0 0.0
        %1356 = vmatprep.subr.mxu0 0.0
        %1357 = vmatpush2.msra.mxu0 0.0
        %1358 = vmatprep.subr.mxu0 0.0
        %1359 = vmatpush2.msra.mxu0 0.0
        %1360 = vmatprep.subr.mxu0 0.0
        %1361 = vmatpush2.msra.mxu0 0.0
        %1362 = vmatprep.subr.mxu0 0.0
        %1363 = vmatpush2.msra.mxu0 0.0
        %1364 = vmatprep.subr.mxu0 0.0
        %1365 = vmatpush2.msra.mxu0 0.0
        %1366 = vmatprep.subr.mxu0 0.0
        %1367 = vmatpush2.msra.mxu0 0.0
        %1368 = vmatprep.subr.mxu0 0.0
        %1369 = vmatpush2.msra.mxu0 0.0
        %1370 = vmatprep.subr.mxu0 0.0
        %1371 = vmatpush2.msra.mxu0 0.0
        %1372 = vmatprep.subr.mxu0 0.0
        %1373 = vmatpush2.msra.mxu0 0.0
        %1374 = vmatprep.subr.mxu0 0.0
        %1375 = vmatpush2.msra.mxu0 0.0
        %1376 = vmatprep.subr.mxu0 0.0
        %1377 = vmatpush2.msra.mxu0 0.0
        %1378 = vmatprep.subr.mxu0 0.0
        %1379 = vmatpush2.msra.mxu0 0.0
        %1380 = vmatprep.subr.mxu0 0.0
        %1381 = vmatpush2.msra.mxu0 0.0
        %1382 = vmatprep.mubr.f32.mxu0 0.0
        %1383 = vmatmul.mubr.f32.gmra.mxu0 %v1309
        %v1384 = vpop.f32.mrf.mxu0
        %v1385 = vadd.f32 0.0, %v1384
        %v1386 = vpop.f32.mrf.mxu0
        %v1387 = vadd.f32 0.0, %v1386
        %1388 = vdwg.mxu0
        %v1389 = vmax.f32 %v1385, 0.0
        %v1390 = vmax.f32 %v1387, 0.0
        %v1391 = vld [vmem:[#allocation4] sm:$0xf]
        %vm1392 = vcmask 64512
        %v1394 = vsel %vm1392, %v1391, 0
        %1396 = vmatprep.subr.mxu0 0.0
        %1397 = vmatpush1.msra.mxu0 0.0
        %1398 = vmatprep.subr.mxu0 0.0
        %1399 = vmatpush1.msra.mxu0 0.0
        %1400 = vmatprep.subr.mxu0 0.0
        %1401 = vmatpush1.msra.mxu0 0.0
        %1402 = vmatprep.subr.mxu0 0.0
        %1403 = vmatpush1.msra.mxu0 0.0
        %1404 = vmatprep.subr.mxu0 0.0
        %1405 = vmatpush1.msra.mxu0 0.0
        %1406 = vmatprep.subr.mxu0 0.0
        %1407 = vmatpush1.msra.mxu0 0.0
        %1408 = vmatprep.subr.mxu0 0.0
        %1409 = vmatpush1.msra.mxu0 0.0
        %1410 = vmatprep.subr.mxu0 0.0
        %1411 = vmatpush1.msra.mxu0 0.0
        %1412 = vmatprep.subr.mxu0 0.0
        %1413 = vmatpush1.msra.mxu0 0.0
        %1414 = vmatprep.subr.mxu0 0.0
        %1415 = vmatpush1.msra.mxu0 0.0
        %1416 = vmatprep.subr.mxu0 0.0
        %1417 = vmatpush1.msra.mxu0 0.0
        %1418 = vmatprep.subr.mxu0 0.0
        %1419 = vmatpush1.msra.mxu0 0.0
        %1420 = vmatprep.subr.mxu0 0.0
        %1421 = vmatpush1.msra.mxu0 0.0
        %1422 = vmatprep.subr.mxu0 0.0
        %1423 = vmatpush1.msra.mxu0 0.0
        %1424 = vmatprep.subr.mxu0 0.0
        %1425 = vmatpush1.msra.mxu0 0.0
        %1426 = vmatprep.subr.mxu0 %v1390
        %1427 = vmatpush1.msra.mxu0 %v1389
        %1428 = vmatprep.subr.mxu0 0.0
        %1429 = vmatpush2.msra.mxu0 0.0
        %1430 = vmatprep.subr.mxu0 0.0
        %1431 = vmatpush2.msra.mxu0 0.0
        %1432 = vmatprep.subr.mxu0 0.0
        %1433 = vmatpush2.msra.mxu0 0.0
        %1434 = vmatprep.subr.mxu0 0.0
        %1435 = vmatpush2.msra.mxu0 0.0
        %1436 = vmatprep.subr.mxu0 0.0
        %1437 = vmatpush2.msra.mxu0 0.0
        %1438 = vmatprep.subr.mxu0 0.0
        %1439 = vmatpush2.msra.mxu0 0.0
        %1440 = vmatprep.subr.mxu0 0.0
        %1441 = vmatpush2.msra.mxu0 0.0
        %1442 = vmatprep.subr.mxu0 0.0
        %1443 = vmatpush2.msra.mxu0 0.0
        %1444 = vmatprep.subr.mxu0 0.0
        %1445 = vmatpush2.msra.mxu0 0.0
        %1446 = vmatprep.subr.mxu0 0.0
        %1447 = vmatpush2.msra.mxu0 0.0
        %1448 = vmatprep.subr.mxu0 0.0
        %1449 = vmatpush2.msra.mxu0 0.0
        %1450 = vmatprep.subr.mxu0 0.0
        %1451 = vmatpush2.msra.mxu0 0.0
        %1452 = vmatprep.subr.mxu0 0.0
        %1453 = vmatpush2.msra.mxu0 0.0
        %1454 = vmatprep.subr.mxu0 0.0
        %1455 = vmatpush2.msra.mxu0 0.0
        %1456 = vmatprep.subr.mxu0 0.0
        %1457 = vmatpush2.msra.mxu0 0.0
        %1458 = vmatprep.subr.mxu0 0.0
        %1459 = vmatpush2.msra.mxu0 0.0
        %1460 = vmatprep.mubr.f32.mxu0 0.0
        %1461 = vmatmul.mubr.f32.gmra.mxu0 %v1394
        %v1462 = vpop.f32.mrf.mxu0
        %v1463 = vadd.f32 0.0, %v1462
        %v1464 = vpop.f32.mrf.mxu0
        %v1465 = vadd.f32 0.0, %v1464
        %1466 = vdwg.mxu0
        %v1469 = vrot.slane %v278, 4
        %v1470 = vrot.slane %v279, 4
        %1473 = vmatprep.subr.mxu0 %v763
        %1474 = vmatpush1.msra.mxu0 %v762
        %1475 = vmatprep.subr.mxu0 %v731
        %1476 = vmatpush1.msra.mxu0 %v730
        %1477 = vmatprep.subr.mxu0 %v699
        %1478 = vmatpush1.msra.mxu0 %v698
        %1479 = vmatprep.subr.mxu0 %v667
        %1480 = vmatpush1.msra.mxu0 %v666
        %1481 = vmatprep.subr.mxu0 %v635
        %1482 = vmatpush1.msra.mxu0 %v634
        %1483 = vmatprep.subr.mxu0 %v603
        %1484 = vmatpush1.msra.mxu0 %v602
        %1485 = vmatprep.subr.mxu0 %v571
        %1486 = vmatpush1.msra.mxu0 %v570
        %1487 = vmatprep.subr.mxu0 %v539
        %1488 = vmatpush1.msra.mxu0 %v538
        %1489 = vmatprep.subr.mxu0 %v507
        %1490 = vmatpush1.msra.mxu0 %v506
        %1491 = vmatprep.subr.mxu0 %v475
        %1492 = vmatpush1.msra.mxu0 %v474
        %1493 = vmatprep.subr.mxu0 %v443
        %1494 = vmatpush1.msra.mxu0 %v442
        %1495 = vmatprep.subr.mxu0 %v411
        %1496 = vmatpush1.msra.mxu0 %v410
        %1497 = vmatprep.subr.mxu0 %v379
        %1498 = vmatpush1.msra.mxu0 %v378
        %1499 = vmatprep.subr.mxu0 %v347
        %1500 = vmatpush1.msra.mxu0 %v346
        %1501 = vmatprep.subr.mxu0 %v315
        %1502 = vmatpush1.msra.mxu0 %v314
        %1503 = vmatprep.subr.mxu0 %v283
        %1504 = vmatpush1.msra.mxu0 %v282
        %1505 = vmatprep.subr.mxu0 %v1275
        %1506 = vmatpush2.msra.mxu0 %v1274
        %1507 = vmatprep.subr.mxu0 %v1243
        %1508 = vmatpush2.msra.mxu0 %v1242
        %1509 = vmatprep.subr.mxu0 %v1211
        %1510 = vmatpush2.msra.mxu0 %v1210
        %1511 = vmatprep.subr.mxu0 %v1179
        %1512 = vmatpush2.msra.mxu0 %v1178
        %1513 = vmatprep.subr.mxu0 %v1147
        %1514 = vmatpush2.msra.mxu0 %v1146
        %1515 = vmatprep.subr.mxu0 %v1115
        %1516 = vmatpush2.msra.mxu0 %v1114
        %1517 = vmatprep.subr.mxu0 %v1083
        %1518 = vmatpush2.msra.mxu0 %v1082
        %1519 = vmatprep.subr.mxu0 %v1051
        %1520 = vmatpush2.msra.mxu0 %v1050
        %1521 = vmatprep.subr.mxu0 %v1019
        %1522 = vmatpush2.msra.mxu0 %v1018
        %1523 = vmatprep.subr.mxu0 %v987
        %1524 = vmatpush2.msra.mxu0 %v986
        %1525 = vmatprep.subr.mxu0 %v955
        %1526 = vmatpush2.msra.mxu0 %v954
        %1527 = vmatprep.subr.mxu0 %v923
        %1528 = vmatpush2.msra.mxu0 %v922
        %1529 = vmatprep.subr.mxu0 %v891
        %1530 = vmatpush2.msra.mxu0 %v890
        %1531 = vmatprep.subr.mxu0 %v859
        %1532 = vmatpush2.msra.mxu0 %v858
        %1533 = vmatprep.subr.mxu0 %v827
        %1534 = vmatpush2.msra.mxu0 %v826
        %1535 = vmatprep.subr.mxu0 %v795
        %1536 = vmatpush2.msra.mxu0 %v794
        %1537 = vmatprep.mubr.f32.mxu0 %v1470
        %1538 = vmatmul.mubr.f32.gmra.mxu0 %v1469
        %v1539 = vpop.f32.mrf.mxu0
        %v1540 = vadd.f32 0.0, %v1539
        %v1541 = vpop.f32.mrf.mxu0
        %v1542 = vadd.f32 0.0, %v1541
        %1543 = vdwg.mxu0
        %1544 = vmatprep.subr.mxu0 %v765
        %1545 = vmatpush1.msra.mxu0 %v764
        %1546 = vmatprep.subr.mxu0 %v733
        %1547 = vmatpush1.msra.mxu0 %v732
        %1548 = vmatprep.subr.mxu0 %v701
        %1549 = vmatpush1.msra.mxu0 %v700
        %1550 = vmatprep.subr.mxu0 %v669
        %1551 = vmatpush1.msra.mxu0 %v668
        %1552 = vmatprep.subr.mxu0 %v637
        %1553 = vmatpush1.msra.mxu0 %v636
        %1554 = vmatprep.subr.mxu0 %v605
        %1555 = vmatpush1.msra.mxu0 %v604
        %1556 = vmatprep.subr.mxu0 %v573
        %1557 = vmatpush1.msra.mxu0 %v572
        %1558 = vmatprep.subr.mxu0 %v541
        %1559 = vmatpush1.msra.mxu0 %v540
        %1560 = vmatprep.subr.mxu0 %v509
        %1561 = vmatpush1.msra.mxu0 %v508
        %1562 = vmatprep.subr.mxu0 %v477
        %1563 = vmatpush1.msra.mxu0 %v476
        %1564 = vmatprep.subr.mxu0 %v445
        %1565 = vmatpush1.msra.mxu0 %v444
        %1566 = vmatprep.subr.mxu0 %v413
        %1567 = vmatpush1.msra.mxu0 %v412
        %1568 = vmatprep.subr.mxu0 %v381
        %1569 = vmatpush1.msra.mxu0 %v380
        %1570 = vmatprep.subr.mxu0 %v349
        %1571 = vmatpush1.msra.mxu0 %v348
        %1572 = vmatprep.subr.mxu0 %v317
        %1573 = vmatpush1.msra.mxu0 %v316
        %1574 = vmatprep.subr.mxu0 %v285
        %1575 = vmatpush1.msra.mxu0 %v284
        %1576 = vmatprep.subr.mxu0 %v1277
        %1577 = vmatpush2.msra.mxu0 %v1276
        %1578 = vmatprep.subr.mxu0 %v1245
        %1579 = vmatpush2.msra.mxu0 %v1244
        %1580 = vmatprep.subr.mxu0 %v1213
        %1581 = vmatpush2.msra.mxu0 %v1212
        %1582 = vmatprep.subr.mxu0 %v1181
        %1583 = vmatpush2.msra.mxu0 %v1180
        %1584 = vmatprep.subr.mxu0 %v1149
        %1585 = vmatpush2.msra.mxu0 %v1148
        %1586 = vmatprep.subr.mxu0 %v1117
        %1587 = vmatpush2.msra.mxu0 %v1116
        %1588 = vmatprep.subr.mxu0 %v1085
        %1589 = vmatpush2.msra.mxu0 %v1084
        %1590 = vmatprep.subr.mxu0 %v1053
        %1591 = vmatpush2.msra.mxu0 %v1052
        %1592 = vmatprep.subr.mxu0 %v1021
        %1593 = vmatpush2.msra.mxu0 %v1020
        %1594 = vmatprep.subr.mxu0 %v989
        %1595 = vmatpush2.msra.mxu0 %v988
        %1596 = vmatprep.subr.mxu0 %v957
        %1597 = vmatpush2.msra.mxu0 %v956
        %1598 = vmatprep.subr.mxu0 %v925
        %1599 = vmatpush2.msra.mxu0 %v924
        %1600 = vmatprep.subr.mxu0 %v893
        %1601 = vmatpush2.msra.mxu0 %v892
        %1602 = vmatprep.subr.mxu0 %v861
        %1603 = vmatpush2.msra.mxu0 %v860
        %1604 = vmatprep.subr.mxu0 %v829
        %1605 = vmatpush2.msra.mxu0 %v828
        %1606 = vmatprep.subr.mxu0 %v797
        %1607 = vmatpush2.msra.mxu0 %v796
        %1608 = vmatprep.mubr.f32.mxu0 %v1470
        %1609 = vmatmul.mubr.f32.gmra.mxu0 %v1469
        %v1610 = vpop.f32.mrf.mxu0
        %v1611 = vadd.f32 0.0, %v1610
        %v1612 = vpop.f32.mrf.mxu0
        %v1613 = vadd.f32 0.0, %v1612
        %1614 = vdwg.mxu0
        %1615 = vmatprep.subr.mxu0 %v767
        %1616 = vmatpush1.msra.mxu0 %v766
        %1617 = vmatprep.subr.mxu0 %v735
        %1618 = vmatpush1.msra.mxu0 %v734
        %1619 = vmatprep.subr.mxu0 %v703
        %1620 = vmatpush1.msra.mxu0 %v702
        %1621 = vmatprep.subr.mxu0 %v671
        %1622 = vmatpush1.msra.mxu0 %v670
        %1623 = vmatprep.subr.mxu0 %v639
        %1624 = vmatpush1.msra.mxu0 %v638
        %1625 = vmatprep.subr.mxu0 %v607
        %1626 = vmatpush1.msra.mxu0 %v606
        %1627 = vmatprep.subr.mxu0 %v575
        %1628 = vmatpush1.msra.mxu0 %v574
        %1629 = vmatprep.subr.mxu0 %v543
        %1630 = vmatpush1.msra.mxu0 %v542
        %1631 = vmatprep.subr.mxu0 %v511
        %1632 = vmatpush1.msra.mxu0 %v510
        %1633 = vmatprep.subr.mxu0 %v479
        %1634 = vmatpush1.msra.mxu0 %v478
        %1635 = vmatprep.subr.mxu0 %v447
        %1636 = vmatpush1.msra.mxu0 %v446
        %1637 = vmatprep.subr.mxu0 %v415
        %1638 = vmatpush1.msra.mxu0 %v414
        %1639 = vmatprep.subr.mxu0 %v383
        %1640 = vmatpush1.msra.mxu0 %v382
        %1641 = vmatprep.subr.mxu0 %v351
        %1642 = vmatpush1.msra.mxu0 %v350
        %1643 = vmatprep.subr.mxu0 %v319
        %1644 = vmatpush1.msra.mxu0 %v318
        %1645 = vmatprep.subr.mxu0 %v287
        %1646 = vmatpush1.msra.mxu0 %v286
        %1647 = vmatprep.subr.mxu0 %v1279
        %1648 = vmatpush2.msra.mxu0 %v1278
        %1649 = vmatprep.subr.mxu0 %v1247
        %1650 = vmatpush2.msra.mxu0 %v1246
        %1651 = vmatprep.subr.mxu0 %v1215
        %1652 = vmatpush2.msra.mxu0 %v1214
        %1653 = vmatprep.subr.mxu0 %v1183
        %1654 = vmatpush2.msra.mxu0 %v1182
        %1655 = vmatprep.subr.mxu0 %v1151
        %1656 = vmatpush2.msra.mxu0 %v1150
        %1657 = vmatprep.subr.mxu0 %v1119
        %1658 = vmatpush2.msra.mxu0 %v1118
        %1659 = vmatprep.subr.mxu0 %v1087
        %1660 = vmatpush2.msra.mxu0 %v1086
        %1661 = vmatprep.subr.mxu0 %v1055
        %1662 = vmatpush2.msra.mxu0 %v1054
        %1663 = vmatprep.subr.mxu0 %v1023
        %1664 = vmatpush2.msra.mxu0 %v1022
        %1665 = vmatprep.subr.mxu0 %v991
        %1666 = vmatpush2.msra.mxu0 %v990
        %1667 = vmatprep.subr.mxu0 %v959
        %1668 = vmatpush2.msra.mxu0 %v958
        %1669 = vmatprep.subr.mxu0 %v927
        %1670 = vmatpush2.msra.mxu0 %v926
        %1671 = vmatprep.subr.mxu0 %v895
        %1672 = vmatpush2.msra.mxu0 %v894
        %1673 = vmatprep.subr.mxu0 %v863
        %1674 = vmatpush2.msra.mxu0 %v862
        %1675 = vmatprep.subr.mxu0 %v831
        %1676 = vmatpush2.msra.mxu0 %v830
        %1677 = vmatprep.subr.mxu0 %v799
        %1678 = vmatpush2.msra.mxu0 %v798
        %1679 = vmatprep.mubr.f32.mxu0 %v1470
        %1680 = vmatmul.mubr.f32.gmra.mxu0 %v1469
        %v1681 = vpop.f32.mrf.mxu0
        %v1682 = vadd.f32 0.0, %v1681
        %v1683 = vpop.f32.mrf.mxu0
        %v1684 = vadd.f32 0.0, %v1683
        %1685 = vdwg.mxu0
        %1686 = vmatprep.subr.mxu0 %v769
        %1687 = vmatpush1.msra.mxu0 %v768
        %1688 = vmatprep.subr.mxu0 %v737
        %1689 = vmatpush1.msra.mxu0 %v736
        %1690 = vmatprep.subr.mxu0 %v705
        %1691 = vmatpush1.msra.mxu0 %v704
        %1692 = vmatprep.subr.mxu0 %v673
        %1693 = vmatpush1.msra.mxu0 %v672
        %1694 = vmatprep.subr.mxu0 %v641
        %1695 = vmatpush1.msra.mxu0 %v640
        %1696 = vmatprep.subr.mxu0 %v609
        %1697 = vmatpush1.msra.mxu0 %v608
        %1698 = vmatprep.subr.mxu0 %v577
        %1699 = vmatpush1.msra.mxu0 %v576
        %1700 = vmatprep.subr.mxu0 %v545
        %1701 = vmatpush1.msra.mxu0 %v544
        %1702 = vmatprep.subr.mxu0 %v513
        %1703 = vmatpush1.msra.mxu0 %v512
        %1704 = vmatprep.subr.mxu0 %v481
        %1705 = vmatpush1.msra.mxu0 %v480
        %1706 = vmatprep.subr.mxu0 %v449
        %1707 = vmatpush1.msra.mxu0 %v448
        %1708 = vmatprep.subr.mxu0 %v417
        %1709 = vmatpush1.msra.mxu0 %v416
        %1710 = vmatprep.subr.mxu0 %v385
        %1711 = vmatpush1.msra.mxu0 %v384
        %1712 = vmatprep.subr.mxu0 %v353
        %1713 = vmatpush1.msra.mxu0 %v352
        %1714 = vmatprep.subr.mxu0 %v321
        %1715 = vmatpush1.msra.mxu0 %v320
        %1716 = vmatprep.subr.mxu0 %v289
        %1717 = vmatpush1.msra.mxu0 %v288
        %1718 = vmatprep.subr.mxu0 %v1281
        %1719 = vmatpush2.msra.mxu0 %v1280
        %1720 = vmatprep.subr.mxu0 %v1249
        %1721 = vmatpush2.msra.mxu0 %v1248
        %1722 = vmatprep.subr.mxu0 %v1217
        %1723 = vmatpush2.msra.mxu0 %v1216
        %1724 = vmatprep.subr.mxu0 %v1185
        %1725 = vmatpush2.msra.mxu0 %v1184
        %1726 = vmatprep.subr.mxu0 %v1153
        %1727 = vmatpush2.msra.mxu0 %v1152
        %1728 = vmatprep.subr.mxu0 %v1121
        %1729 = vmatpush2.msra.mxu0 %v1120
        %1730 = vmatprep.subr.mxu0 %v1089
        %1731 = vmatpush2.msra.mxu0 %v1088
        %1732 = vmatprep.subr.mxu0 %v1057
        %1733 = vmatpush2.msra.mxu0 %v1056
        %1734 = vmatprep.subr.mxu0 %v1025
        %1735 = vmatpush2.msra.mxu0 %v1024
        %1736 = vmatprep.subr.mxu0 %v993
        %1737 = vmatpush2.msra.mxu0 %v992
        %1738 = vmatprep.subr.mxu0 %v961
        %1739 = vmatpush2.msra.mxu0 %v960
        %1740 = vmatprep.subr.mxu0 %v929
        %1741 = vmatpush2.msra.mxu0 %v928
        %1742 = vmatprep.subr.mxu0 %v897
        %1743 = vmatpush2.msra.mxu0 %v896
        %1744 = vmatprep.subr.mxu0 %v865
        %1745 = vmatpush2.msra.mxu0 %v864
        %1746 = vmatprep.subr.mxu0 %v833
        %1747 = vmatpush2.msra.mxu0 %v832
        %1748 = vmatprep.subr.mxu0 %v801
        %1749 = vmatpush2.msra.mxu0 %v800
        %1750 = vmatprep.mubr.f32.mxu0 %v1470
        %1751 = vmatmul.mubr.f32.gmra.mxu0 %v1469
        %v1752 = vpop.f32.mrf.mxu0
        %v1753 = vadd.f32 0.0, %v1752
        %v1754 = vpop.f32.mrf.mxu0
        %v1755 = vadd.f32 0.0, %v1754
        %1756 = vdwg.mxu0
        %1757 = vmatprep.subr.mxu0 %v771
        %1758 = vmatpush1.msra.mxu0 %v770
        %1759 = vmatprep.subr.mxu0 %v739
        %1760 = vmatpush1.msra.mxu0 %v738
        %1761 = vmatprep.subr.mxu0 %v707
        %1762 = vmatpush1.msra.mxu0 %v706
        %1763 = vmatprep.subr.mxu0 %v675
        %1764 = vmatpush1.msra.mxu0 %v674
        %1765 = vmatprep.subr.mxu0 %v643
        %1766 = vmatpush1.msra.mxu0 %v642
        %1767 = vmatprep.subr.mxu0 %v611
        %1768 = vmatpush1.msra.mxu0 %v610
        %1769 = vmatprep.subr.mxu0 %v579
        %1770 = vmatpush1.msra.mxu0 %v578
        %1771 = vmatprep.subr.mxu0 %v547
        %1772 = vmatpush1.msra.mxu0 %v546
        %1773 = vmatprep.subr.mxu0 %v515
        %1774 = vmatpush1.msra.mxu0 %v514
        %1775 = vmatprep.subr.mxu0 %v483
        %1776 = vmatpush1.msra.mxu0 %v482
        %1777 = vmatprep.subr.mxu0 %v451
        %1778 = vmatpush1.msra.mxu0 %v450
        %1779 = vmatprep.subr.mxu0 %v419
        %1780 = vmatpush1.msra.mxu0 %v418
        %1781 = vmatprep.subr.mxu0 %v387
        %1782 = vmatpush1.msra.mxu0 %v386
        %1783 = vmatprep.subr.mxu0 %v355
        %1784 = vmatpush1.msra.mxu0 %v354
        %1785 = vmatprep.subr.mxu0 %v323
        %1786 = vmatpush1.msra.mxu0 %v322
        %1787 = vmatprep.subr.mxu0 %v291
        %1788 = vmatpush1.msra.mxu0 %v290
        %1789 = vmatprep.subr.mxu0 %v1283
        %1790 = vmatpush2.msra.mxu0 %v1282
        %1791 = vmatprep.subr.mxu0 %v1251
        %1792 = vmatpush2.msra.mxu0 %v1250
        %1793 = vmatprep.subr.mxu0 %v1219
        %1794 = vmatpush2.msra.mxu0 %v1218
        %1795 = vmatprep.subr.mxu0 %v1187
        %1796 = vmatpush2.msra.mxu0 %v1186
        %1797 = vmatprep.subr.mxu0 %v1155
        %1798 = vmatpush2.msra.mxu0 %v1154
        %1799 = vmatprep.subr.mxu0 %v1123
        %1800 = vmatpush2.msra.mxu0 %v1122
        %1801 = vmatprep.subr.mxu0 %v1091
        %1802 = vmatpush2.msra.mxu0 %v1090
        %1803 = vmatprep.subr.mxu0 %v1059
        %1804 = vmatpush2.msra.mxu0 %v1058
        %1805 = vmatprep.subr.mxu0 %v1027
        %1806 = vmatpush2.msra.mxu0 %v1026
        %1807 = vmatprep.subr.mxu0 %v995
        %1808 = vmatpush2.msra.mxu0 %v994
        %1809 = vmatprep.subr.mxu0 %v963
        %1810 = vmatpush2.msra.mxu0 %v962
        %1811 = vmatprep.subr.mxu0 %v931
        %1812 = vmatpush2.msra.mxu0 %v930
        %1813 = vmatprep.subr.mxu0 %v899
        %1814 = vmatpush2.msra.mxu0 %v898
        %1815 = vmatprep.subr.mxu0 %v867
        %1816 = vmatpush2.msra.mxu0 %v866
        %1817 = vmatprep.subr.mxu0 %v835
        %1818 = vmatpush2.msra.mxu0 %v834
        %1819 = vmatprep.subr.mxu0 %v803
        %1820 = vmatpush2.msra.mxu0 %v802
        %1821 = vmatprep.mubr.f32.mxu0 %v1470
        %1822 = vmatmul.mubr.f32.gmra.mxu0 %v1469
        %v1823 = vpop.f32.mrf.mxu0
        %v1824 = vadd.f32 0.0, %v1823
        %v1825 = vpop.f32.mrf.mxu0
        %v1826 = vadd.f32 0.0, %v1825
        %1827 = vdwg.mxu0
        %1828 = vmatprep.subr.mxu0 %v773
        %1829 = vmatpush1.msra.mxu0 %v772
        %1830 = vmatprep.subr.mxu0 %v741
        %1831 = vmatpush1.msra.mxu0 %v740
        %1832 = vmatprep.subr.mxu0 %v709
        %1833 = vmatpush1.msra.mxu0 %v708
        %1834 = vmatprep.subr.mxu0 %v677
        %1835 = vmatpush1.msra.mxu0 %v676
        %1836 = vmatprep.subr.mxu0 %v645
        %1837 = vmatpush1.msra.mxu0 %v644
        %1838 = vmatprep.subr.mxu0 %v613
        %1839 = vmatpush1.msra.mxu0 %v612
        %1840 = vmatprep.subr.mxu0 %v581
        %1841 = vmatpush1.msra.mxu0 %v580
        %1842 = vmatprep.subr.mxu0 %v549
        %1843 = vmatpush1.msra.mxu0 %v548
        %1844 = vmatprep.subr.mxu0 %v517
        %1845 = vmatpush1.msra.mxu0 %v516
        %1846 = vmatprep.subr.mxu0 %v485
        %1847 = vmatpush1.msra.mxu0 %v484
        %1848 = vmatprep.subr.mxu0 %v453
        %1849 = vmatpush1.msra.mxu0 %v452
        %1850 = vmatprep.subr.mxu0 %v421
        %1851 = vmatpush1.msra.mxu0 %v420
        %1852 = vmatprep.subr.mxu0 %v389
        %1853 = vmatpush1.msra.mxu0 %v388
        %1854 = vmatprep.subr.mxu0 %v357
        %1855 = vmatpush1.msra.mxu0 %v356
        %1856 = vmatprep.subr.mxu0 %v325
        %1857 = vmatpush1.msra.mxu0 %v324
        %1858 = vmatprep.subr.mxu0 %v293
        %1859 = vmatpush1.msra.mxu0 %v292
        %1860 = vmatprep.subr.mxu0 %v1285
        %1861 = vmatpush2.msra.mxu0 %v1284
        %1862 = vmatprep.subr.mxu0 %v1253
        %1863 = vmatpush2.msra.mxu0 %v1252
        %1864 = vmatprep.subr.mxu0 %v1221
        %1865 = vmatpush2.msra.mxu0 %v1220
        %1866 = vmatprep.subr.mxu0 %v1189
        %1867 = vmatpush2.msra.mxu0 %v1188
        %1868 = vmatprep.subr.mxu0 %v1157
        %1869 = vmatpush2.msra.mxu0 %v1156
        %1870 = vmatprep.subr.mxu0 %v1125
        %1871 = vmatpush2.msra.mxu0 %v1124
        %1872 = vmatprep.subr.mxu0 %v1093
        %1873 = vmatpush2.msra.mxu0 %v1092
        %1874 = vmatprep.subr.mxu0 %v1061
        %1875 = vmatpush2.msra.mxu0 %v1060
        %1876 = vmatprep.subr.mxu0 %v1029
        %1877 = vmatpush2.msra.mxu0 %v1028
        %1878 = vmatprep.subr.mxu0 %v997
        %1879 = vmatpush2.msra.mxu0 %v996
        %1880 = vmatprep.subr.mxu0 %v965
        %1881 = vmatpush2.msra.mxu0 %v964
        %1882 = vmatprep.subr.mxu0 %v933
        %1883 = vmatpush2.msra.mxu0 %v932
        %1884 = vmatprep.subr.mxu0 %v901
        %1885 = vmatpush2.msra.mxu0 %v900
        %1886 = vmatprep.subr.mxu0 %v869
        %1887 = vmatpush2.msra.mxu0 %v868
        %1888 = vmatprep.subr.mxu0 %v837
        %1889 = vmatpush2.msra.mxu0 %v836
        %1890 = vmatprep.subr.mxu0 %v805
        %1891 = vmatpush2.msra.mxu0 %v804
        %1892 = vmatprep.mubr.f32.mxu0 %v1470
        %1893 = vmatmul.mubr.f32.gmra.mxu0 %v1469
        %v1894 = vpop.f32.mrf.mxu0
        %v1895 = vadd.f32 0.0, %v1894
        %v1896 = vpop.f32.mrf.mxu0
        %v1897 = vadd.f32 0.0, %v1896
        %1898 = vdwg.mxu0
        %1899 = vmatprep.subr.mxu0 %v775
        %1900 = vmatpush1.msra.mxu0 %v774
        %1901 = vmatprep.subr.mxu0 %v743
        %1902 = vmatpush1.msra.mxu0 %v742
        %1903 = vmatprep.subr.mxu0 %v711
        %1904 = vmatpush1.msra.mxu0 %v710
        %1905 = vmatprep.subr.mxu0 %v679
        %1906 = vmatpush1.msra.mxu0 %v678
        %1907 = vmatprep.subr.mxu0 %v647
        %1908 = vmatpush1.msra.mxu0 %v646
        %1909 = vmatprep.subr.mxu0 %v615
        %1910 = vmatpush1.msra.mxu0 %v614
        %1911 = vmatprep.subr.mxu0 %v583
        %1912 = vmatpush1.msra.mxu0 %v582
        %1913 = vmatprep.subr.mxu0 %v551
        %1914 = vmatpush1.msra.mxu0 %v550
        %1915 = vmatprep.subr.mxu0 %v519
        %1916 = vmatpush1.msra.mxu0 %v518
        %1917 = vmatprep.subr.mxu0 %v487
        %1918 = vmatpush1.msra.mxu0 %v486
        %1919 = vmatprep.subr.mxu0 %v455
        %1920 = vmatpush1.msra.mxu0 %v454
        %1921 = vmatprep.subr.mxu0 %v423
        %1922 = vmatpush1.msra.mxu0 %v422
        %1923 = vmatprep.subr.mxu0 %v391
        %1924 = vmatpush1.msra.mxu0 %v390
        %1925 = vmatprep.subr.mxu0 %v359
        %1926 = vmatpush1.msra.mxu0 %v358
        %1927 = vmatprep.subr.mxu0 %v327
        %1928 = vmatpush1.msra.mxu0 %v326
        %1929 = vmatprep.subr.mxu0 %v295
        %1930 = vmatpush1.msra.mxu0 %v294
        %1931 = vmatprep.subr.mxu0 %v1287
        %1932 = vmatpush2.msra.mxu0 %v1286
        %1933 = vmatprep.subr.mxu0 %v1255
        %1934 = vmatpush2.msra.mxu0 %v1254
        %1935 = vmatprep.subr.mxu0 %v1223
        %1936 = vmatpush2.msra.mxu0 %v1222
        %1937 = vmatprep.subr.mxu0 %v1191
        %1938 = vmatpush2.msra.mxu0 %v1190
        %1939 = vmatprep.subr.mxu0 %v1159
        %1940 = vmatpush2.msra.mxu0 %v1158
        %1941 = vmatprep.subr.mxu0 %v1127
        %1942 = vmatpush2.msra.mxu0 %v1126
        %1943 = vmatprep.subr.mxu0 %v1095
        %1944 = vmatpush2.msra.mxu0 %v1094
        %1945 = vmatprep.subr.mxu0 %v1063
        %1946 = vmatpush2.msra.mxu0 %v1062
        %1947 = vmatprep.subr.mxu0 %v1031
        %1948 = vmatpush2.msra.mxu0 %v1030
        %1949 = vmatprep.subr.mxu0 %v999
        %1950 = vmatpush2.msra.mxu0 %v998
        %1951 = vmatprep.subr.mxu0 %v967
        %1952 = vmatpush2.msra.mxu0 %v966
        %1953 = vmatprep.subr.mxu0 %v935
        %1954 = vmatpush2.msra.mxu0 %v934
        %1955 = vmatprep.subr.mxu0 %v903
        %1956 = vmatpush2.msra.mxu0 %v902
        %1957 = vmatprep.subr.mxu0 %v871
        %1958 = vmatpush2.msra.mxu0 %v870
        %1959 = vmatprep.subr.mxu0 %v839
        %1960 = vmatpush2.msra.mxu0 %v838
        %1961 = vmatprep.subr.mxu0 %v807
        %1962 = vmatpush2.msra.mxu0 %v806
        %1963 = vmatprep.mubr.f32.mxu0 %v1470
        %1964 = vmatmul.mubr.f32.gmra.mxu0 %v1469
        %v1965 = vpop.f32.mrf.mxu0
        %v1966 = vadd.f32 0.0, %v1965
        %v1967 = vpop.f32.mrf.mxu0
        %v1968 = vadd.f32 0.0, %v1967
        %1969 = vdwg.mxu0
        %1970 = vmatprep.subr.mxu0 %v777
        %1971 = vmatpush1.msra.mxu0 %v776
        %1972 = vmatprep.subr.mxu0 %v745
        %1973 = vmatpush1.msra.mxu0 %v744
        %1974 = vmatprep.subr.mxu0 %v713
        %1975 = vmatpush1.msra.mxu0 %v712
        %1976 = vmatprep.subr.mxu0 %v681
        %1977 = vmatpush1.msra.mxu0 %v680
        %1978 = vmatprep.subr.mxu0 %v649
        %1979 = vmatpush1.msra.mxu0 %v648
        %1980 = vmatprep.subr.mxu0 %v617
        %1981 = vmatpush1.msra.mxu0 %v616
        %1982 = vmatprep.subr.mxu0 %v585
        %1983 = vmatpush1.msra.mxu0 %v584
        %1984 = vmatprep.subr.mxu0 %v553
        %1985 = vmatpush1.msra.mxu0 %v552
        %1986 = vmatprep.subr.mxu0 %v521
        %1987 = vmatpush1.msra.mxu0 %v520
        %1988 = vmatprep.subr.mxu0 %v489
        %1989 = vmatpush1.msra.mxu0 %v488
        %1990 = vmatprep.subr.mxu0 %v457
        %1991 = vmatpush1.msra.mxu0 %v456
        %1992 = vmatprep.subr.mxu0 %v425
        %1993 = vmatpush1.msra.mxu0 %v424
        %1994 = vmatprep.subr.mxu0 %v393
        %1995 = vmatpush1.msra.mxu0 %v392
        %1996 = vmatprep.subr.mxu0 %v361
        %1997 = vmatpush1.msra.mxu0 %v360
        %1998 = vmatprep.subr.mxu0 %v329
        %1999 = vmatpush1.msra.mxu0 %v328
        %2000 = vmatprep.subr.mxu0 %v297
        %2001 = vmatpush1.msra.mxu0 %v296
        %2002 = vmatprep.subr.mxu0 %v1289
        %2003 = vmatpush2.msra.mxu0 %v1288
        %2004 = vmatprep.subr.mxu0 %v1257
        %2005 = vmatpush2.msra.mxu0 %v1256
        %2006 = vmatprep.subr.mxu0 %v1225
        %2007 = vmatpush2.msra.mxu0 %v1224
        %2008 = vmatprep.subr.mxu0 %v1193
        %2009 = vmatpush2.msra.mxu0 %v1192
        %2010 = vmatprep.subr.mxu0 %v1161
        %2011 = vmatpush2.msra.mxu0 %v1160
        %2012 = vmatprep.subr.mxu0 %v1129
        %2013 = vmatpush2.msra.mxu0 %v1128
        %2014 = vmatprep.subr.mxu0 %v1097
        %2015 = vmatpush2.msra.mxu0 %v1096
        %2016 = vmatprep.subr.mxu0 %v1065
        %2017 = vmatpush2.msra.mxu0 %v1064
        %2018 = vmatprep.subr.mxu0 %v1033
        %2019 = vmatpush2.msra.mxu0 %v1032
        %2020 = vmatprep.subr.mxu0 %v1001
        %2021 = vmatpush2.msra.mxu0 %v1000
        %2022 = vmatprep.subr.mxu0 %v969
        %2023 = vmatpush2.msra.mxu0 %v968
        %2024 = vmatprep.subr.mxu0 %v937
        %2025 = vmatpush2.msra.mxu0 %v936
        %2026 = vmatprep.subr.mxu0 %v905
        %2027 = vmatpush2.msra.mxu0 %v904
        %2028 = vmatprep.subr.mxu0 %v873
        %2029 = vmatpush2.msra.mxu0 %v872
        %2030 = vmatprep.subr.mxu0 %v841
        %2031 = vmatpush2.msra.mxu0 %v840
        %2032 = vmatprep.subr.mxu0 %v809
        %2033 = vmatpush2.msra.mxu0 %v808
        %2034 = vmatprep.mubr.f32.mxu0 %v1470
        %2035 = vmatmul.mubr.f32.gmra.mxu0 %v1469
        %v2036 = vpop.f32.mrf.mxu0
        %v2037 = vadd.f32 0.0, %v2036
        %v2038 = vpop.f32.mrf.mxu0
        %v2039 = vadd.f32 0.0, %v2038
        %2040 = vdwg.mxu0
        %2041 = vmatprep.subr.mxu0 %v779
        %2042 = vmatpush1.msra.mxu0 %v778
        %2043 = vmatprep.subr.mxu0 %v747
        %2044 = vmatpush1.msra.mxu0 %v746
        %2045 = vmatprep.subr.mxu0 %v715
        %2046 = vmatpush1.msra.mxu0 %v714
        %2047 = vmatprep.subr.mxu0 %v683
        %2048 = vmatpush1.msra.mxu0 %v682
        %2049 = vmatprep.subr.mxu0 %v651
        %2050 = vmatpush1.msra.mxu0 %v650
        %2051 = vmatprep.subr.mxu0 %v619
        %2052 = vmatpush1.msra.mxu0 %v618
        %2053 = vmatprep.subr.mxu0 %v587
        %2054 = vmatpush1.msra.mxu0 %v586
        %2055 = vmatprep.subr.mxu0 %v555
        %2056 = vmatpush1.msra.mxu0 %v554
        %2057 = vmatprep.subr.mxu0 %v523
        %2058 = vmatpush1.msra.mxu0 %v522
        %2059 = vmatprep.subr.mxu0 %v491
        %2060 = vmatpush1.msra.mxu0 %v490
        %2061 = vmatprep.subr.mxu0 %v459
        %2062 = vmatpush1.msra.mxu0 %v458
        %2063 = vmatprep.subr.mxu0 %v427
        %2064 = vmatpush1.msra.mxu0 %v426
        %2065 = vmatprep.subr.mxu0 %v395
        %2066 = vmatpush1.msra.mxu0 %v394
        %2067 = vmatprep.subr.mxu0 %v363
        %2068 = vmatpush1.msra.mxu0 %v362
        %2069 = vmatprep.subr.mxu0 %v331
        %2070 = vmatpush1.msra.mxu0 %v330
        %2071 = vmatprep.subr.mxu0 %v299
        %2072 = vmatpush1.msra.mxu0 %v298
        %2073 = vmatprep.subr.mxu0 %v1291
        %2074 = vmatpush2.msra.mxu0 %v1290
        %2075 = vmatprep.subr.mxu0 %v1259
        %2076 = vmatpush2.msra.mxu0 %v1258
        %2077 = vmatprep.subr.mxu0 %v1227
        %2078 = vmatpush2.msra.mxu0 %v1226
        %2079 = vmatprep.subr.mxu0 %v1195
        %2080 = vmatpush2.msra.mxu0 %v1194
        %2081 = vmatprep.subr.mxu0 %v1163
        %2082 = vmatpush2.msra.mxu0 %v1162
        %2083 = vmatprep.subr.mxu0 %v1131
        %2084 = vmatpush2.msra.mxu0 %v1130
        %2085 = vmatprep.subr.mxu0 %v1099
        %2086 = vmatpush2.msra.mxu0 %v1098
        %2087 = vmatprep.subr.mxu0 %v1067
        %2088 = vmatpush2.msra.mxu0 %v1066
        %2089 = vmatprep.subr.mxu0 %v1035
        %2090 = vmatpush2.msra.mxu0 %v1034
        %2091 = vmatprep.subr.mxu0 %v1003
        %2092 = vmatpush2.msra.mxu0 %v1002
        %2093 = vmatprep.subr.mxu0 %v971
        %2094 = vmatpush2.msra.mxu0 %v970
        %2095 = vmatprep.subr.mxu0 %v939
        %2096 = vmatpush2.msra.mxu0 %v938
        %2097 = vmatprep.subr.mxu0 %v907
        %2098 = vmatpush2.msra.mxu0 %v906
        %2099 = vmatprep.subr.mxu0 %v875
        %2100 = vmatpush2.msra.mxu0 %v874
        %2101 = vmatprep.subr.mxu0 %v843
        %2102 = vmatpush2.msra.mxu0 %v842
        %2103 = vmatprep.subr.mxu0 %v811
        %2104 = vmatpush2.msra.mxu0 %v810
        %2105 = vmatprep.mubr.f32.mxu0 %v1470
        %2106 = vmatmul.mubr.f32.gmra.mxu0 %v1469
        %v2107 = vpop.f32.mrf.mxu0
        %v2108 = vadd.f32 0.0, %v2107
        %v2109 = vpop.f32.mrf.mxu0
        %v2110 = vadd.f32 0.0, %v2109
        %2111 = vdwg.mxu0
        %2112 = vmatprep.subr.mxu0 %v781
        %2113 = vmatpush1.msra.mxu0 %v780
        %2114 = vmatprep.subr.mxu0 %v749
        %2115 = vmatpush1.msra.mxu0 %v748
        %2116 = vmatprep.subr.mxu0 %v717
        %2117 = vmatpush1.msra.mxu0 %v716
        %2118 = vmatprep.subr.mxu0 %v685
        %2119 = vmatpush1.msra.mxu0 %v684
        %2120 = vmatprep.subr.mxu0 %v653
        %2121 = vmatpush1.msra.mxu0 %v652
        %2122 = vmatprep.subr.mxu0 %v621
        %2123 = vmatpush1.msra.mxu0 %v620
        %2124 = vmatprep.subr.mxu0 %v589
        %2125 = vmatpush1.msra.mxu0 %v588
        %2126 = vmatprep.subr.mxu0 %v557
        %2127 = vmatpush1.msra.mxu0 %v556
        %2128 = vmatprep.subr.mxu0 %v525
        %2129 = vmatpush1.msra.mxu0 %v524
        %2130 = vmatprep.subr.mxu0 %v493
        %2131 = vmatpush1.msra.mxu0 %v492
        %2132 = vmatprep.subr.mxu0 %v461
        %2133 = vmatpush1.msra.mxu0 %v460
        %2134 = vmatprep.subr.mxu0 %v429
        %2135 = vmatpush1.msra.mxu0 %v428
        %2136 = vmatprep.subr.mxu0 %v397
        %2137 = vmatpush1.msra.mxu0 %v396
        %2138 = vmatprep.subr.mxu0 %v365
        %2139 = vmatpush1.msra.mxu0 %v364
        %2140 = vmatprep.subr.mxu0 %v333
        %2141 = vmatpush1.msra.mxu0 %v332
        %2142 = vmatprep.subr.mxu0 %v301
        %2143 = vmatpush1.msra.mxu0 %v300
        %2144 = vmatprep.subr.mxu0 %v1293
        %2145 = vmatpush2.msra.mxu0 %v1292
        %2146 = vmatprep.subr.mxu0 %v1261
        %2147 = vmatpush2.msra.mxu0 %v1260
        %2148 = vmatprep.subr.mxu0 %v1229
        %2149 = vmatpush2.msra.mxu0 %v1228
        %2150 = vmatprep.subr.mxu0 %v1197
        %2151 = vmatpush2.msra.mxu0 %v1196
        %2152 = vmatprep.subr.mxu0 %v1165
        %2153 = vmatpush2.msra.mxu0 %v1164
        %2154 = vmatprep.subr.mxu0 %v1133
        %2155 = vmatpush2.msra.mxu0 %v1132
        %2156 = vmatprep.subr.mxu0 %v1101
        %2157 = vmatpush2.msra.mxu0 %v1100
        %2158 = vmatprep.subr.mxu0 %v1069
        %2159 = vmatpush2.msra.mxu0 %v1068
        %2160 = vmatprep.subr.mxu0 %v1037
        %2161 = vmatpush2.msra.mxu0 %v1036
        %2162 = vmatprep.subr.mxu0 %v1005
        %2163 = vmatpush2.msra.mxu0 %v1004
        %2164 = vmatprep.subr.mxu0 %v973
        %2165 = vmatpush2.msra.mxu0 %v972
        %2166 = vmatprep.subr.mxu0 %v941
        %2167 = vmatpush2.msra.mxu0 %v940
        %2168 = vmatprep.subr.mxu0 %v909
        %2169 = vmatpush2.msra.mxu0 %v908
        %2170 = vmatprep.subr.mxu0 %v877
        %2171 = vmatpush2.msra.mxu0 %v876
        %2172 = vmatprep.subr.mxu0 %v845
        %2173 = vmatpush2.msra.mxu0 %v844
        %2174 = vmatprep.subr.mxu0 %v813
        %2175 = vmatpush2.msra.mxu0 %v812
        %2176 = vmatprep.mubr.f32.mxu0 %v1470
        %2177 = vmatmul.mubr.f32.gmra.mxu0 %v1469
        %v2178 = vpop.f32.mrf.mxu0
        %v2179 = vadd.f32 0.0, %v2178
        %v2180 = vpop.f32.mrf.mxu0
        %v2181 = vadd.f32 0.0, %v2180
        %2182 = vdwg.mxu0
        %2183 = vmatprep.subr.mxu0 %v783
        %2184 = vmatpush1.msra.mxu0 %v782
        %2185 = vmatprep.subr.mxu0 %v751
        %2186 = vmatpush1.msra.mxu0 %v750
        %2187 = vmatprep.subr.mxu0 %v719
        %2188 = vmatpush1.msra.mxu0 %v718
        %2189 = vmatprep.subr.mxu0 %v687
        %2190 = vmatpush1.msra.mxu0 %v686
        %2191 = vmatprep.subr.mxu0 %v655
        %2192 = vmatpush1.msra.mxu0 %v654
        %2193 = vmatprep.subr.mxu0 %v623
        %2194 = vmatpush1.msra.mxu0 %v622
        %2195 = vmatprep.subr.mxu0 %v591
        %2196 = vmatpush1.msra.mxu0 %v590
        %2197 = vmatprep.subr.mxu0 %v559
        %2198 = vmatpush1.msra.mxu0 %v558
        %2199 = vmatprep.subr.mxu0 %v527
        %2200 = vmatpush1.msra.mxu0 %v526
        %2201 = vmatprep.subr.mxu0 %v495
        %2202 = vmatpush1.msra.mxu0 %v494
        %2203 = vmatprep.subr.mxu0 %v463
        %2204 = vmatpush1.msra.mxu0 %v462
        %2205 = vmatprep.subr.mxu0 %v431
        %2206 = vmatpush1.msra.mxu0 %v430
        %2207 = vmatprep.subr.mxu0 %v399
        %2208 = vmatpush1.msra.mxu0 %v398
        %2209 = vmatprep.subr.mxu0 %v367
        %2210 = vmatpush1.msra.mxu0 %v366
        %2211 = vmatprep.subr.mxu0 %v335
        %2212 = vmatpush1.msra.mxu0 %v334
        %2213 = vmatprep.subr.mxu0 %v303
        %2214 = vmatpush1.msra.mxu0 %v302
        %2215 = vmatprep.subr.mxu0 %v1295
        %2216 = vmatpush2.msra.mxu0 %v1294
        %2217 = vmatprep.subr.mxu0 %v1263
        %2218 = vmatpush2.msra.mxu0 %v1262
        %2219 = vmatprep.subr.mxu0 %v1231
        %2220 = vmatpush2.msra.mxu0 %v1230
        %2221 = vmatprep.subr.mxu0 %v1199
        %2222 = vmatpush2.msra.mxu0 %v1198
        %2223 = vmatprep.subr.mxu0 %v1167
        %2224 = vmatpush2.msra.mxu0 %v1166
        %2225 = vmatprep.subr.mxu0 %v1135
        %2226 = vmatpush2.msra.mxu0 %v1134
        %2227 = vmatprep.subr.mxu0 %v1103
        %2228 = vmatpush2.msra.mxu0 %v1102
        %2229 = vmatprep.subr.mxu0 %v1071
        %2230 = vmatpush2.msra.mxu0 %v1070
        %2231 = vmatprep.subr.mxu0 %v1039
        %2232 = vmatpush2.msra.mxu0 %v1038
        %2233 = vmatprep.subr.mxu0 %v1007
        %2234 = vmatpush2.msra.mxu0 %v1006
        %2235 = vmatprep.subr.mxu0 %v975
        %2236 = vmatpush2.msra.mxu0 %v974
        %2237 = vmatprep.subr.mxu0 %v943
        %2238 = vmatpush2.msra.mxu0 %v942
        %2239 = vmatprep.subr.mxu0 %v911
        %2240 = vmatpush2.msra.mxu0 %v910
        %2241 = vmatprep.subr.mxu0 %v879
        %2242 = vmatpush2.msra.mxu0 %v878
        %2243 = vmatprep.subr.mxu0 %v847
        %2244 = vmatpush2.msra.mxu0 %v846
        %2245 = vmatprep.subr.mxu0 %v815
        %2246 = vmatpush2.msra.mxu0 %v814
        %2247 = vmatprep.mubr.f32.mxu0 %v1470
        %2248 = vmatmul.mubr.f32.gmra.mxu0 %v1469
        %v2249 = vpop.f32.mrf.mxu0
        %v2250 = vadd.f32 0.0, %v2249
        %v2251 = vpop.f32.mrf.mxu0
        %v2252 = vadd.f32 0.0, %v2251
        %2253 = vdwg.mxu0
        %2254 = vmatprep.subr.mxu0 %v785
        %2255 = vmatpush1.msra.mxu0 %v784
        %2256 = vmatprep.subr.mxu0 %v753
        %2257 = vmatpush1.msra.mxu0 %v752
        %2258 = vmatprep.subr.mxu0 %v721
        %2259 = vmatpush1.msra.mxu0 %v720
        %2260 = vmatprep.subr.mxu0 %v689
        %2261 = vmatpush1.msra.mxu0 %v688
        %2262 = vmatprep.subr.mxu0 %v657
        %2263 = vmatpush1.msra.mxu0 %v656
        %2264 = vmatprep.subr.mxu0 %v625
        %2265 = vmatpush1.msra.mxu0 %v624
        %2266 = vmatprep.subr.mxu0 %v593
        %2267 = vmatpush1.msra.mxu0 %v592
        %2268 = vmatprep.subr.mxu0 %v561
        %2269 = vmatpush1.msra.mxu0 %v560
        %2270 = vmatprep.subr.mxu0 %v529
        %2271 = vmatpush1.msra.mxu0 %v528
        %2272 = vmatprep.subr.mxu0 %v497
        %2273 = vmatpush1.msra.mxu0 %v496
        %2274 = vmatprep.subr.mxu0 %v465
        %2275 = vmatpush1.msra.mxu0 %v464
        %2276 = vmatprep.subr.mxu0 %v433
        %2277 = vmatpush1.msra.mxu0 %v432
        %2278 = vmatprep.subr.mxu0 %v401
        %2279 = vmatpush1.msra.mxu0 %v400
        %2280 = vmatprep.subr.mxu0 %v369
        %2281 = vmatpush1.msra.mxu0 %v368
        %2282 = vmatprep.subr.mxu0 %v337
        %2283 = vmatpush1.msra.mxu0 %v336
        %2284 = vmatprep.subr.mxu0 %v305
        %2285 = vmatpush1.msra.mxu0 %v304
        %2286 = vmatprep.subr.mxu0 %v1297
        %2287 = vmatpush2.msra.mxu0 %v1296
        %2288 = vmatprep.subr.mxu0 %v1265
        %2289 = vmatpush2.msra.mxu0 %v1264
        %2290 = vmatprep.subr.mxu0 %v1233
        %2291 = vmatpush2.msra.mxu0 %v1232
        %2292 = vmatprep.subr.mxu0 %v1201
        %2293 = vmatpush2.msra.mxu0 %v1200
        %2294 = vmatprep.subr.mxu0 %v1169
        %2295 = vmatpush2.msra.mxu0 %v1168
        %2296 = vmatprep.subr.mxu0 %v1137
        %2297 = vmatpush2.msra.mxu0 %v1136
        %2298 = vmatprep.subr.mxu0 %v1105
        %2299 = vmatpush2.msra.mxu0 %v1104
        %2300 = vmatprep.subr.mxu0 %v1073
        %2301 = vmatpush2.msra.mxu0 %v1072
        %2302 = vmatprep.subr.mxu0 %v1041
        %2303 = vmatpush2.msra.mxu0 %v1040
        %2304 = vmatprep.subr.mxu0 %v1009
        %2305 = vmatpush2.msra.mxu0 %v1008
        %2306 = vmatprep.subr.mxu0 %v977
        %2307 = vmatpush2.msra.mxu0 %v976
        %2308 = vmatprep.subr.mxu0 %v945
        %2309 = vmatpush2.msra.mxu0 %v944
        %2310 = vmatprep.subr.mxu0 %v913
        %2311 = vmatpush2.msra.mxu0 %v912
        %2312 = vmatprep.subr.mxu0 %v881
        %2313 = vmatpush2.msra.mxu0 %v880
        %2314 = vmatprep.subr.mxu0 %v849
        %2315 = vmatpush2.msra.mxu0 %v848
        %2316 = vmatprep.subr.mxu0 %v817
        %2317 = vmatpush2.msra.mxu0 %v816
        %2318 = vmatprep.mubr.f32.mxu0 %v1470
        %2319 = vmatmul.mubr.f32.gmra.mxu0 %v1469
        %v2320 = vpop.f32.mrf.mxu0
        %v2321 = vadd.f32 0.0, %v2320
        %v2322 = vpop.f32.mrf.mxu0
        %v2323 = vadd.f32 0.0, %v2322
        %2324 = vdwg.mxu0
        %2325 = vmatprep.subr.mxu0 %v787
        %2326 = vmatpush1.msra.mxu0 %v786
        %2327 = vmatprep.subr.mxu0 %v755
        %2328 = vmatpush1.msra.mxu0 %v754
        %2329 = vmatprep.subr.mxu0 %v723
        %2330 = vmatpush1.msra.mxu0 %v722
        %2331 = vmatprep.subr.mxu0 %v691
        %2332 = vmatpush1.msra.mxu0 %v690
        %2333 = vmatprep.subr.mxu0 %v659
        %2334 = vmatpush1.msra.mxu0 %v658
        %2335 = vmatprep.subr.mxu0 %v627
        %2336 = vmatpush1.msra.mxu0 %v626
        %2337 = vmatprep.subr.mxu0 %v595
        %2338 = vmatpush1.msra.mxu0 %v594
        %2339 = vmatprep.subr.mxu0 %v563
        %2340 = vmatpush1.msra.mxu0 %v562
        %2341 = vmatprep.subr.mxu0 %v531
        %2342 = vmatpush1.msra.mxu0 %v530
        %2343 = vmatprep.subr.mxu0 %v499
        %2344 = vmatpush1.msra.mxu0 %v498
        %2345 = vmatprep.subr.mxu0 %v467
        %2346 = vmatpush1.msra.mxu0 %v466
        %2347 = vmatprep.subr.mxu0 %v435
        %2348 = vmatpush1.msra.mxu0 %v434
        %2349 = vmatprep.subr.mxu0 %v403
        %2350 = vmatpush1.msra.mxu0 %v402
        %2351 = vmatprep.subr.mxu0 %v371
        %2352 = vmatpush1.msra.mxu0 %v370
        %2353 = vmatprep.subr.mxu0 %v339
        %2354 = vmatpush1.msra.mxu0 %v338
        %2355 = vmatprep.subr.mxu0 %v307
        %2356 = vmatpush1.msra.mxu0 %v306
        %2357 = vmatprep.subr.mxu0 %v1299
        %2358 = vmatpush2.msra.mxu0 %v1298
        %2359 = vmatprep.subr.mxu0 %v1267
        %2360 = vmatpush2.msra.mxu0 %v1266
        %2361 = vmatprep.subr.mxu0 %v1235
        %2362 = vmatpush2.msra.mxu0 %v1234
        %2363 = vmatprep.subr.mxu0 %v1203
        %2364 = vmatpush2.msra.mxu0 %v1202
        %2365 = vmatprep.subr.mxu0 %v1171
        %2366 = vmatpush2.msra.mxu0 %v1170
        %2367 = vmatprep.subr.mxu0 %v1139
        %2368 = vmatpush2.msra.mxu0 %v1138
        %2369 = vmatprep.subr.mxu0 %v1107
        %2370 = vmatpush2.msra.mxu0 %v1106
        %2371 = vmatprep.subr.mxu0 %v1075
        %2372 = vmatpush2.msra.mxu0 %v1074
        %2373 = vmatprep.subr.mxu0 %v1043
        %2374 = vmatpush2.msra.mxu0 %v1042
        %2375 = vmatprep.subr.mxu0 %v1011
        %2376 = vmatpush2.msra.mxu0 %v1010
        %2377 = vmatprep.subr.mxu0 %v979
        %2378 = vmatpush2.msra.mxu0 %v978
        %2379 = vmatprep.subr.mxu0 %v947
        %2380 = vmatpush2.msra.mxu0 %v946
        %2381 = vmatprep.subr.mxu0 %v915
        %2382 = vmatpush2.msra.mxu0 %v914
        %2383 = vmatprep.subr.mxu0 %v883
        %2384 = vmatpush2.msra.mxu0 %v882
        %2385 = vmatprep.subr.mxu0 %v851
        %2386 = vmatpush2.msra.mxu0 %v850
        %2387 = vmatprep.subr.mxu0 %v819
        %2388 = vmatpush2.msra.mxu0 %v818
        %2389 = vmatprep.mubr.f32.mxu0 %v1470
        %2390 = vmatmul.mubr.f32.gmra.mxu0 %v1469
        %v2391 = vpop.f32.mrf.mxu0
        %v2392 = vadd.f32 0.0, %v2391
        %v2393 = vpop.f32.mrf.mxu0
        %v2394 = vadd.f32 0.0, %v2393
        %2395 = vdwg.mxu0
        %2396 = vmatprep.subr.mxu0 %v789
        %2397 = vmatpush1.msra.mxu0 %v788
        %2398 = vmatprep.subr.mxu0 %v757
        %2399 = vmatpush1.msra.mxu0 %v756
        %2400 = vmatprep.subr.mxu0 %v725
        %2401 = vmatpush1.msra.mxu0 %v724
        %2402 = vmatprep.subr.mxu0 %v693
        %2403 = vmatpush1.msra.mxu0 %v692
        %2404 = vmatprep.subr.mxu0 %v661
        %2405 = vmatpush1.msra.mxu0 %v660
        %2406 = vmatprep.subr.mxu0 %v629
        %2407 = vmatpush1.msra.mxu0 %v628
        %2408 = vmatprep.subr.mxu0 %v597
        %2409 = vmatpush1.msra.mxu0 %v596
        %2410 = vmatprep.subr.mxu0 %v565
        %2411 = vmatpush1.msra.mxu0 %v564
        %2412 = vmatprep.subr.mxu0 %v533
        %2413 = vmatpush1.msra.mxu0 %v532
        %2414 = vmatprep.subr.mxu0 %v501
        %2415 = vmatpush1.msra.mxu0 %v500
        %2416 = vmatprep.subr.mxu0 %v469
        %2417 = vmatpush1.msra.mxu0 %v468
        %2418 = vmatprep.subr.mxu0 %v437
        %2419 = vmatpush1.msra.mxu0 %v436
        %2420 = vmatprep.subr.mxu0 %v405
        %2421 = vmatpush1.msra.mxu0 %v404
        %2422 = vmatprep.subr.mxu0 %v373
        %2423 = vmatpush1.msra.mxu0 %v372
        %2424 = vmatprep.subr.mxu0 %v341
        %2425 = vmatpush1.msra.mxu0 %v340
        %2426 = vmatprep.subr.mxu0 %v309
        %2427 = vmatpush1.msra.mxu0 %v308
        %2428 = vmatprep.subr.mxu0 %v1301
        %2429 = vmatpush2.msra.mxu0 %v1300
        %2430 = vmatprep.subr.mxu0 %v1269
        %2431 = vmatpush2.msra.mxu0 %v1268
        %2432 = vmatprep.subr.mxu0 %v1237
        %2433 = vmatpush2.msra.mxu0 %v1236
        %2434 = vmatprep.subr.mxu0 %v1205
        %2435 = vmatpush2.msra.mxu0 %v1204
        %2436 = vmatprep.subr.mxu0 %v1173
        %2437 = vmatpush2.msra.mxu0 %v1172
        %2438 = vmatprep.subr.mxu0 %v1141
        %2439 = vmatpush2.msra.mxu0 %v1140
        %2440 = vmatprep.subr.mxu0 %v1109
        %2441 = vmatpush2.msra.mxu0 %v1108
        %2442 = vmatprep.subr.mxu0 %v1077
        %2443 = vmatpush2.msra.mxu0 %v1076
        %2444 = vmatprep.subr.mxu0 %v1045
        %2445 = vmatpush2.msra.mxu0 %v1044
        %2446 = vmatprep.subr.mxu0 %v1013
        %2447 = vmatpush2.msra.mxu0 %v1012
        %2448 = vmatprep.subr.mxu0 %v981
        %2449 = vmatpush2.msra.mxu0 %v980
        %2450 = vmatprep.subr.mxu0 %v949
        %2451 = vmatpush2.msra.mxu0 %v948
        %2452 = vmatprep.subr.mxu0 %v917
        %2453 = vmatpush2.msra.mxu0 %v916
        %2454 = vmatprep.subr.mxu0 %v885
        %2455 = vmatpush2.msra.mxu0 %v884
        %2456 = vmatprep.subr.mxu0 %v853
        %2457 = vmatpush2.msra.mxu0 %v852
        %2458 = vmatprep.subr.mxu0 %v821
        %2459 = vmatpush2.msra.mxu0 %v820
        %2460 = vmatprep.mubr.f32.mxu0 %v1470
        %2461 = vmatmul.mubr.f32.gmra.mxu0 %v1469
        %v2462 = vpop.f32.mrf.mxu0
        %v2463 = vadd.f32 0.0, %v2462
        %v2464 = vpop.f32.mrf.mxu0
        %v2465 = vadd.f32 0.0, %v2464
        %2466 = vdwg.mxu0
        %2467 = vmatprep.subr.mxu0 %v791
        %2468 = vmatpush1.msra.mxu0 %v790
        %2469 = vmatprep.subr.mxu0 %v759
        %2470 = vmatpush1.msra.mxu0 %v758
        %2471 = vmatprep.subr.mxu0 %v727
        %2472 = vmatpush1.msra.mxu0 %v726
        %2473 = vmatprep.subr.mxu0 %v695
        %2474 = vmatpush1.msra.mxu0 %v694
        %2475 = vmatprep.subr.mxu0 %v663
        %2476 = vmatpush1.msra.mxu0 %v662
        %2477 = vmatprep.subr.mxu0 %v631
        %2478 = vmatpush1.msra.mxu0 %v630
        %2479 = vmatprep.subr.mxu0 %v599
        %2480 = vmatpush1.msra.mxu0 %v598
        %2481 = vmatprep.subr.mxu0 %v567
        %2482 = vmatpush1.msra.mxu0 %v566
        %2483 = vmatprep.subr.mxu0 %v535
        %2484 = vmatpush1.msra.mxu0 %v534
        %2485 = vmatprep.subr.mxu0 %v503
        %2486 = vmatpush1.msra.mxu0 %v502
        %2487 = vmatprep.subr.mxu0 %v471
        %2488 = vmatpush1.msra.mxu0 %v470
        %2489 = vmatprep.subr.mxu0 %v439
        %2490 = vmatpush1.msra.mxu0 %v438
        %2491 = vmatprep.subr.mxu0 %v407
        %2492 = vmatpush1.msra.mxu0 %v406
        %2493 = vmatprep.subr.mxu0 %v375
        %2494 = vmatpush1.msra.mxu0 %v374
        %2495 = vmatprep.subr.mxu0 %v343
        %2496 = vmatpush1.msra.mxu0 %v342
        %2497 = vmatprep.subr.mxu0 %v311
        %2498 = vmatpush1.msra.mxu0 %v310
        %2499 = vmatprep.subr.mxu0 %v1303
        %2500 = vmatpush2.msra.mxu0 %v1302
        %2501 = vmatprep.subr.mxu0 %v1271
        %2502 = vmatpush2.msra.mxu0 %v1270
        %2503 = vmatprep.subr.mxu0 %v1239
        %2504 = vmatpush2.msra.mxu0 %v1238
        %2505 = vmatprep.subr.mxu0 %v1207
        %2506 = vmatpush2.msra.mxu0 %v1206
        %2507 = vmatprep.subr.mxu0 %v1175
        %2508 = vmatpush2.msra.mxu0 %v1174
        %2509 = vmatprep.subr.mxu0 %v1143
        %2510 = vmatpush2.msra.mxu0 %v1142
        %2511 = vmatprep.subr.mxu0 %v1111
        %2512 = vmatpush2.msra.mxu0 %v1110
        %2513 = vmatprep.subr.mxu0 %v1079
        %2514 = vmatpush2.msra.mxu0 %v1078
        %2515 = vmatprep.subr.mxu0 %v1047
        %2516 = vmatpush2.msra.mxu0 %v1046
        %2517 = vmatprep.subr.mxu0 %v1015
        %2518 = vmatpush2.msra.mxu0 %v1014
        %2519 = vmatprep.subr.mxu0 %v983
        %2520 = vmatpush2.msra.mxu0 %v982
        %2521 = vmatprep.subr.mxu0 %v951
        %2522 = vmatpush2.msra.mxu0 %v950
        %2523 = vmatprep.subr.mxu0 %v919
        %2524 = vmatpush2.msra.mxu0 %v918
        %2525 = vmatprep.subr.mxu0 %v887
        %2526 = vmatpush2.msra.mxu0 %v886
        %2527 = vmatprep.subr.mxu0 %v855
        %2528 = vmatpush2.msra.mxu0 %v854
        %2529 = vmatprep.subr.mxu0 %v823
        %2530 = vmatpush2.msra.mxu0 %v822
        %2531 = vmatprep.mubr.f32.mxu0 %v1470
        %2532 = vmatmul.mubr.f32.gmra.mxu0 %v1469
        %v2533 = vpop.f32.mrf.mxu0
        %v2534 = vadd.f32 0.0, %v2533
        %v2535 = vpop.f32.mrf.mxu0
        %v2536 = vadd.f32 0.0, %v2535
        %2537 = vdwg.mxu0
        %2538 = vmatprep.subr.mxu0 %v793
        %2539 = vmatpush1.msra.mxu0 %v792
        %2540 = vmatprep.subr.mxu0 %v761
        %2541 = vmatpush1.msra.mxu0 %v760
        %2542 = vmatprep.subr.mxu0 %v729
        %2543 = vmatpush1.msra.mxu0 %v728
        %2544 = vmatprep.subr.mxu0 %v697
        %2545 = vmatpush1.msra.mxu0 %v696
        %2546 = vmatprep.subr.mxu0 %v665
        %2547 = vmatpush1.msra.mxu0 %v664
        %2548 = vmatprep.subr.mxu0 %v633
        %2549 = vmatpush1.msra.mxu0 %v632
        %2550 = vmatprep.subr.mxu0 %v601
        %2551 = vmatpush1.msra.mxu0 %v600
        %2552 = vmatprep.subr.mxu0 %v569
        %2553 = vmatpush1.msra.mxu0 %v568
        %2554 = vmatprep.subr.mxu0 %v537
        %2555 = vmatpush1.msra.mxu0 %v536
        %2556 = vmatprep.subr.mxu0 %v505
        %2557 = vmatpush1.msra.mxu0 %v504
        %2558 = vmatprep.subr.mxu0 %v473
        %2559 = vmatpush1.msra.mxu0 %v472
        %2560 = vmatprep.subr.mxu0 %v441
        %2561 = vmatpush1.msra.mxu0 %v440
        %2562 = vmatprep.subr.mxu0 %v409
        %2563 = vmatpush1.msra.mxu0 %v408
        %2564 = vmatprep.subr.mxu0 %v377
        %2565 = vmatpush1.msra.mxu0 %v376
        %2566 = vmatprep.subr.mxu0 %v345
        %2567 = vmatpush1.msra.mxu0 %v344
        %2568 = vmatprep.subr.mxu0 %v313
        %2569 = vmatpush1.msra.mxu0 %v312
        %2570 = vmatprep.subr.mxu0 %v1305
        %2571 = vmatpush2.msra.mxu0 %v1304
        %2572 = vmatprep.subr.mxu0 %v1273
        %2573 = vmatpush2.msra.mxu0 %v1272
        %2574 = vmatprep.subr.mxu0 %v1241
        %2575 = vmatpush2.msra.mxu0 %v1240
        %2576 = vmatprep.subr.mxu0 %v1209
        %2577 = vmatpush2.msra.mxu0 %v1208
        %2578 = vmatprep.subr.mxu0 %v1177
        %2579 = vmatpush2.msra.mxu0 %v1176
        %2580 = vmatprep.subr.mxu0 %v1145
        %2581 = vmatpush2.msra.mxu0 %v1144
        %2582 = vmatprep.subr.mxu0 %v1113
        %2583 = vmatpush2.msra.mxu0 %v1112
        %2584 = vmatprep.subr.mxu0 %v1081
        %2585 = vmatpush2.msra.mxu0 %v1080
        %2586 = vmatprep.subr.mxu0 %v1049
        %2587 = vmatpush2.msra.mxu0 %v1048
        %2588 = vmatprep.subr.mxu0 %v1017
        %2589 = vmatpush2.msra.mxu0 %v1016
        %2590 = vmatprep.subr.mxu0 %v985
        %2591 = vmatpush2.msra.mxu0 %v984
        %2592 = vmatprep.subr.mxu0 %v953
        %2593 = vmatpush2.msra.mxu0 %v952
        %2594 = vmatprep.subr.mxu0 %v921
        %2595 = vmatpush2.msra.mxu0 %v920
        %2596 = vmatprep.subr.mxu0 %v889
        %2597 = vmatpush2.msra.mxu0 %v888
        %2598 = vmatprep.subr.mxu0 %v857
        %2599 = vmatpush2.msra.mxu0 %v856
        %2600 = vmatprep.subr.mxu0 %v825
        %2601 = vmatpush2.msra.mxu0 %v824
        %2602 = vmatprep.mubr.f32.mxu0 %v1470
        %2603 = vmatmul.mubr.f32.gmra.mxu0 %v1469
        %v2604 = vpop.f32.mrf.mxu0
        %v2605 = vadd.f32 0.0, %v2604
        %v2606 = vpop.f32.mrf.mxu0
        %v2607 = vadd.f32 0.0, %v2606
        %2608 = vdwg.mxu0
        %2609 = vmatprep.subr.mxu0 %v763
        %2610 = vmatpush1.msra.mxu0 %v762
        %2611 = vmatprep.subr.mxu0 %v731
        %2612 = vmatpush1.msra.mxu0 %v730
        %2613 = vmatprep.subr.mxu0 %v699
        %2614 = vmatpush1.msra.mxu0 %v698
        %2615 = vmatprep.subr.mxu0 %v667
        %2616 = vmatpush1.msra.mxu0 %v666
        %2617 = vmatprep.subr.mxu0 %v635
        %2618 = vmatpush1.msra.mxu0 %v634
        %2619 = vmatprep.subr.mxu0 %v603
        %2620 = vmatpush1.msra.mxu0 %v602
        %2621 = vmatprep.subr.mxu0 %v571
        %2622 = vmatpush1.msra.mxu0 %v570
        %2623 = vmatprep.subr.mxu0 %v539
        %2624 = vmatpush1.msra.mxu0 %v538
        %2625 = vmatprep.subr.mxu0 %v507
        %2626 = vmatpush1.msra.mxu0 %v506
        %2627 = vmatprep.subr.mxu0 %v475
        %2628 = vmatpush1.msra.mxu0 %v474
        %2629 = vmatprep.subr.mxu0 %v443
        %2630 = vmatpush1.msra.mxu0 %v442
        %2631 = vmatprep.subr.mxu0 %v411
        %2632 = vmatpush1.msra.mxu0 %v410
        %2633 = vmatprep.subr.mxu0 %v379
        %2634 = vmatpush1.msra.mxu0 %v378
        %2635 = vmatprep.subr.mxu0 %v347
        %2636 = vmatpush1.msra.mxu0 %v346
        %2637 = vmatprep.subr.mxu0 %v315
        %2638 = vmatpush1.msra.mxu0 %v314
        %2639 = vmatprep.subr.mxu0 %v283
        %2640 = vmatpush1.msra.mxu0 %v282
        %2641 = vmatprep.subr.mxu0 %v1275
        %2642 = vmatpush2.msra.mxu0 %v1274
        %2643 = vmatprep.subr.mxu0 %v1243
        %2644 = vmatpush2.msra.mxu0 %v1242
        %2645 = vmatprep.subr.mxu0 %v1211
        %2646 = vmatpush2.msra.mxu0 %v1210
        %2647 = vmatprep.subr.mxu0 %v1179
        %2648 = vmatpush2.msra.mxu0 %v1178
        %2649 = vmatprep.subr.mxu0 %v1147
        %2650 = vmatpush2.msra.mxu0 %v1146
        %2651 = vmatprep.subr.mxu0 %v1115
        %2652 = vmatpush2.msra.mxu0 %v1114
        %2653 = vmatprep.subr.mxu0 %v1083
        %2654 = vmatpush2.msra.mxu0 %v1082
        %2655 = vmatprep.subr.mxu0 %v1051
        %2656 = vmatpush2.msra.mxu0 %v1050
        %2657 = vmatprep.subr.mxu0 %v1019
        %2658 = vmatpush2.msra.mxu0 %v1018
        %2659 = vmatprep.subr.mxu0 %v987
        %2660 = vmatpush2.msra.mxu0 %v986
        %2661 = vmatprep.subr.mxu0 %v955
        %2662 = vmatpush2.msra.mxu0 %v954
        %2663 = vmatprep.subr.mxu0 %v923
        %2664 = vmatpush2.msra.mxu0 %v922
        %2665 = vmatprep.subr.mxu0 %v891
        %2666 = vmatpush2.msra.mxu0 %v890
        %2667 = vmatprep.subr.mxu0 %v859
        %2668 = vmatpush2.msra.mxu0 %v858
        %2669 = vmatprep.subr.mxu0 %v827
        %2670 = vmatpush2.msra.mxu0 %v826
        %2671 = vmatprep.subr.mxu0 %v795
        %2672 = vmatpush2.msra.mxu0 %v794
        %2673 = vmatprep.mubr.f32.mxu0 %v1465
        %2674 = vmatmul.mubr.f32.gmra.mxu0 %v1463
        %v2675 = vpop.f32.mrf.mxu0
        %v2676 = vadd.f32 0.0, %v2675
        %v2677 = vpop.f32.mrf.mxu0
        %v2678 = vadd.f32 0.0, %v2677
        %2679 = vdwg.mxu0
        %2680 = vmatprep.subr.mxu0 %v765
        %2681 = vmatpush1.msra.mxu0 %v764
        %2682 = vmatprep.subr.mxu0 %v733
        %2683 = vmatpush1.msra.mxu0 %v732
        %2684 = vmatprep.subr.mxu0 %v701
        %2685 = vmatpush1.msra.mxu0 %v700
        %2686 = vmatprep.subr.mxu0 %v669
        %2687 = vmatpush1.msra.mxu0 %v668
        %2688 = vmatprep.subr.mxu0 %v637
        %2689 = vmatpush1.msra.mxu0 %v636
        %2690 = vmatprep.subr.mxu0 %v605
        %2691 = vmatpush1.msra.mxu0 %v604
        %2692 = vmatprep.subr.mxu0 %v573
        %2693 = vmatpush1.msra.mxu0 %v572
        %2694 = vmatprep.subr.mxu0 %v541
        %2695 = vmatpush1.msra.mxu0 %v540
        %2696 = vmatprep.subr.mxu0 %v509
        %2697 = vmatpush1.msra.mxu0 %v508
        %2698 = vmatprep.subr.mxu0 %v477
        %2699 = vmatpush1.msra.mxu0 %v476
        %2700 = vmatprep.subr.mxu0 %v445
        %2701 = vmatpush1.msra.mxu0 %v444
        %2702 = vmatprep.subr.mxu0 %v413
        %2703 = vmatpush1.msra.mxu0 %v412
        %2704 = vmatprep.subr.mxu0 %v381
        %2705 = vmatpush1.msra.mxu0 %v380
        %2706 = vmatprep.subr.mxu0 %v349
        %2707 = vmatpush1.msra.mxu0 %v348
        %2708 = vmatprep.subr.mxu0 %v317
        %2709 = vmatpush1.msra.mxu0 %v316
        %2710 = vmatprep.subr.mxu0 %v285
        %2711 = vmatpush1.msra.mxu0 %v284
        %2712 = vmatprep.subr.mxu0 %v1277
        %2713 = vmatpush2.msra.mxu0 %v1276
        %2714 = vmatprep.subr.mxu0 %v1245
        %2715 = vmatpush2.msra.mxu0 %v1244
        %2716 = vmatprep.subr.mxu0 %v1213
        %2717 = vmatpush2.msra.mxu0 %v1212
        %2718 = vmatprep.subr.mxu0 %v1181
        %2719 = vmatpush2.msra.mxu0 %v1180
        %2720 = vmatprep.subr.mxu0 %v1149
        %2721 = vmatpush2.msra.mxu0 %v1148
        %2722 = vmatprep.subr.mxu0 %v1117
        %2723 = vmatpush2.msra.mxu0 %v1116
        %2724 = vmatprep.subr.mxu0 %v1085
        %2725 = vmatpush2.msra.mxu0 %v1084
        %2726 = vmatprep.subr.mxu0 %v1053
        %2727 = vmatpush2.msra.mxu0 %v1052
        %2728 = vmatprep.subr.mxu0 %v1021
        %2729 = vmatpush2.msra.mxu0 %v1020
        %2730 = vmatprep.subr.mxu0 %v989
        %2731 = vmatpush2.msra.mxu0 %v988
        %2732 = vmatprep.subr.mxu0 %v957
        %2733 = vmatpush2.msra.mxu0 %v956
        %2734 = vmatprep.subr.mxu0 %v925
        %2735 = vmatpush2.msra.mxu0 %v924
        %2736 = vmatprep.subr.mxu0 %v893
        %2737 = vmatpush2.msra.mxu0 %v892
        %2738 = vmatprep.subr.mxu0 %v861
        %2739 = vmatpush2.msra.mxu0 %v860
        %2740 = vmatprep.subr.mxu0 %v829
        %2741 = vmatpush2.msra.mxu0 %v828
        %2742 = vmatprep.subr.mxu0 %v797
        %2743 = vmatpush2.msra.mxu0 %v796
        %2744 = vmatprep.mubr.f32.mxu0 %v1465
        %2745 = vmatmul.mubr.f32.gmra.mxu0 %v1463
        %v2746 = vpop.f32.mrf.mxu0
        %v2747 = vadd.f32 0.0, %v2746
        %v2748 = vpop.f32.mrf.mxu0
        %v2749 = vadd.f32 0.0, %v2748
        %2750 = vdwg.mxu0
        %2751 = vmatprep.subr.mxu0 %v767
        %2752 = vmatpush1.msra.mxu0 %v766
        %2753 = vmatprep.subr.mxu0 %v735
        %2754 = vmatpush1.msra.mxu0 %v734
        %2755 = vmatprep.subr.mxu0 %v703
        %2756 = vmatpush1.msra.mxu0 %v702
        %2757 = vmatprep.subr.mxu0 %v671
        %2758 = vmatpush1.msra.mxu0 %v670
        %2759 = vmatprep.subr.mxu0 %v639
        %2760 = vmatpush1.msra.mxu0 %v638
        %2761 = vmatprep.subr.mxu0 %v607
        %2762 = vmatpush1.msra.mxu0 %v606
        %2763 = vmatprep.subr.mxu0 %v575
        %2764 = vmatpush1.msra.mxu0 %v574
        %2765 = vmatprep.subr.mxu0 %v543
        %2766 = vmatpush1.msra.mxu0 %v542
        %2767 = vmatprep.subr.mxu0 %v511
        %2768 = vmatpush1.msra.mxu0 %v510
        %2769 = vmatprep.subr.mxu0 %v479
        %2770 = vmatpush1.msra.mxu0 %v478
        %2771 = vmatprep.subr.mxu0 %v447
        %2772 = vmatpush1.msra.mxu0 %v446
        %2773 = vmatprep.subr.mxu0 %v415
        %2774 = vmatpush1.msra.mxu0 %v414
        %2775 = vmatprep.subr.mxu0 %v383
        %2776 = vmatpush1.msra.mxu0 %v382
        %2777 = vmatprep.subr.mxu0 %v351
        %2778 = vmatpush1.msra.mxu0 %v350
        %2779 = vmatprep.subr.mxu0 %v319
        %2780 = vmatpush1.msra.mxu0 %v318
        %2781 = vmatprep.subr.mxu0 %v287
        %2782 = vmatpush1.msra.mxu0 %v286
        %2783 = vmatprep.subr.mxu0 %v1279
        %2784 = vmatpush2.msra.mxu0 %v1278
        %2785 = vmatprep.subr.mxu0 %v1247
        %2786 = vmatpush2.msra.mxu0 %v1246
        %2787 = vmatprep.subr.mxu0 %v1215
        %2788 = vmatpush2.msra.mxu0 %v1214
        %2789 = vmatprep.subr.mxu0 %v1183
        %2790 = vmatpush2.msra.mxu0 %v1182
        %2791 = vmatprep.subr.mxu0 %v1151
        %2792 = vmatpush2.msra.mxu0 %v1150
        %2793 = vmatprep.subr.mxu0 %v1119
        %2794 = vmatpush2.msra.mxu0 %v1118
        %2795 = vmatprep.subr.mxu0 %v1087
        %2796 = vmatpush2.msra.mxu0 %v1086
        %2797 = vmatprep.subr.mxu0 %v1055
        %2798 = vmatpush2.msra.mxu0 %v1054
        %2799 = vmatprep.subr.mxu0 %v1023
        %2800 = vmatpush2.msra.mxu0 %v1022
        %2801 = vmatprep.subr.mxu0 %v991
        %2802 = vmatpush2.msra.mxu0 %v990
        %2803 = vmatprep.subr.mxu0 %v959
        %2804 = vmatpush2.msra.mxu0 %v958
        %2805 = vmatprep.subr.mxu0 %v927
        %2806 = vmatpush2.msra.mxu0 %v926
        %2807 = vmatprep.subr.mxu0 %v895
        %2808 = vmatpush2.msra.mxu0 %v894
        %2809 = vmatprep.subr.mxu0 %v863
        %2810 = vmatpush2.msra.mxu0 %v862
        %2811 = vmatprep.subr.mxu0 %v831
        %2812 = vmatpush2.msra.mxu0 %v830
        %2813 = vmatprep.subr.mxu0 %v799
        %2814 = vmatpush2.msra.mxu0 %v798
        %2815 = vmatprep.mubr.f32.mxu0 %v1465
        %2816 = vmatmul.mubr.f32.gmra.mxu0 %v1463
        %v2817 = vpop.f32.mrf.mxu0
        %v2818 = vadd.f32 0.0, %v2817
        %v2819 = vpop.f32.mrf.mxu0
        %v2820 = vadd.f32 0.0, %v2819
        %2821 = vdwg.mxu0
        %2822 = vmatprep.subr.mxu0 %v769
        %2823 = vmatpush1.msra.mxu0 %v768
        %2824 = vmatprep.subr.mxu0 %v737
        %2825 = vmatpush1.msra.mxu0 %v736
        %2826 = vmatprep.subr.mxu0 %v705
        %2827 = vmatpush1.msra.mxu0 %v704
        %2828 = vmatprep.subr.mxu0 %v673
        %2829 = vmatpush1.msra.mxu0 %v672
        %2830 = vmatprep.subr.mxu0 %v641
        %2831 = vmatpush1.msra.mxu0 %v640
        %2832 = vmatprep.subr.mxu0 %v609
        %2833 = vmatpush1.msra.mxu0 %v608
        %2834 = vmatprep.subr.mxu0 %v577
        %2835 = vmatpush1.msra.mxu0 %v576
        %2836 = vmatprep.subr.mxu0 %v545
        %2837 = vmatpush1.msra.mxu0 %v544
        %2838 = vmatprep.subr.mxu0 %v513
        %2839 = vmatpush1.msra.mxu0 %v512
        %2840 = vmatprep.subr.mxu0 %v481
        %2841 = vmatpush1.msra.mxu0 %v480
        %2842 = vmatprep.subr.mxu0 %v449
        %2843 = vmatpush1.msra.mxu0 %v448
        %2844 = vmatprep.subr.mxu0 %v417
        %2845 = vmatpush1.msra.mxu0 %v416
        %2846 = vmatprep.subr.mxu0 %v385
        %2847 = vmatpush1.msra.mxu0 %v384
        %2848 = vmatprep.subr.mxu0 %v353
        %2849 = vmatpush1.msra.mxu0 %v352
        %2850 = vmatprep.subr.mxu0 %v321
        %2851 = vmatpush1.msra.mxu0 %v320
        %2852 = vmatprep.subr.mxu0 %v289
        %2853 = vmatpush1.msra.mxu0 %v288
        %2854 = vmatprep.subr.mxu0 %v1281
        %2855 = vmatpush2.msra.mxu0 %v1280
        %2856 = vmatprep.subr.mxu0 %v1249
        %2857 = vmatpush2.msra.mxu0 %v1248
        %2858 = vmatprep.subr.mxu0 %v1217
        %2859 = vmatpush2.msra.mxu0 %v1216
        %2860 = vmatprep.subr.mxu0 %v1185
        %2861 = vmatpush2.msra.mxu0 %v1184
        %2862 = vmatprep.subr.mxu0 %v1153
        %2863 = vmatpush2.msra.mxu0 %v1152
        %2864 = vmatprep.subr.mxu0 %v1121
        %2865 = vmatpush2.msra.mxu0 %v1120
        %2866 = vmatprep.subr.mxu0 %v1089
        %2867 = vmatpush2.msra.mxu0 %v1088
        %2868 = vmatprep.subr.mxu0 %v1057
        %2869 = vmatpush2.msra.mxu0 %v1056
        %2870 = vmatprep.subr.mxu0 %v1025
        %2871 = vmatpush2.msra.mxu0 %v1024
        %2872 = vmatprep.subr.mxu0 %v993
        %2873 = vmatpush2.msra.mxu0 %v992
        %2874 = vmatprep.subr.mxu0 %v961
        %2875 = vmatpush2.msra.mxu0 %v960
        %2876 = vmatprep.subr.mxu0 %v929
        %2877 = vmatpush2.msra.mxu0 %v928
        %2878 = vmatprep.subr.mxu0 %v897
        %2879 = vmatpush2.msra.mxu0 %v896
        %2880 = vmatprep.subr.mxu0 %v865
        %2881 = vmatpush2.msra.mxu0 %v864
        %2882 = vmatprep.subr.mxu0 %v833
        %2883 = vmatpush2.msra.mxu0 %v832
        %2884 = vmatprep.subr.mxu0 %v801
        %2885 = vmatpush2.msra.mxu0 %v800
        %2886 = vmatprep.mubr.f32.mxu0 %v1465
        %2887 = vmatmul.mubr.f32.gmra.mxu0 %v1463
        %v2888 = vpop.f32.mrf.mxu0
        %v2889 = vadd.f32 0.0, %v2888
        %v2890 = vpop.f32.mrf.mxu0
        %v2891 = vadd.f32 0.0, %v2890
        %2892 = vdwg.mxu0
        %2893 = vmatprep.subr.mxu0 %v771
        %2894 = vmatpush1.msra.mxu0 %v770
        %2895 = vmatprep.subr.mxu0 %v739
        %2896 = vmatpush1.msra.mxu0 %v738
        %2897 = vmatprep.subr.mxu0 %v707
        %2898 = vmatpush1.msra.mxu0 %v706
        %2899 = vmatprep.subr.mxu0 %v675
        %2900 = vmatpush1.msra.mxu0 %v674
        %2901 = vmatprep.subr.mxu0 %v643
        %2902 = vmatpush1.msra.mxu0 %v642
        %2903 = vmatprep.subr.mxu0 %v611
        %2904 = vmatpush1.msra.mxu0 %v610
        %2905 = vmatprep.subr.mxu0 %v579
        %2906 = vmatpush1.msra.mxu0 %v578
        %2907 = vmatprep.subr.mxu0 %v547
        %2908 = vmatpush1.msra.mxu0 %v546
        %2909 = vmatprep.subr.mxu0 %v515
        %2910 = vmatpush1.msra.mxu0 %v514
        %2911 = vmatprep.subr.mxu0 %v483
        %2912 = vmatpush1.msra.mxu0 %v482
        %2913 = vmatprep.subr.mxu0 %v451
        %2914 = vmatpush1.msra.mxu0 %v450
        %2915 = vmatprep.subr.mxu0 %v419
        %2916 = vmatpush1.msra.mxu0 %v418
        %2917 = vmatprep.subr.mxu0 %v387
        %2918 = vmatpush1.msra.mxu0 %v386
        %2919 = vmatprep.subr.mxu0 %v355
        %2920 = vmatpush1.msra.mxu0 %v354
        %2921 = vmatprep.subr.mxu0 %v323
        %2922 = vmatpush1.msra.mxu0 %v322
        %2923 = vmatprep.subr.mxu0 %v291
        %2924 = vmatpush1.msra.mxu0 %v290
        %2925 = vmatprep.subr.mxu0 %v1283
        %2926 = vmatpush2.msra.mxu0 %v1282
        %2927 = vmatprep.subr.mxu0 %v1251
        %2928 = vmatpush2.msra.mxu0 %v1250
        %2929 = vmatprep.subr.mxu0 %v1219
        %2930 = vmatpush2.msra.mxu0 %v1218
        %2931 = vmatprep.subr.mxu0 %v1187
        %2932 = vmatpush2.msra.mxu0 %v1186
        %2933 = vmatprep.subr.mxu0 %v1155
        %2934 = vmatpush2.msra.mxu0 %v1154
        %2935 = vmatprep.subr.mxu0 %v1123
        %2936 = vmatpush2.msra.mxu0 %v1122
        %2937 = vmatprep.subr.mxu0 %v1091
        %2938 = vmatpush2.msra.mxu0 %v1090
        %2939 = vmatprep.subr.mxu0 %v1059
        %2940 = vmatpush2.msra.mxu0 %v1058
        %2941 = vmatprep.subr.mxu0 %v1027
        %2942 = vmatpush2.msra.mxu0 %v1026
        %2943 = vmatprep.subr.mxu0 %v995
        %2944 = vmatpush2.msra.mxu0 %v994
        %2945 = vmatprep.subr.mxu0 %v963
        %2946 = vmatpush2.msra.mxu0 %v962
        %2947 = vmatprep.subr.mxu0 %v931
        %2948 = vmatpush2.msra.mxu0 %v930
        %2949 = vmatprep.subr.mxu0 %v899
        %2950 = vmatpush2.msra.mxu0 %v898
        %2951 = vmatprep.subr.mxu0 %v867
        %2952 = vmatpush2.msra.mxu0 %v866
        %2953 = vmatprep.subr.mxu0 %v835
        %2954 = vmatpush2.msra.mxu0 %v834
        %2955 = vmatprep.subr.mxu0 %v803
        %2956 = vmatpush2.msra.mxu0 %v802
        %2957 = vmatprep.mubr.f32.mxu0 %v1465
        %2958 = vmatmul.mubr.f32.gmra.mxu0 %v1463
        %v2959 = vpop.f32.mrf.mxu0
        %v2960 = vadd.f32 0.0, %v2959
        %v2961 = vpop.f32.mrf.mxu0
        %v2962 = vadd.f32 0.0, %v2961
        %2963 = vdwg.mxu0
        %2964 = vmatprep.subr.mxu0 %v773
        %2965 = vmatpush1.msra.mxu0 %v772
        %2966 = vmatprep.subr.mxu0 %v741
        %2967 = vmatpush1.msra.mxu0 %v740
        %2968 = vmatprep.subr.mxu0 %v709
        %2969 = vmatpush1.msra.mxu0 %v708
        %2970 = vmatprep.subr.mxu0 %v677
        %2971 = vmatpush1.msra.mxu0 %v676
        %2972 = vmatprep.subr.mxu0 %v645
        %2973 = vmatpush1.msra.mxu0 %v644
        %2974 = vmatprep.subr.mxu0 %v613
        %2975 = vmatpush1.msra.mxu0 %v612
        %2976 = vmatprep.subr.mxu0 %v581
        %2977 = vmatpush1.msra.mxu0 %v580
        %2978 = vmatprep.subr.mxu0 %v549
        %2979 = vmatpush1.msra.mxu0 %v548
        %2980 = vmatprep.subr.mxu0 %v517
        %2981 = vmatpush1.msra.mxu0 %v516
        %2982 = vmatprep.subr.mxu0 %v485
        %2983 = vmatpush1.msra.mxu0 %v484
        %2984 = vmatprep.subr.mxu0 %v453
        %2985 = vmatpush1.msra.mxu0 %v452
        %2986 = vmatprep.subr.mxu0 %v421
        %2987 = vmatpush1.msra.mxu0 %v420
        %2988 = vmatprep.subr.mxu0 %v389
        %2989 = vmatpush1.msra.mxu0 %v388
        %2990 = vmatprep.subr.mxu0 %v357
        %2991 = vmatpush1.msra.mxu0 %v356
        %2992 = vmatprep.subr.mxu0 %v325
        %2993 = vmatpush1.msra.mxu0 %v324
        %2994 = vmatprep.subr.mxu0 %v293
        %2995 = vmatpush1.msra.mxu0 %v292
        %2996 = vmatprep.subr.mxu0 %v1285
        %2997 = vmatpush2.msra.mxu0 %v1284
        %2998 = vmatprep.subr.mxu0 %v1253
        %2999 = vmatpush2.msra.mxu0 %v1252
        %3000 = vmatprep.subr.mxu0 %v1221
        %3001 = vmatpush2.msra.mxu0 %v1220
        %3002 = vmatprep.subr.mxu0 %v1189
        %3003 = vmatpush2.msra.mxu0 %v1188
        %3004 = vmatprep.subr.mxu0 %v1157
        %3005 = vmatpush2.msra.mxu0 %v1156
        %3006 = vmatprep.subr.mxu0 %v1125
        %3007 = vmatpush2.msra.mxu0 %v1124
        %3008 = vmatprep.subr.mxu0 %v1093
        %3009 = vmatpush2.msra.mxu0 %v1092
        %3010 = vmatprep.subr.mxu0 %v1061
        %3011 = vmatpush2.msra.mxu0 %v1060
        %3012 = vmatprep.subr.mxu0 %v1029
        %3013 = vmatpush2.msra.mxu0 %v1028
        %3014 = vmatprep.subr.mxu0 %v997
        %3015 = vmatpush2.msra.mxu0 %v996
        %3016 = vmatprep.subr.mxu0 %v965
        %3017 = vmatpush2.msra.mxu0 %v964
        %3018 = vmatprep.subr.mxu0 %v933
        %3019 = vmatpush2.msra.mxu0 %v932
        %3020 = vmatprep.subr.mxu0 %v901
        %3021 = vmatpush2.msra.mxu0 %v900
        %3022 = vmatprep.subr.mxu0 %v869
        %3023 = vmatpush2.msra.mxu0 %v868
        %3024 = vmatprep.subr.mxu0 %v837
        %3025 = vmatpush2.msra.mxu0 %v836
        %3026 = vmatprep.subr.mxu0 %v805
        %3027 = vmatpush2.msra.mxu0 %v804
        %3028 = vmatprep.mubr.f32.mxu0 %v1465
        %3029 = vmatmul.mubr.f32.gmra.mxu0 %v1463
        %v3030 = vpop.f32.mrf.mxu0
        %v3031 = vadd.f32 0.0, %v3030
        %v3032 = vpop.f32.mrf.mxu0
        %v3033 = vadd.f32 0.0, %v3032
        %3034 = vdwg.mxu0
        %3035 = vmatprep.subr.mxu0 %v775
        %3036 = vmatpush1.msra.mxu0 %v774
        %3037 = vmatprep.subr.mxu0 %v743
        %3038 = vmatpush1.msra.mxu0 %v742
        %3039 = vmatprep.subr.mxu0 %v711
        %3040 = vmatpush1.msra.mxu0 %v710
        %3041 = vmatprep.subr.mxu0 %v679
        %3042 = vmatpush1.msra.mxu0 %v678
        %3043 = vmatprep.subr.mxu0 %v647
        %3044 = vmatpush1.msra.mxu0 %v646
        %3045 = vmatprep.subr.mxu0 %v615
        %3046 = vmatpush1.msra.mxu0 %v614
        %3047 = vmatprep.subr.mxu0 %v583
        %3048 = vmatpush1.msra.mxu0 %v582
        %3049 = vmatprep.subr.mxu0 %v551
        %3050 = vmatpush1.msra.mxu0 %v550
        %3051 = vmatprep.subr.mxu0 %v519
        %3052 = vmatpush1.msra.mxu0 %v518
        %3053 = vmatprep.subr.mxu0 %v487
        %3054 = vmatpush1.msra.mxu0 %v486
        %3055 = vmatprep.subr.mxu0 %v455
        %3056 = vmatpush1.msra.mxu0 %v454
        %3057 = vmatprep.subr.mxu0 %v423
        %3058 = vmatpush1.msra.mxu0 %v422
        %3059 = vmatprep.subr.mxu0 %v391
        %3060 = vmatpush1.msra.mxu0 %v390
        %3061 = vmatprep.subr.mxu0 %v359
        %3062 = vmatpush1.msra.mxu0 %v358
        %3063 = vmatprep.subr.mxu0 %v327
        %3064 = vmatpush1.msra.mxu0 %v326
        %3065 = vmatprep.subr.mxu0 %v295
        %3066 = vmatpush1.msra.mxu0 %v294
        %3067 = vmatprep.subr.mxu0 %v1287
        %3068 = vmatpush2.msra.mxu0 %v1286
        %3069 = vmatprep.subr.mxu0 %v1255
        %3070 = vmatpush2.msra.mxu0 %v1254
        %3071 = vmatprep.subr.mxu0 %v1223
        %3072 = vmatpush2.msra.mxu0 %v1222
        %3073 = vmatprep.subr.mxu0 %v1191
        %3074 = vmatpush2.msra.mxu0 %v1190
        %3075 = vmatprep.subr.mxu0 %v1159
        %3076 = vmatpush2.msra.mxu0 %v1158
        %3077 = vmatprep.subr.mxu0 %v1127
        %3078 = vmatpush2.msra.mxu0 %v1126
        %3079 = vmatprep.subr.mxu0 %v1095
        %3080 = vmatpush2.msra.mxu0 %v1094
        %3081 = vmatprep.subr.mxu0 %v1063
        %3082 = vmatpush2.msra.mxu0 %v1062
        %3083 = vmatprep.subr.mxu0 %v1031
        %3084 = vmatpush2.msra.mxu0 %v1030
        %3085 = vmatprep.subr.mxu0 %v999
        %3086 = vmatpush2.msra.mxu0 %v998
        %3087 = vmatprep.subr.mxu0 %v967
        %3088 = vmatpush2.msra.mxu0 %v966
        %3089 = vmatprep.subr.mxu0 %v935
        %3090 = vmatpush2.msra.mxu0 %v934
        %3091 = vmatprep.subr.mxu0 %v903
        %3092 = vmatpush2.msra.mxu0 %v902
        %3093 = vmatprep.subr.mxu0 %v871
        %3094 = vmatpush2.msra.mxu0 %v870
        %3095 = vmatprep.subr.mxu0 %v839
        %3096 = vmatpush2.msra.mxu0 %v838
        %3097 = vmatprep.subr.mxu0 %v807
        %3098 = vmatpush2.msra.mxu0 %v806
        %3099 = vmatprep.mubr.f32.mxu0 %v1465
        %3100 = vmatmul.mubr.f32.gmra.mxu0 %v1463
        %v3101 = vpop.f32.mrf.mxu0
        %v3102 = vadd.f32 0.0, %v3101
        %v3103 = vpop.f32.mrf.mxu0
        %v3104 = vadd.f32 0.0, %v3103
        %3105 = vdwg.mxu0
        %3106 = vmatprep.subr.mxu0 %v777
        %3107 = vmatpush1.msra.mxu0 %v776
        %3108 = vmatprep.subr.mxu0 %v745
        %3109 = vmatpush1.msra.mxu0 %v744
        %3110 = vmatprep.subr.mxu0 %v713
        %3111 = vmatpush1.msra.mxu0 %v712
        %3112 = vmatprep.subr.mxu0 %v681
        %3113 = vmatpush1.msra.mxu0 %v680
        %3114 = vmatprep.subr.mxu0 %v649
        %3115 = vmatpush1.msra.mxu0 %v648
        %3116 = vmatprep.subr.mxu0 %v617
        %3117 = vmatpush1.msra.mxu0 %v616
        %3118 = vmatprep.subr.mxu0 %v585
        %3119 = vmatpush1.msra.mxu0 %v584
        %3120 = vmatprep.subr.mxu0 %v553
        %3121 = vmatpush1.msra.mxu0 %v552
        %3122 = vmatprep.subr.mxu0 %v521
        %3123 = vmatpush1.msra.mxu0 %v520
        %3124 = vmatprep.subr.mxu0 %v489
        %3125 = vmatpush1.msra.mxu0 %v488
        %3126 = vmatprep.subr.mxu0 %v457
        %3127 = vmatpush1.msra.mxu0 %v456
        %3128 = vmatprep.subr.mxu0 %v425
        %3129 = vmatpush1.msra.mxu0 %v424
        %3130 = vmatprep.subr.mxu0 %v393
        %3131 = vmatpush1.msra.mxu0 %v392
        %3132 = vmatprep.subr.mxu0 %v361
        %3133 = vmatpush1.msra.mxu0 %v360
        %3134 = vmatprep.subr.mxu0 %v329
        %3135 = vmatpush1.msra.mxu0 %v328
        %3136 = vmatprep.subr.mxu0 %v297
        %3137 = vmatpush1.msra.mxu0 %v296
        %3138 = vmatprep.subr.mxu0 %v1289
        %3139 = vmatpush2.msra.mxu0 %v1288
        %3140 = vmatprep.subr.mxu0 %v1257
        %3141 = vmatpush2.msra.mxu0 %v1256
        %3142 = vmatprep.subr.mxu0 %v1225
        %3143 = vmatpush2.msra.mxu0 %v1224
        %3144 = vmatprep.subr.mxu0 %v1193
        %3145 = vmatpush2.msra.mxu0 %v1192
        %3146 = vmatprep.subr.mxu0 %v1161
        %3147 = vmatpush2.msra.mxu0 %v1160
        %3148 = vmatprep.subr.mxu0 %v1129
        %3149 = vmatpush2.msra.mxu0 %v1128
        %3150 = vmatprep.subr.mxu0 %v1097
        %3151 = vmatpush2.msra.mxu0 %v1096
        %3152 = vmatprep.subr.mxu0 %v1065
        %3153 = vmatpush2.msra.mxu0 %v1064
        %3154 = vmatprep.subr.mxu0 %v1033
        %3155 = vmatpush2.msra.mxu0 %v1032
        %3156 = vmatprep.subr.mxu0 %v1001
        %3157 = vmatpush2.msra.mxu0 %v1000
        %3158 = vmatprep.subr.mxu0 %v969
        %3159 = vmatpush2.msra.mxu0 %v968
        %3160 = vmatprep.subr.mxu0 %v937
        %3161 = vmatpush2.msra.mxu0 %v936
        %3162 = vmatprep.subr.mxu0 %v905
        %3163 = vmatpush2.msra.mxu0 %v904
        %3164 = vmatprep.subr.mxu0 %v873
        %3165 = vmatpush2.msra.mxu0 %v872
        %3166 = vmatprep.subr.mxu0 %v841
        %3167 = vmatpush2.msra.mxu0 %v840
        %3168 = vmatprep.subr.mxu0 %v809
        %3169 = vmatpush2.msra.mxu0 %v808
        %3170 = vmatprep.mubr.f32.mxu0 %v1465
        %3171 = vmatmul.mubr.f32.gmra.mxu0 %v1463
        %v3172 = vpop.f32.mrf.mxu0
        %v3173 = vadd.f32 0.0, %v3172
        %v3174 = vpop.f32.mrf.mxu0
        %v3175 = vadd.f32 0.0, %v3174
        %3176 = vdwg.mxu0
        %3177 = vmatprep.subr.mxu0 %v779
        %3178 = vmatpush1.msra.mxu0 %v778
        %3179 = vmatprep.subr.mxu0 %v747
        %3180 = vmatpush1.msra.mxu0 %v746
        %3181 = vmatprep.subr.mxu0 %v715
        %3182 = vmatpush1.msra.mxu0 %v714
        %3183 = vmatprep.subr.mxu0 %v683
        %3184 = vmatpush1.msra.mxu0 %v682
        %3185 = vmatprep.subr.mxu0 %v651
        %3186 = vmatpush1.msra.mxu0 %v650
        %3187 = vmatprep.subr.mxu0 %v619
        %3188 = vmatpush1.msra.mxu0 %v618
        %3189 = vmatprep.subr.mxu0 %v587
        %3190 = vmatpush1.msra.mxu0 %v586
        %3191 = vmatprep.subr.mxu0 %v555
        %3192 = vmatpush1.msra.mxu0 %v554
        %3193 = vmatprep.subr.mxu0 %v523
        %3194 = vmatpush1.msra.mxu0 %v522
        %3195 = vmatprep.subr.mxu0 %v491
        %3196 = vmatpush1.msra.mxu0 %v490
        %3197 = vmatprep.subr.mxu0 %v459
        %3198 = vmatpush1.msra.mxu0 %v458
        %3199 = vmatprep.subr.mxu0 %v427
        %3200 = vmatpush1.msra.mxu0 %v426
        %3201 = vmatprep.subr.mxu0 %v395
        %3202 = vmatpush1.msra.mxu0 %v394
        %3203 = vmatprep.subr.mxu0 %v363
        %3204 = vmatpush1.msra.mxu0 %v362
        %3205 = vmatprep.subr.mxu0 %v331
        %3206 = vmatpush1.msra.mxu0 %v330
        %3207 = vmatprep.subr.mxu0 %v299
        %3208 = vmatpush1.msra.mxu0 %v298
        %3209 = vmatprep.subr.mxu0 %v1291
        %3210 = vmatpush2.msra.mxu0 %v1290
        %3211 = vmatprep.subr.mxu0 %v1259
        %3212 = vmatpush2.msra.mxu0 %v1258
        %3213 = vmatprep.subr.mxu0 %v1227
        %3214 = vmatpush2.msra.mxu0 %v1226
        %3215 = vmatprep.subr.mxu0 %v1195
        %3216 = vmatpush2.msra.mxu0 %v1194
        %3217 = vmatprep.subr.mxu0 %v1163
        %3218 = vmatpush2.msra.mxu0 %v1162
        %3219 = vmatprep.subr.mxu0 %v1131
        %3220 = vmatpush2.msra.mxu0 %v1130
        %3221 = vmatprep.subr.mxu0 %v1099
        %3222 = vmatpush2.msra.mxu0 %v1098
        %3223 = vmatprep.subr.mxu0 %v1067
        %3224 = vmatpush2.msra.mxu0 %v1066
        %3225 = vmatprep.subr.mxu0 %v1035
        %3226 = vmatpush2.msra.mxu0 %v1034
        %3227 = vmatprep.subr.mxu0 %v1003
        %3228 = vmatpush2.msra.mxu0 %v1002
        %3229 = vmatprep.subr.mxu0 %v971
        %3230 = vmatpush2.msra.mxu0 %v970
        %3231 = vmatprep.subr.mxu0 %v939
        %3232 = vmatpush2.msra.mxu0 %v938
        %3233 = vmatprep.subr.mxu0 %v907
        %3234 = vmatpush2.msra.mxu0 %v906
        %3235 = vmatprep.subr.mxu0 %v875
        %3236 = vmatpush2.msra.mxu0 %v874
        %3237 = vmatprep.subr.mxu0 %v843
        %3238 = vmatpush2.msra.mxu0 %v842
        %3239 = vmatprep.subr.mxu0 %v811
        %3240 = vmatpush2.msra.mxu0 %v810
        %3241 = vmatprep.mubr.f32.mxu0 %v1465
        %3242 = vmatmul.mubr.f32.gmra.mxu0 %v1463
        %v3243 = vpop.f32.mrf.mxu0
        %v3244 = vadd.f32 0.0, %v3243
        %v3245 = vpop.f32.mrf.mxu0
        %v3246 = vadd.f32 0.0, %v3245
        %3247 = vdwg.mxu0
        %3248 = vmatprep.subr.mxu0 %v781
        %3249 = vmatpush1.msra.mxu0 %v780
        %3250 = vmatprep.subr.mxu0 %v749
        %3251 = vmatpush1.msra.mxu0 %v748
        %3252 = vmatprep.subr.mxu0 %v717
        %3253 = vmatpush1.msra.mxu0 %v716
        %3254 = vmatprep.subr.mxu0 %v685
        %3255 = vmatpush1.msra.mxu0 %v684
        %3256 = vmatprep.subr.mxu0 %v653
        %3257 = vmatpush1.msra.mxu0 %v652
        %3258 = vmatprep.subr.mxu0 %v621
        %3259 = vmatpush1.msra.mxu0 %v620
        %3260 = vmatprep.subr.mxu0 %v589
        %3261 = vmatpush1.msra.mxu0 %v588
        %3262 = vmatprep.subr.mxu0 %v557
        %3263 = vmatpush1.msra.mxu0 %v556
        %3264 = vmatprep.subr.mxu0 %v525
        %3265 = vmatpush1.msra.mxu0 %v524
        %3266 = vmatprep.subr.mxu0 %v493
        %3267 = vmatpush1.msra.mxu0 %v492
        %3268 = vmatprep.subr.mxu0 %v461
        %3269 = vmatpush1.msra.mxu0 %v460
        %3270 = vmatprep.subr.mxu0 %v429
        %3271 = vmatpush1.msra.mxu0 %v428
        %3272 = vmatprep.subr.mxu0 %v397
        %3273 = vmatpush1.msra.mxu0 %v396
        %3274 = vmatprep.subr.mxu0 %v365
        %3275 = vmatpush1.msra.mxu0 %v364
        %3276 = vmatprep.subr.mxu0 %v333
        %3277 = vmatpush1.msra.mxu0 %v332
        %3278 = vmatprep.subr.mxu0 %v301
        %3279 = vmatpush1.msra.mxu0 %v300
        %3280 = vmatprep.subr.mxu0 %v1293
        %3281 = vmatpush2.msra.mxu0 %v1292
        %3282 = vmatprep.subr.mxu0 %v1261
        %3283 = vmatpush2.msra.mxu0 %v1260
        %3284 = vmatprep.subr.mxu0 %v1229
        %3285 = vmatpush2.msra.mxu0 %v1228
        %3286 = vmatprep.subr.mxu0 %v1197
        %3287 = vmatpush2.msra.mxu0 %v1196
        %3288 = vmatprep.subr.mxu0 %v1165
        %3289 = vmatpush2.msra.mxu0 %v1164
        %3290 = vmatprep.subr.mxu0 %v1133
        %3291 = vmatpush2.msra.mxu0 %v1132
        %3292 = vmatprep.subr.mxu0 %v1101
        %3293 = vmatpush2.msra.mxu0 %v1100
        %3294 = vmatprep.subr.mxu0 %v1069
        %3295 = vmatpush2.msra.mxu0 %v1068
        %3296 = vmatprep.subr.mxu0 %v1037
        %3297 = vmatpush2.msra.mxu0 %v1036
        %3298 = vmatprep.subr.mxu0 %v1005
        %3299 = vmatpush2.msra.mxu0 %v1004
        %3300 = vmatprep.subr.mxu0 %v973
        %3301 = vmatpush2.msra.mxu0 %v972
        %3302 = vmatprep.subr.mxu0 %v941
        %3303 = vmatpush2.msra.mxu0 %v940
        %3304 = vmatprep.subr.mxu0 %v909
        %3305 = vmatpush2.msra.mxu0 %v908
        %3306 = vmatprep.subr.mxu0 %v877
        %3307 = vmatpush2.msra.mxu0 %v876
        %3308 = vmatprep.subr.mxu0 %v845
        %3309 = vmatpush2.msra.mxu0 %v844
        %3310 = vmatprep.subr.mxu0 %v813
        %3311 = vmatpush2.msra.mxu0 %v812
        %3312 = vmatprep.mubr.f32.mxu0 %v1465
        %3313 = vmatmul.mubr.f32.gmra.mxu0 %v1463
        %v3314 = vpop.f32.mrf.mxu0
        %v3315 = vadd.f32 0.0, %v3314
        %v3316 = vpop.f32.mrf.mxu0
        %v3317 = vadd.f32 0.0, %v3316
        %3318 = vdwg.mxu0
        %3319 = vmatprep.subr.mxu0 %v783
        %3320 = vmatpush1.msra.mxu0 %v782
        %3321 = vmatprep.subr.mxu0 %v751
        %3322 = vmatpush1.msra.mxu0 %v750
        %3323 = vmatprep.subr.mxu0 %v719
        %3324 = vmatpush1.msra.mxu0 %v718
        %3325 = vmatprep.subr.mxu0 %v687
        %3326 = vmatpush1.msra.mxu0 %v686
        %3327 = vmatprep.subr.mxu0 %v655
        %3328 = vmatpush1.msra.mxu0 %v654
        %3329 = vmatprep.subr.mxu0 %v623
        %3330 = vmatpush1.msra.mxu0 %v622
        %3331 = vmatprep.subr.mxu0 %v591
        %3332 = vmatpush1.msra.mxu0 %v590
        %3333 = vmatprep.subr.mxu0 %v559
        %3334 = vmatpush1.msra.mxu0 %v558
        %3335 = vmatprep.subr.mxu0 %v527
        %3336 = vmatpush1.msra.mxu0 %v526
        %3337 = vmatprep.subr.mxu0 %v495
        %3338 = vmatpush1.msra.mxu0 %v494
        %3339 = vmatprep.subr.mxu0 %v463
        %3340 = vmatpush1.msra.mxu0 %v462
        %3341 = vmatprep.subr.mxu0 %v431
        %3342 = vmatpush1.msra.mxu0 %v430
        %3343 = vmatprep.subr.mxu0 %v399
        %3344 = vmatpush1.msra.mxu0 %v398
        %3345 = vmatprep.subr.mxu0 %v367
        %3346 = vmatpush1.msra.mxu0 %v366
        %3347 = vmatprep.subr.mxu0 %v335
        %3348 = vmatpush1.msra.mxu0 %v334
        %3349 = vmatprep.subr.mxu0 %v303
        %3350 = vmatpush1.msra.mxu0 %v302
        %3351 = vmatprep.subr.mxu0 %v1295
        %3352 = vmatpush2.msra.mxu0 %v1294
        %3353 = vmatprep.subr.mxu0 %v1263
        %3354 = vmatpush2.msra.mxu0 %v1262
        %3355 = vmatprep.subr.mxu0 %v1231
        %3356 = vmatpush2.msra.mxu0 %v1230
        %3357 = vmatprep.subr.mxu0 %v1199
        %3358 = vmatpush2.msra.mxu0 %v1198
        %3359 = vmatprep.subr.mxu0 %v1167
        %3360 = vmatpush2.msra.mxu0 %v1166
        %3361 = vmatprep.subr.mxu0 %v1135
        %3362 = vmatpush2.msra.mxu0 %v1134
        %3363 = vmatprep.subr.mxu0 %v1103
        %3364 = vmatpush2.msra.mxu0 %v1102
        %3365 = vmatprep.subr.mxu0 %v1071
        %3366 = vmatpush2.msra.mxu0 %v1070
        %3367 = vmatprep.subr.mxu0 %v1039
        %3368 = vmatpush2.msra.mxu0 %v1038
        %3369 = vmatprep.subr.mxu0 %v1007
        %3370 = vmatpush2.msra.mxu0 %v1006
        %3371 = vmatprep.subr.mxu0 %v975
        %3372 = vmatpush2.msra.mxu0 %v974
        %3373 = vmatprep.subr.mxu0 %v943
        %3374 = vmatpush2.msra.mxu0 %v942
        %3375 = vmatprep.subr.mxu0 %v911
        %3376 = vmatpush2.msra.mxu0 %v910
        %3377 = vmatprep.subr.mxu0 %v879
        %3378 = vmatpush2.msra.mxu0 %v878
        %3379 = vmatprep.subr.mxu0 %v847
        %3380 = vmatpush2.msra.mxu0 %v846
        %3381 = vmatprep.subr.mxu0 %v815
        %3382 = vmatpush2.msra.mxu0 %v814
        %3383 = vmatprep.mubr.f32.mxu0 %v1465
        %3384 = vmatmul.mubr.f32.gmra.mxu0 %v1463
        %v3385 = vpop.f32.mrf.mxu0
        %v3386 = vadd.f32 0.0, %v3385
        %v3387 = vpop.f32.mrf.mxu0
        %v3388 = vadd.f32 0.0, %v3387
        %3389 = vdwg.mxu0
        %3390 = vmatprep.subr.mxu0 %v785
        %3391 = vmatpush1.msra.mxu0 %v784
        %3392 = vmatprep.subr.mxu0 %v753
        %3393 = vmatpush1.msra.mxu0 %v752
        %3394 = vmatprep.subr.mxu0 %v721
        %3395 = vmatpush1.msra.mxu0 %v720
        %3396 = vmatprep.subr.mxu0 %v689
        %3397 = vmatpush1.msra.mxu0 %v688
        %3398 = vmatprep.subr.mxu0 %v657
        %3399 = vmatpush1.msra.mxu0 %v656
        %3400 = vmatprep.subr.mxu0 %v625
        %3401 = vmatpush1.msra.mxu0 %v624
        %3402 = vmatprep.subr.mxu0 %v593
        %3403 = vmatpush1.msra.mxu0 %v592
        %3404 = vmatprep.subr.mxu0 %v561
        %3405 = vmatpush1.msra.mxu0 %v560
        %3406 = vmatprep.subr.mxu0 %v529
        %3407 = vmatpush1.msra.mxu0 %v528
        %3408 = vmatprep.subr.mxu0 %v497
        %3409 = vmatpush1.msra.mxu0 %v496
        %3410 = vmatprep.subr.mxu0 %v465
        %3411 = vmatpush1.msra.mxu0 %v464
        %3412 = vmatprep.subr.mxu0 %v433
        %3413 = vmatpush1.msra.mxu0 %v432
        %3414 = vmatprep.subr.mxu0 %v401
        %3415 = vmatpush1.msra.mxu0 %v400
        %3416 = vmatprep.subr.mxu0 %v369
        %3417 = vmatpush1.msra.mxu0 %v368
        %3418 = vmatprep.subr.mxu0 %v337
        %3419 = vmatpush1.msra.mxu0 %v336
        %3420 = vmatprep.subr.mxu0 %v305
        %3421 = vmatpush1.msra.mxu0 %v304
        %3422 = vmatprep.subr.mxu0 %v1297
        %3423 = vmatpush2.msra.mxu0 %v1296
        %3424 = vmatprep.subr.mxu0 %v1265
        %3425 = vmatpush2.msra.mxu0 %v1264
        %3426 = vmatprep.subr.mxu0 %v1233
        %3427 = vmatpush2.msra.mxu0 %v1232
        %3428 = vmatprep.subr.mxu0 %v1201
        %3429 = vmatpush2.msra.mxu0 %v1200
        %3430 = vmatprep.subr.mxu0 %v1169
        %3431 = vmatpush2.msra.mxu0 %v1168
        %3432 = vmatprep.subr.mxu0 %v1137
        %3433 = vmatpush2.msra.mxu0 %v1136
        %3434 = vmatprep.subr.mxu0 %v1105
        %3435 = vmatpush2.msra.mxu0 %v1104
        %3436 = vmatprep.subr.mxu0 %v1073
        %3437 = vmatpush2.msra.mxu0 %v1072
        %3438 = vmatprep.subr.mxu0 %v1041
        %3439 = vmatpush2.msra.mxu0 %v1040
        %3440 = vmatprep.subr.mxu0 %v1009
        %3441 = vmatpush2.msra.mxu0 %v1008
        %3442 = vmatprep.subr.mxu0 %v977
        %3443 = vmatpush2.msra.mxu0 %v976
        %3444 = vmatprep.subr.mxu0 %v945
        %3445 = vmatpush2.msra.mxu0 %v944
        %3446 = vmatprep.subr.mxu0 %v913
        %3447 = vmatpush2.msra.mxu0 %v912
        %3448 = vmatprep.subr.mxu0 %v881
        %3449 = vmatpush2.msra.mxu0 %v880
        %3450 = vmatprep.subr.mxu0 %v849
        %3451 = vmatpush2.msra.mxu0 %v848
        %3452 = vmatprep.subr.mxu0 %v817
        %3453 = vmatpush2.msra.mxu0 %v816
        %3454 = vmatprep.mubr.f32.mxu0 %v1465
        %3455 = vmatmul.mubr.f32.gmra.mxu0 %v1463
        %v3456 = vpop.f32.mrf.mxu0
        %v3457 = vadd.f32 0.0, %v3456
        %v3458 = vpop.f32.mrf.mxu0
        %v3459 = vadd.f32 0.0, %v3458
        %3460 = vdwg.mxu0
        %3461 = vmatprep.subr.mxu0 %v787
        %3462 = vmatpush1.msra.mxu0 %v786
        %3463 = vmatprep.subr.mxu0 %v755
        %3464 = vmatpush1.msra.mxu0 %v754
        %3465 = vmatprep.subr.mxu0 %v723
        %3466 = vmatpush1.msra.mxu0 %v722
        %3467 = vmatprep.subr.mxu0 %v691
        %3468 = vmatpush1.msra.mxu0 %v690
        %3469 = vmatprep.subr.mxu0 %v659
        %3470 = vmatpush1.msra.mxu0 %v658
        %3471 = vmatprep.subr.mxu0 %v627
        %3472 = vmatpush1.msra.mxu0 %v626
        %3473 = vmatprep.subr.mxu0 %v595
        %3474 = vmatpush1.msra.mxu0 %v594
        %3475 = vmatprep.subr.mxu0 %v563
        %3476 = vmatpush1.msra.mxu0 %v562
        %3477 = vmatprep.subr.mxu0 %v531
        %3478 = vmatpush1.msra.mxu0 %v530
        %3479 = vmatprep.subr.mxu0 %v499
        %3480 = vmatpush1.msra.mxu0 %v498
        %3481 = vmatprep.subr.mxu0 %v467
        %3482 = vmatpush1.msra.mxu0 %v466
        %3483 = vmatprep.subr.mxu0 %v435
        %3484 = vmatpush1.msra.mxu0 %v434
        %3485 = vmatprep.subr.mxu0 %v403
        %3486 = vmatpush1.msra.mxu0 %v402
        %3487 = vmatprep.subr.mxu0 %v371
        %3488 = vmatpush1.msra.mxu0 %v370
        %3489 = vmatprep.subr.mxu0 %v339
        %3490 = vmatpush1.msra.mxu0 %v338
        %3491 = vmatprep.subr.mxu0 %v307
        %3492 = vmatpush1.msra.mxu0 %v306
        %3493 = vmatprep.subr.mxu0 %v1299
        %3494 = vmatpush2.msra.mxu0 %v1298
        %3495 = vmatprep.subr.mxu0 %v1267
        %3496 = vmatpush2.msra.mxu0 %v1266
        %3497 = vmatprep.subr.mxu0 %v1235
        %3498 = vmatpush2.msra.mxu0 %v1234
        %3499 = vmatprep.subr.mxu0 %v1203
        %3500 = vmatpush2.msra.mxu0 %v1202
        %3501 = vmatprep.subr.mxu0 %v1171
        %3502 = vmatpush2.msra.mxu0 %v1170
        %3503 = vmatprep.subr.mxu0 %v1139
        %3504 = vmatpush2.msra.mxu0 %v1138
        %3505 = vmatprep.subr.mxu0 %v1107
        %3506 = vmatpush2.msra.mxu0 %v1106
        %3507 = vmatprep.subr.mxu0 %v1075
        %3508 = vmatpush2.msra.mxu0 %v1074
        %3509 = vmatprep.subr.mxu0 %v1043
        %3510 = vmatpush2.msra.mxu0 %v1042
        %3511 = vmatprep.subr.mxu0 %v1011
        %3512 = vmatpush2.msra.mxu0 %v1010
        %3513 = vmatprep.subr.mxu0 %v979
        %3514 = vmatpush2.msra.mxu0 %v978
        %3515 = vmatprep.subr.mxu0 %v947
        %3516 = vmatpush2.msra.mxu0 %v946
        %3517 = vmatprep.subr.mxu0 %v915
        %3518 = vmatpush2.msra.mxu0 %v914
        %3519 = vmatprep.subr.mxu0 %v883
        %3520 = vmatpush2.msra.mxu0 %v882
        %3521 = vmatprep.subr.mxu0 %v851
        %3522 = vmatpush2.msra.mxu0 %v850
        %3523 = vmatprep.subr.mxu0 %v819
        %3524 = vmatpush2.msra.mxu0 %v818
        %3525 = vmatprep.mubr.f32.mxu0 %v1465
        %3526 = vmatmul.mubr.f32.gmra.mxu0 %v1463
        %v3527 = vpop.f32.mrf.mxu0
        %v3528 = vadd.f32 0.0, %v3527
        %v3529 = vpop.f32.mrf.mxu0
        %v3530 = vadd.f32 0.0, %v3529
        %3531 = vdwg.mxu0
        %3532 = vmatprep.subr.mxu0 %v789
        %3533 = vmatpush1.msra.mxu0 %v788
        %3534 = vmatprep.subr.mxu0 %v757
        %3535 = vmatpush1.msra.mxu0 %v756
        %3536 = vmatprep.subr.mxu0 %v725
        %3537 = vmatpush1.msra.mxu0 %v724
        %3538 = vmatprep.subr.mxu0 %v693
        %3539 = vmatpush1.msra.mxu0 %v692
        %3540 = vmatprep.subr.mxu0 %v661
        %3541 = vmatpush1.msra.mxu0 %v660
        %3542 = vmatprep.subr.mxu0 %v629
        %3543 = vmatpush1.msra.mxu0 %v628
        %3544 = vmatprep.subr.mxu0 %v597
        %3545 = vmatpush1.msra.mxu0 %v596
        %3546 = vmatprep.subr.mxu0 %v565
        %3547 = vmatpush1.msra.mxu0 %v564
        %3548 = vmatprep.subr.mxu0 %v533
        %3549 = vmatpush1.msra.mxu0 %v532
        %3550 = vmatprep.subr.mxu0 %v501
        %3551 = vmatpush1.msra.mxu0 %v500
        %3552 = vmatprep.subr.mxu0 %v469
        %3553 = vmatpush1.msra.mxu0 %v468
        %3554 = vmatprep.subr.mxu0 %v437
        %3555 = vmatpush1.msra.mxu0 %v436
        %3556 = vmatprep.subr.mxu0 %v405
        %3557 = vmatpush1.msra.mxu0 %v404
        %3558 = vmatprep.subr.mxu0 %v373
        %3559 = vmatpush1.msra.mxu0 %v372
        %3560 = vmatprep.subr.mxu0 %v341
        %3561 = vmatpush1.msra.mxu0 %v340
        %3562 = vmatprep.subr.mxu0 %v309
        %3563 = vmatpush1.msra.mxu0 %v308
        %3564 = vmatprep.subr.mxu0 %v1301
        %3565 = vmatpush2.msra.mxu0 %v1300
        %3566 = vmatprep.subr.mxu0 %v1269
        %3567 = vmatpush2.msra.mxu0 %v1268
        %3568 = vmatprep.subr.mxu0 %v1237
        %3569 = vmatpush2.msra.mxu0 %v1236
        %3570 = vmatprep.subr.mxu0 %v1205
        %3571 = vmatpush2.msra.mxu0 %v1204
        %3572 = vmatprep.subr.mxu0 %v1173
        %3573 = vmatpush2.msra.mxu0 %v1172
        %3574 = vmatprep.subr.mxu0 %v1141
        %3575 = vmatpush2.msra.mxu0 %v1140
        %3576 = vmatprep.subr.mxu0 %v1109
        %3577 = vmatpush2.msra.mxu0 %v1108
        %3578 = vmatprep.subr.mxu0 %v1077
        %3579 = vmatpush2.msra.mxu0 %v1076
        %3580 = vmatprep.subr.mxu0 %v1045
        %3581 = vmatpush2.msra.mxu0 %v1044
        %3582 = vmatprep.subr.mxu0 %v1013
        %3583 = vmatpush2.msra.mxu0 %v1012
        %3584 = vmatprep.subr.mxu0 %v981
        %3585 = vmatpush2.msra.mxu0 %v980
        %3586 = vmatprep.subr.mxu0 %v949
        %3587 = vmatpush2.msra.mxu0 %v948
        %3588 = vmatprep.subr.mxu0 %v917
        %3589 = vmatpush2.msra.mxu0 %v916
        %3590 = vmatprep.subr.mxu0 %v885
        %3591 = vmatpush2.msra.mxu0 %v884
        %3592 = vmatprep.subr.mxu0 %v853
        %3593 = vmatpush2.msra.mxu0 %v852
        %3594 = vmatprep.subr.mxu0 %v821
        %3595 = vmatpush2.msra.mxu0 %v820
        %3596 = vmatprep.mubr.f32.mxu0 %v1465
        %3597 = vmatmul.mubr.f32.gmra.mxu0 %v1463
        %v3598 = vpop.f32.mrf.mxu0
        %v3599 = vadd.f32 0.0, %v3598
        %v3600 = vpop.f32.mrf.mxu0
        %v3601 = vadd.f32 0.0, %v3600
        %3602 = vdwg.mxu0
        %3603 = vmatprep.subr.mxu0 %v791
        %3604 = vmatpush1.msra.mxu0 %v790
        %3605 = vmatprep.subr.mxu0 %v759
        %3606 = vmatpush1.msra.mxu0 %v758
        %3607 = vmatprep.subr.mxu0 %v727
        %3608 = vmatpush1.msra.mxu0 %v726
        %3609 = vmatprep.subr.mxu0 %v695
        %3610 = vmatpush1.msra.mxu0 %v694
        %3611 = vmatprep.subr.mxu0 %v663
        %3612 = vmatpush1.msra.mxu0 %v662
        %3613 = vmatprep.subr.mxu0 %v631
        %3614 = vmatpush1.msra.mxu0 %v630
        %3615 = vmatprep.subr.mxu0 %v599
        %3616 = vmatpush1.msra.mxu0 %v598
        %3617 = vmatprep.subr.mxu0 %v567
        %3618 = vmatpush1.msra.mxu0 %v566
        %3619 = vmatprep.subr.mxu0 %v535
        %3620 = vmatpush1.msra.mxu0 %v534
        %3621 = vmatprep.subr.mxu0 %v503
        %3622 = vmatpush1.msra.mxu0 %v502
        %3623 = vmatprep.subr.mxu0 %v471
        %3624 = vmatpush1.msra.mxu0 %v470
        %3625 = vmatprep.subr.mxu0 %v439
        %3626 = vmatpush1.msra.mxu0 %v438
        %3627 = vmatprep.subr.mxu0 %v407
        %3628 = vmatpush1.msra.mxu0 %v406
        %3629 = vmatprep.subr.mxu0 %v375
        %3630 = vmatpush1.msra.mxu0 %v374
        %3631 = vmatprep.subr.mxu0 %v343
        %3632 = vmatpush1.msra.mxu0 %v342
        %3633 = vmatprep.subr.mxu0 %v311
        %3634 = vmatpush1.msra.mxu0 %v310
        %3635 = vmatprep.subr.mxu0 %v1303
        %3636 = vmatpush2.msra.mxu0 %v1302
        %3637 = vmatprep.subr.mxu0 %v1271
        %3638 = vmatpush2.msra.mxu0 %v1270
        %3639 = vmatprep.subr.mxu0 %v1239
        %3640 = vmatpush2.msra.mxu0 %v1238
        %3641 = vmatprep.subr.mxu0 %v1207
        %3642 = vmatpush2.msra.mxu0 %v1206
        %3643 = vmatprep.subr.mxu0 %v1175
        %3644 = vmatpush2.msra.mxu0 %v1174
        %3645 = vmatprep.subr.mxu0 %v1143
        %3646 = vmatpush2.msra.mxu0 %v1142
        %3647 = vmatprep.subr.mxu0 %v1111
        %3648 = vmatpush2.msra.mxu0 %v1110
        %3649 = vmatprep.subr.mxu0 %v1079
        %3650 = vmatpush2.msra.mxu0 %v1078
        %3651 = vmatprep.subr.mxu0 %v1047
        %3652 = vmatpush2.msra.mxu0 %v1046
        %3653 = vmatprep.subr.mxu0 %v1015
        %3654 = vmatpush2.msra.mxu0 %v1014
        %3655 = vmatprep.subr.mxu0 %v983
        %3656 = vmatpush2.msra.mxu0 %v982
        %3657 = vmatprep.subr.mxu0 %v951
        %3658 = vmatpush2.msra.mxu0 %v950
        %3659 = vmatprep.subr.mxu0 %v919
        %3660 = vmatpush2.msra.mxu0 %v918
        %3661 = vmatprep.subr.mxu0 %v887
        %3662 = vmatpush2.msra.mxu0 %v886
        %3663 = vmatprep.subr.mxu0 %v855
        %3664 = vmatpush2.msra.mxu0 %v854
        %3665 = vmatprep.subr.mxu0 %v823
        %3666 = vmatpush2.msra.mxu0 %v822
        %3667 = vmatprep.mubr.f32.mxu0 %v1465
        %3668 = vmatmul.mubr.f32.gmra.mxu0 %v1463
        %v3669 = vpop.f32.mrf.mxu0
        %v3670 = vadd.f32 0.0, %v3669
        %v3671 = vpop.f32.mrf.mxu0
        %v3672 = vadd.f32 0.0, %v3671
        %3673 = vdwg.mxu0
        %3674 = vmatprep.subr.mxu0 %v793
        %3675 = vmatpush1.msra.mxu0 %v792
        %3676 = vmatprep.subr.mxu0 %v761
        %3677 = vmatpush1.msra.mxu0 %v760
        %3678 = vmatprep.subr.mxu0 %v729
        %3679 = vmatpush1.msra.mxu0 %v728
        %3680 = vmatprep.subr.mxu0 %v697
        %3681 = vmatpush1.msra.mxu0 %v696
        %3682 = vmatprep.subr.mxu0 %v665
        %3683 = vmatpush1.msra.mxu0 %v664
        %3684 = vmatprep.subr.mxu0 %v633
        %3685 = vmatpush1.msra.mxu0 %v632
        %3686 = vmatprep.subr.mxu0 %v601
        %3687 = vmatpush1.msra.mxu0 %v600
        %3688 = vmatprep.subr.mxu0 %v569
        %3689 = vmatpush1.msra.mxu0 %v568
        %3690 = vmatprep.subr.mxu0 %v537
        %3691 = vmatpush1.msra.mxu0 %v536
        %3692 = vmatprep.subr.mxu0 %v505
        %3693 = vmatpush1.msra.mxu0 %v504
        %3694 = vmatprep.subr.mxu0 %v473
        %3695 = vmatpush1.msra.mxu0 %v472
        %3696 = vmatprep.subr.mxu0 %v441
        %3697 = vmatpush1.msra.mxu0 %v440
        %3698 = vmatprep.subr.mxu0 %v409
        %3699 = vmatpush1.msra.mxu0 %v408
        %3700 = vmatprep.subr.mxu0 %v377
        %3701 = vmatpush1.msra.mxu0 %v376
        %3702 = vmatprep.subr.mxu0 %v345
        %3703 = vmatpush1.msra.mxu0 %v344
        %3704 = vmatprep.subr.mxu0 %v313
        %3705 = vmatpush1.msra.mxu0 %v312
        %3706 = vmatprep.subr.mxu0 %v1305
        %3707 = vmatpush2.msra.mxu0 %v1304
        %3708 = vmatprep.subr.mxu0 %v1273
        %3709 = vmatpush2.msra.mxu0 %v1272
        %3710 = vmatprep.subr.mxu0 %v1241
        %3711 = vmatpush2.msra.mxu0 %v1240
        %3712 = vmatprep.subr.mxu0 %v1209
        %3713 = vmatpush2.msra.mxu0 %v1208
        %3714 = vmatprep.subr.mxu0 %v1177
        %3715 = vmatpush2.msra.mxu0 %v1176
        %3716 = vmatprep.subr.mxu0 %v1145
        %3717 = vmatpush2.msra.mxu0 %v1144
        %3718 = vmatprep.subr.mxu0 %v1113
        %3719 = vmatpush2.msra.mxu0 %v1112
        %3720 = vmatprep.subr.mxu0 %v1081
        %3721 = vmatpush2.msra.mxu0 %v1080
        %3722 = vmatprep.subr.mxu0 %v1049
        %3723 = vmatpush2.msra.mxu0 %v1048
        %3724 = vmatprep.subr.mxu0 %v1017
        %3725 = vmatpush2.msra.mxu0 %v1016
        %3726 = vmatprep.subr.mxu0 %v985
        %3727 = vmatpush2.msra.mxu0 %v984
        %3728 = vmatprep.subr.mxu0 %v953
        %3729 = vmatpush2.msra.mxu0 %v952
        %3730 = vmatprep.subr.mxu0 %v921
        %3731 = vmatpush2.msra.mxu0 %v920
        %3732 = vmatprep.subr.mxu0 %v889
        %3733 = vmatpush2.msra.mxu0 %v888
        %3734 = vmatprep.subr.mxu0 %v857
        %3735 = vmatpush2.msra.mxu0 %v856
        %3736 = vmatprep.subr.mxu0 %v825
        %3737 = vmatpush2.msra.mxu0 %v824
        %3738 = vmatprep.mubr.f32.mxu0 %v1465
        %3739 = vmatmul.mubr.f32.gmra.mxu0 %v1463
        %v3740 = vpop.f32.mrf.mxu0
        %v3741 = vadd.f32 0.0, %v3740
        %v3742 = vpop.f32.mrf.mxu0
        %v3743 = vadd.f32 0.0, %v3742
        %3744 = vdwg.mxu0
        %v3745 = vmax.f32 %v1540, 0.0
        %v3746 = vmax.f32 %v1542, 0.0
        %v3747 = vmax.f32 %v1611, 0.0
        %v3748 = vmax.f32 %v1613, 0.0
        %v3749 = vmax.f32 %v1682, 0.0
        %v3750 = vmax.f32 %v1684, 0.0
        %v3751 = vmax.f32 %v1753, 0.0
        %v3752 = vmax.f32 %v1755, 0.0
        %v3753 = vmax.f32 %v1824, 0.0
        %v3754 = vmax.f32 %v1826, 0.0
        %v3755 = vmax.f32 %v1895, 0.0
        %v3756 = vmax.f32 %v1897, 0.0
        %v3757 = vmax.f32 %v1966, 0.0
        %v3758 = vmax.f32 %v1968, 0.0
        %v3759 = vmax.f32 %v2037, 0.0
        %v3760 = vmax.f32 %v2039, 0.0
        %v3761 = vmax.f32 %v2108, 0.0
        %v3762 = vmax.f32 %v2110, 0.0
        %v3763 = vmax.f32 %v2179, 0.0
        %v3764 = vmax.f32 %v2181, 0.0
        %v3765 = vmax.f32 %v2250, 0.0
        %v3766 = vmax.f32 %v2252, 0.0
        %v3767 = vmax.f32 %v2321, 0.0
        %v3768 = vmax.f32 %v2323, 0.0
        %v3769 = vmax.f32 %v2392, 0.0
        %v3770 = vmax.f32 %v2394, 0.0
        %v3771 = vmax.f32 %v2463, 0.0
        %v3772 = vmax.f32 %v2465, 0.0
        %v3773 = vmax.f32 %v2534, 0.0
        %v3774 = vmax.f32 %v2536, 0.0
        %v3775 = vmax.f32 %v2605, 0.0
        %v3776 = vmax.f32 %v2607, 0.0
        %v3777 = vmin.f32 %v3745, 1.0
        %v3778 = vmin.f32 %v3746, 1.0
        %v3779 = vmin.f32 %v3747, 1.0
        %v3780 = vmin.f32 %v3748, 1.0
        %v3781 = vmin.f32 %v3749, 1.0
        %v3782 = vmin.f32 %v3750, 1.0
        %v3783 = vmin.f32 %v3751, 1.0
        %v3784 = vmin.f32 %v3752, 1.0
        %v3785 = vmin.f32 %v3753, 1.0
        %v3786 = vmin.f32 %v3754, 1.0
        %v3787 = vmin.f32 %v3755, 1.0
        %v3788 = vmin.f32 %v3756, 1.0
        %v3789 = vmin.f32 %v3757, 1.0
        %v3790 = vmin.f32 %v3758, 1.0
        %v3791 = vmin.f32 %v3759, 1.0
        %v3792 = vmin.f32 %v3760, 1.0
        %v3793 = vmin.f32 %v3761, 1.0
        %v3794 = vmin.f32 %v3762, 1.0
        %v3795 = vmin.f32 %v3763, 1.0
        %v3796 = vmin.f32 %v3764, 1.0
        %v3797 = vmin.f32 %v3765, 1.0
        %v3798 = vmin.f32 %v3766, 1.0
        %v3799 = vmin.f32 %v3767, 1.0
        %v3800 = vmin.f32 %v3768, 1.0
        %v3801 = vmin.f32 %v3769, 1.0
        %v3802 = vmin.f32 %v3770, 1.0
        %v3803 = vmin.f32 %v3771, 1.0
        %v3804 = vmin.f32 %v3772, 1.0
        %v3805 = vmin.f32 %v3773, 1.0
        %v3806 = vmin.f32 %v3774, 1.0
        %v3807 = vmin.f32 %v3775, 1.0
        %v3808 = vmin.f32 %v3776, 1.0
        %v3809 = vtanh.pop %v2676
        %v3810 = vtanh.pop %v2678
        %v3811 = vtanh.pop %v2747
        %v3812 = vtanh.pop %v2749
        %v3813 = vtanh.pop %v2818
        %v3814 = vtanh.pop %v2820
        %v3815 = vtanh.pop %v2889
        %v3816 = vtanh.pop %v2891
        %v3817 = vtanh.pop %v2960
        %v3818 = vtanh.pop %v2962
        %v3819 = vtanh.pop %v3031
        %v3820 = vtanh.pop %v3033
        %v3821 = vtanh.pop %v3102
        %v3822 = vtanh.pop %v3104
        %v3823 = vtanh.pop %v3173
        %v3824 = vtanh.pop %v3175
        %v3825 = vtanh.pop %v3244
        %v3826 = vtanh.pop %v3246
        %v3827 = vtanh.pop %v3315
        %v3828 = vtanh.pop %v3317
        %v3829 = vtanh.pop %v3386
        %v3830 = vtanh.pop %v3388
        %v3831 = vtanh.pop %v3457
        %v3832 = vtanh.pop %v3459
        %v3833 = vtanh.pop %v3528
        %v3834 = vtanh.pop %v3530
        %v3835 = vtanh.pop %v3599
        %v3836 = vtanh.pop %v3601
        %v3837 = vtanh.pop %v3670
        %v3838 = vtanh.pop %v3672
        %v3839 = vtanh.pop %v3741
        %v3840 = vtanh.pop %v3743
        %v3873 = vcombine.low %v3777, %v3778
        %v3874 = vcombine.low %v3779, %v3780
        %v3875 = vcombine.low %v3781, %v3782
        %v3876 = vcombine.low %v3783, %v3784
        %v3877 = vcombine.low %v3785, %v3786
        %v3878 = vcombine.low %v3787, %v3788
        %v3879 = vcombine.low %v3789, %v3790
        %v3880 = vcombine.low %v3791, %v3792
        %v3881 = vcombine.low %v3793, %v3794
        %v3882 = vcombine.low %v3795, %v3796
        %v3883 = vcombine.low %v3797, %v3798
        %v3884 = vcombine.low %v3799, %v3800
        %v3885 = vcombine.low %v3801, %v3802
        %v3886 = vcombine.low %v3803, %v3804
        %v3887 = vcombine.low %v3805, %v3806
        %v3888 = vcombine.low %v3807, %v3808
        %3905 = vst [vmem:[%s272] sm:$0xff] %v3873
        %3906 = vst [vmem:[%s272 + $0x8] sm:$0xff] %v3874
        %3907 = vst [vmem:[%s272 + $0x10] sm:$0xff] %v3875
        %3908 = vst [vmem:[%s272 + $0x18] sm:$0xff] %v3876
        %3909 = vst [vmem:[%s272 + $0x20] sm:$0xff] %v3877
        %3910 = vst [vmem:[%s272 + $0x28] sm:$0xff] %v3878
        %3911 = vst [vmem:[%s272 + $0x30] sm:$0xff] %v3879
        %3912 = vst [vmem:[%s272 + $0x38] sm:$0xff] %v3880
        %3913 = vst [vmem:[%s272 + $0x40] sm:$0xff] %v3881
        %3914 = vst [vmem:[%s272 + $0x48] sm:$0xff] %v3882
        %3915 = vst [vmem:[%s272 + $0x50] sm:$0xff] %v3883
        %3916 = vst [vmem:[%s272 + $0x58] sm:$0xff] %v3884
        %3917 = vst [vmem:[%s272 + $0x60] sm:$0xff] %v3885
        %3918 = vst [vmem:[%s272 + $0x68] sm:$0xff] %v3886
        %3919 = vst [vmem:[%s272 + $0x70] sm:$0xff] %v3887
        %3920 = vst [vmem:[%s272 + $0x78] sm:$0xff] %v3888
        %v3921 = vadd.f32 %v3777, %v3809
        %v3922 = vadd.f32 %v3778, %v3810
        %v3923 = vadd.f32 %v3779, %v3811
        %v3924 = vadd.f32 %v3780, %v3812
        %v3925 = vadd.f32 %v3781, %v3813
        %v3926 = vadd.f32 %v3782, %v3814
        %v3927 = vadd.f32 %v3783, %v3815
        %v3928 = vadd.f32 %v3784, %v3816
        %v3929 = vadd.f32 %v3785, %v3817
        %v3930 = vadd.f32 %v3786, %v3818
        %v3931 = vadd.f32 %v3787, %v3819
        %v3932 = vadd.f32 %v3788, %v3820
        %v3933 = vadd.f32 %v3789, %v3821
        %v3934 = vadd.f32 %v3790, %v3822
        %v3935 = vadd.f32 %v3791, %v3823
        %v3936 = vadd.f32 %v3792, %v3824
        %v3937 = vadd.f32 %v3793, %v3825
        %v3938 = vadd.f32 %v3794, %v3826
        %v3939 = vadd.f32 %v3795, %v3827
        %v3940 = vadd.f32 %v3796, %v3828
        %v3941 = vadd.f32 %v3797, %v3829
        %v3942 = vadd.f32 %v3798, %v3830
        %v3943 = vadd.f32 %v3799, %v3831
        %v3944 = vadd.f32 %v3800, %v3832
        %v3945 = vadd.f32 %v3801, %v3833
        %v3946 = vadd.f32 %v3802, %v3834
        %v3947 = vadd.f32 %v3803, %v3835
        %v3948 = vadd.f32 %v3804, %v3836
        %v3949 = vadd.f32 %v3805, %v3837
        %v3950 = vadd.f32 %v3806, %v3838
        %v3951 = vadd.f32 %v3807, %v3839
        %v3952 = vadd.f32 %v3808, %v3840
        %v3953 = vmax.f32 %v3921, 0.0
        %v3954 = vmax.f32 %v3922, 0.0
        %v3955 = vmax.f32 %v3923, 0.0
        %v3956 = vmax.f32 %v3924, 0.0
        %v3957 = vmax.f32 %v3925, 0.0
        %v3958 = vmax.f32 %v3926, 0.0
        %v3959 = vmax.f32 %v3927, 0.0
        %v3960 = vmax.f32 %v3928, 0.0
        %v3961 = vmax.f32 %v3929, 0.0
        %v3962 = vmax.f32 %v3930, 0.0
        %v3963 = vmax.f32 %v3931, 0.0
        %v3964 = vmax.f32 %v3932, 0.0
        %v3965 = vmax.f32 %v3933, 0.0
        %v3966 = vmax.f32 %v3934, 0.0
        %v3967 = vmax.f32 %v3935, 0.0
        %v3968 = vmax.f32 %v3936, 0.0
        %v3969 = vmax.f32 %v3937, 0.0
        %v3970 = vmax.f32 %v3938, 0.0
        %v3971 = vmax.f32 %v3939, 0.0
        %v3972 = vmax.f32 %v3940, 0.0
        %v3973 = vmax.f32 %v3941, 0.0
        %v3974 = vmax.f32 %v3942, 0.0
        %v3975 = vmax.f32 %v3943, 0.0
        %v3976 = vmax.f32 %v3944, 0.0
        %v3977 = vmax.f32 %v3945, 0.0
        %v3978 = vmax.f32 %v3946, 0.0
        %v3979 = vmax.f32 %v3947, 0.0
        %v3980 = vmax.f32 %v3948, 0.0
        %v3981 = vmax.f32 %v3949, 0.0
        %v3982 = vmax.f32 %v3950, 0.0
        %v3983 = vmax.f32 %v3951, 0.0
        %v3984 = vmax.f32 %v3952, 0.0
        %v3985 = vmin.f32 %v3953, 1.0
        %v3986 = vmin.f32 %v3954, 1.0
        %v3987 = vmin.f32 %v3955, 1.0
        %v3988 = vmin.f32 %v3956, 1.0
        %v3989 = vmin.f32 %v3957, 1.0
        %v3990 = vmin.f32 %v3958, 1.0
        %v3991 = vmin.f32 %v3959, 1.0
        %v3992 = vmin.f32 %v3960, 1.0
        %v3993 = vmin.f32 %v3961, 1.0
        %v3994 = vmin.f32 %v3962, 1.0
        %v3995 = vmin.f32 %v3963, 1.0
        %v3996 = vmin.f32 %v3964, 1.0
        %v3997 = vmin.f32 %v3965, 1.0
        %v3998 = vmin.f32 %v3966, 1.0
        %v3999 = vmin.f32 %v3967, 1.0
        %v4000 = vmin.f32 %v3968, 1.0
        %v4001 = vmin.f32 %v3969, 1.0
        %v4002 = vmin.f32 %v3970, 1.0
        %v4003 = vmin.f32 %v3971, 1.0
        %v4004 = vmin.f32 %v3972, 1.0
        %v4005 = vmin.f32 %v3973, 1.0
        %v4006 = vmin.f32 %v3974, 1.0
        %v4007 = vmin.f32 %v3975, 1.0
        %v4008 = vmin.f32 %v3976, 1.0
        %v4009 = vmin.f32 %v3977, 1.0
        %v4010 = vmin.f32 %v3978, 1.0
        %v4011 = vmin.f32 %v3979, 1.0
        %v4012 = vmin.f32 %v3980, 1.0
        %v4013 = vmin.f32 %v3981, 1.0
        %v4014 = vmin.f32 %v3982, 1.0
        %v4015 = vmin.f32 %v3983, 1.0
        %v4016 = vmin.f32 %v3984, 1.0
        %v4049 = vcombine.low %v3985, %v3986
        %v4050 = vcombine.low %v3987, %v3988
        %v4051 = vcombine.low %v3989, %v3990
        %v4052 = vcombine.low %v3991, %v3992
        %v4053 = vcombine.low %v3993, %v3994
        %v4054 = vcombine.low %v3995, %v3996
        %v4055 = vcombine.low %v3997, %v3998
        %v4056 = vcombine.low %v3999, %v4000
        %v4057 = vcombine.low %v4001, %v4002
        %v4058 = vcombine.low %v4003, %v4004
        %v4059 = vcombine.low %v4005, %v4006
        %v4060 = vcombine.low %v4007, %v4008
        %v4061 = vcombine.low %v4009, %v4010
        %v4062 = vcombine.low %v4011, %v4012
        %v4063 = vcombine.low %v4013, %v4014
        %v4064 = vcombine.low %v4015, %v4016
        %4081 = vst [vmem:[%s277] sm:$0xff] %v4049
        %4082 = vst [vmem:[%s277 + $0x8] sm:$0xff] %v4050
        %4083 = vst [vmem:[%s277 + $0x10] sm:$0xff] %v4051
        %4084 = vst [vmem:[%s277 + $0x18] sm:$0xff] %v4052
        %4085 = vst [vmem:[%s277 + $0x20] sm:$0xff] %v4053
        %4086 = vst [vmem:[%s277 + $0x28] sm:$0xff] %v4054
        %4087 = vst [vmem:[%s277 + $0x30] sm:$0xff] %v4055
        %4088 = vst [vmem:[%s277 + $0x38] sm:$0xff] %v4056
        %4089 = vst [vmem:[%s277 + $0x40] sm:$0xff] %v4057
        %4090 = vst [vmem:[%s277 + $0x48] sm:$0xff] %v4058
        %4091 = vst [vmem:[%s277 + $0x50] sm:$0xff] %v4059
        %4092 = vst [vmem:[%s277 + $0x58] sm:$0xff] %v4060
        %4093 = vst [vmem:[%s277 + $0x60] sm:$0xff] %v4061
        %4094 = vst [vmem:[%s277 + $0x68] sm:$0xff] %v4062
        %4095 = vst [vmem:[%s277 + $0x70] sm:$0xff] %v4063
        %4096 = vst [vmem:[%s277 + $0x78] sm:$0xff] %v4064
        %p4097 = scmp.lt.s32.totalorder %s19, 1
        %s4098 = scalar_select %p4097, %s19, 1
        %s4099 = smul.addr %s4098, 32
        %s4100 = smul.addr %s4099, 4
        %s4101 = scalar_lea.vmem %s4, %s4100
        %p4102 = scmp.lt.s32.totalorder %s19, 1
        %s4103 = scalar_select %p4102, %s19, 1
        %s4104 = smul.addr %s4103, 32
        %s4105 = smul.addr %s4104, 4
        %s4106 = scalar_lea.vmem %s5, %s4105
        // Predicated region
        $region49: #{srnet_forward.1} parent=35 // pred_check
          %p4107 = pneg %p126
        $region50: #{srnet_forward.1} parent=35 // pred_check_branch
          %4109 = sbr.rel (%p4107) target = $region52
        $region51: #{srnet_forward.1} parent=35 // pred_region
          _
        $region52: #{srnet_forward.1} parent=35 // pred_fallthru
          _
        // Predicated region
        $region53: #{srnet_forward.1} parent=35 // pred_check
          %p4110 = pneg %p152
        $region54: #{srnet_forward.1} parent=35 // pred_check_branch
          %4112 = sbr.rel (%p4110) target = $region56
        $region55: #{srnet_forward.1} parent=35 // pred_region
          _
        $region56: #{srnet_forward.1} parent=35 // pred_fallthru
          _
      $region36: #{srnet_forward.1} parent=5 // pred_fallthru
        _
      %p4113 = scmp.le.s32.totalorder 2, %s14
      // Predicated region
      $region57: #{srnet_forward.1} parent=5 // pred_check
        %p4114 = pneg %p4113
      $region58: #{srnet_forward.1} parent=5 // pred_check_branch
        %4116 = sbr.rel (%p4114) target = $region60
      $region59: #{srnet_forward.1} parent=5 // pred_region
        %s4117 = ssub.s32 %s14, 2
        // Predicated region
        $region61: #{srnet_forward.1} parent=59 // pred_check
          %p4118 = pneg %p132
        $region62: #{srnet_forward.1} parent=59 // pred_check_branch
          %4120 = sbr.rel (%p4118) target = $region64
        $region63: #{srnet_forward.1} parent=59 // pred_region
          %p4121 = scmp.lt.s32.totalorder %s20, 1
          %s4122 = scalar_select %p4121, %s20, 1
          %s4123 = smul.addr %s4122, 32
          %s4124 = smul.addr %s4123, 4
          %s4125 = scalar_lea.vmem %s4, %s4124
        $region64: #{srnet_forward.1} parent=59 // pred_fallthru
          _
        // Predicated region
        $region65: #{srnet_forward.1} parent=59 // pred_check
          %p4126 = pneg %p158
        $region66: #{srnet_forward.1} parent=59 // pred_check_branch
          %4128 = sbr.rel (%p4126) target = $region68
        $region67: #{srnet_forward.1} parent=59 // pred_region
          %p4129 = scmp.lt.s32.totalorder %s20, 1
          %s4130 = scalar_select %p4129, %s20, 1
          %s4131 = smul.addr %s4130, 32
          %s4132 = smul.addr %s4131, 4
          %s4133 = scalar_lea.vmem %s5, %s4132
        $region68: #{srnet_forward.1} parent=59 // pred_fallthru
          _
      $region60: #{srnet_forward.1} parent=5 // pred_fallthru
        _
    $region6: #{srnet_forward.1} parent=1 // loop_footer
      %s18 = sadd.s32 1, %s14
    $region7: #{srnet_forward.1} parent=1 // loop_footer_branch
      %13 = sbr.rel target = $region3
    $region8: #{srnet_forward.1} parent=1 // loop_exit
      _
    %4134 = vsyncpa [#allocation3], 1
    %s4135 = scalar_lea.sflag [#allocation3], 1
    %4136 = vsyncpa %s4135, 1
    %4137 = vsyncpa [#allocation5], 1

</llo_original>
